<compile_context>
chip_gen: v5e
topology: v5e:2x2
jax: 0.10.0
libtpu: 0.0.40
codegen_flags: <defaults>
</compile_context>

<pallas_src>
import jax
import jax.numpy as jnp
from jax.experimental import pallas as pl
from jax.experimental.pallas import tpu as pltpu

# ---------------------------------------------------------------------------
# Model hyper-parameters (small, consistent with the module's forward).
# ---------------------------------------------------------------------------
SEG_LEN = 4           # global used by the original forward
B, S = 2, 3           # batch, segments
C, H, W = 3, 16, 16   # frame shape (NCHW)
CONV_CH = 8           # cnn intermediate channels
FEAT_DIM = 64         # "feat_dim" (768 in the original defaults)
D_MODEL = 32          # "d_model"  (256 in the original defaults); out_dim == D_MODEL
N_LAYER = 2           # "n_layer"
N_CLASSES = 5

BS_TOTAL = B * S                 # clips per stream (6)
BS_PAD = 8                       # clips padded to one full sublane tile
NFR = BS_TOTAL * SEG_LEN         # frames per stream (24)
HW = H * W                       # 256
K_COL = C * 9                    # im2col K (27)
ROWS = SEG_LEN * BS_PAD          # time-major feature rows incl. padding (32)
TILE_M = 2048                    # conv M-tile (rows of the im2col matrix)
N_CHUNK = (NFR * HW) // TILE_M   # 3 M-tiles per stream
assert (NFR * HW) % TILE_M == 0


# ---------------------------------------------------------------------------
# Kernel 1: fused per-stream pipeline (CNN stand-in + TemporalMamba stand-in).
# grid = (stream, m_tile):
#   * every step: conv3x3 (im2col matmul) + ReLU on a 2048-row tile, partial
#     global-average-pool accumulated on the MXU into pooled_scr.
#   * last m_tile: feature projection + vectorized gated EMA-SSM stack over
#     SEG_LEN + last-step readout, written as one (B*S, D_MODEL) block.
# ---------------------------------------------------------------------------
def stream_kernel(cols_ref, pool_ref, w1_ref, b1_ref, w2_ref, b2_ref,
                  win_ref, bin_ref, wl_ref, bl_ref, al_ref, wout_ref, bout_ref,
                  out_ref, pooled_scr, x_scr):
    m = pl.program_id(1)

    @pl.when(m == 0)
    def _init():
        pooled_scr[...] = jnp.zeros_like(pooled_scr)

    # ---- CNN: conv3x3 as im2col matmul + ReLU on this M-tile ----
    x = cols_ref[0]                                                       # (TILE_M, C*9)
    h = jnp.dot(x, w1_ref[...], preferred_element_type=jnp.float32) + b1_ref[...]
    h = jnp.maximum(h, 0.0)                                               # (TILE_M, CONV_CH)

    # ---- Global average pool on the MXU.  pool rows are ordered time-major
    #      (t * BS_PAD + clip) and are zero for padded clips, so this matmul is
    #      simultaneously the GAP and the clip/time transpose for the scan. ----
    pooled_scr[...] += jnp.dot(pool_ref[...], h, preferred_element_type=jnp.float32)

    @pl.when(m == pl.num_programs(1) - 1)
    def _finalize():
        pooled = pooled_scr[...]                                          # (ROWS, CONV_CH)
        feat = jnp.dot(pooled, w2_ref[...],
                       preferred_element_type=jnp.float32) + b2_ref[...]  # (ROWS, FEAT_DIM)

        # ---- TemporalMamba stand-in, vectorized across all clips ----
        xt = jnp.dot(feat, win_ref[0],
                     preferred_element_type=jnp.float32) + bin_ref[0]     # (ROWS, D_MODEL)
        x_scr[...] = xt
        for layer in range(N_LAYER):                                      # static unroll
            xl = x_scr[...]                                               # (ROWS, D)
            u = jnp.dot(xl, wl_ref[0, layer],
                        preferred_element_type=jnp.float32) + bl_ref[0, layer]
            u = u * jax.nn.sigmoid(u)                                     # SiLU
            a = jax.nn.sigmoid(al_ref[0, layer])                          # (1, D) decay gate
            hst = jnp.zeros((BS_PAD, D_MODEL), dtype=jnp.float32)
            for t in range(SEG_LEN):                                      # causal EMA scan
                row0 = t * BS_PAD
                hst = a * hst + (1.0 - a) * u[row0:row0 + BS_PAD]
                x_scr[row0:row0 + BS_PAD, :] = xl[row0:row0 + BS_PAD] + hst   # residual
        last = x_scr[(SEG_LEN - 1) * BS_PAD:SEG_LEN * BS_PAD, :]          # (BS_PAD, D)
        out = jnp.dot(last, wout_ref[0],
                      preferred_element_type=jnp.float32) + bout_ref[0]
        out_ref[0] = out[:BS_TOTAL]                                       # drop padded clips


def stream_forward(cnn_p, temporal_p, cols, pool):
    """cols: (2, NFR*HW, C*9), pool: (ROWS, NFR*HW) -> (2, B*S, D_MODEL)."""
    return pl.pallas_call(
        stream_kernel,
        out_shape=jax.ShapeDtypeStruct((2, BS_TOTAL, D_MODEL), jnp.float32),
        grid=(2, N_CHUNK),
        in_specs=[
            pl.BlockSpec((1, TILE_M, K_COL), lambda s, m: (s, m, 0)),
            pl.BlockSpec((ROWS, TILE_M), lambda s, m: (0, m)),
            pl.BlockSpec((K_COL, CONV_CH), lambda s, m: (0, 0)),
            pl.BlockSpec((1, CONV_CH), lambda s, m: (0, 0)),
            pl.BlockSpec((CONV_CH, FEAT_DIM), lambda s, m: (0, 0)),
            pl.BlockSpec((1, FEAT_DIM), lambda s, m: (0, 0)),
            pl.BlockSpec((1, FEAT_DIM, D_MODEL), lambda s, m: (s, 0, 0)),
            pl.BlockSpec((1, 1, D_MODEL), lambda s, m: (s, 0, 0)),
            pl.BlockSpec((1, N_LAYER, D_MODEL, D_MODEL), lambda s, m: (s, 0, 0, 0)),
            pl.BlockSpec((1, N_LAYER, 1, D_MODEL), lambda s, m: (s, 0, 0, 0)),
            pl.BlockSpec((1, N_LAYER, 1, D_MODEL), lambda s, m: (s, 0, 0, 0)),
            pl.BlockSpec((1, D_MODEL, D_MODEL), lambda s, m: (s, 0, 0)),
            pl.BlockSpec((1, 1, D_MODEL), lambda s, m: (s, 0, 0)),
        ],
        out_specs=pl.BlockSpec((1, BS_TOTAL, D_MODEL), lambda s, m: (s, 0, 0)),
        scratch_shapes=[
            pltpu.VMEM((ROWS, CONV_CH), jnp.float32),   # pooled features accumulator
            pltpu.VMEM((ROWS, D_MODEL), jnp.float32),   # temporal activation scratch
        ],
        compiler_params=pltpu.CompilerParams(
            dimension_semantics=("parallel", "arbitrary")),
    )(cols, pool,
      cnn_p["w1"], cnn_p["b1"], cnn_p["w2"], cnn_p["b2"],
      temporal_p["win"], temporal_p["bin"], temporal_p["wl"], temporal_p["bl"],
      temporal_p["al"], temporal_p["wout"], temporal_p["bout"])


# ---------------------------------------------------------------------------
# Kernel 2: MT_CHAFS fusion + classification head (tiny tail, single call).
# Fusion: per (b,s) softmax over two stream scores, fused vector is
#   [aL*tL, aR*tR, aL, aR]  (dim 2*D_MODEL + 2), then Linear(2D+2 -> 5).
# The concat is realised as a split matmul (exactly equivalent).
# ---------------------------------------------------------------------------
def fuse_head_kernel(t_ref, vl_ref, vr_ref,
                     whl_ref, whr_ref, whal_ref, whar_ref, bh_ref, out_ref):
    tl = t_ref[0]                                                      # (B*S, D)
    tr = t_ref[1]
    sL = jnp.sum(tl * vl_ref[...], axis=-1, keepdims=True)             # (B*S, 1)
    sR = jnp.sum(tr * vr_ref[...], axis=-1, keepdims=True)
    m = jnp.maximum(sL, sR)
    eL = jnp.exp(sL - m)
    eR = jnp.exp(sR - m)
    inv = 1.0 / (eL + eR)
    aL = eL * inv
    aR = eR * inv
    out = (jnp.dot(aL * tl, whl_ref[...], preferred_element_type=jnp.float32)
           + jnp.dot(aR * tr, whr_ref[...], preferred_element_type=jnp.float32)
           + aL * whal_ref[...]
           + aR * whar_ref[...]
           + bh_ref[...])
    out_ref[...] = out


def fuse_head_forward(params, t_all):
    """t_all: (2, B*S, D_MODEL) -> (B*S, 5)."""
    D = D_MODEL
    wh = params["head_w"]                    # (2D+2, 5) single Linear weight, split here
    whl, whr = wh[:D], wh[D:2 * D]
    whal, whar = wh[2 * D:2 * D + 1], wh[2 * D + 1:2 * D + 2]
    return pl.pallas_call(
        fuse_head_kernel,
        out_shape=jax.ShapeDtypeStruct((BS_TOTAL, N_CLASSES), jnp.float32),
    )(t_all, params["fuse_vl"], params["fuse_vr"],
      whl, whr, whal, whar, params["head_b"])


# ---------------------------------------------------------------------------
# Host-side glue (cheap, shape plumbing only).
# ---------------------------------------------------------------------------
def im2col_3x3(frames):
    """frames: (N, C, H, W) NCHW -> (N, H*W, C*9) patch matrix (3x3 conv, pad=1)."""
    N = frames.shape[0]
    xp = jnp.pad(frames, ((0, 0), (0, 0), (1, 1), (1, 1)))
    patches = [xp[:, :, dy:dy + H, dx:dx + W] for dy in range(3) for dx in range(3)]
    cols = jnp.stack(patches, axis=2)                     # (N, C, 9, H, W)
    return cols.transpose(0, 3, 4, 1, 2).reshape(N, HW, K_COL)


def build_pool_matrix():
    """(ROWS, NFR*HW) averaging matrix.  Row j = t*BS_PAD + clip averages the
    H*W conv rows of frame clip*SEG_LEN + t; rows of padded clips are zero."""
    rows = jnp.arange(ROWS)
    t_of = rows // BS_PAD
    c_of = rows % BS_PAD
    frame_of_row = c_of * SEG_LEN + t_of                  # >= NFR for padded clips
    col_frame = jnp.arange(NFR * HW) // HW
    eq = frame_of_row[:, None] == col_frame[None, :]
    return eq.astype(jnp.float32) / float(HW)


def stack_streams(p_left, p_right):
    """Stack left/right temporal params along a leading stream axis of size 2."""
    return {k: jnp.stack([p_left[k], p_right[k]], axis=0) for k in p_left}


def emoformer_forward(params, segL, segR):
    Bn, Sn = segL.shape[:2]
    framesL = segL.reshape(Bn * Sn * SEG_LEN, C, H, W)    # flatten(0,1) twice
    framesR = segR.reshape(Bn * Sn * SEG_LEN, C, H, W)
    frames = jnp.concatenate([framesL, framesR], axis=0)  # (2*NFR, C, H, W)
    cols = im2col_3x3(frames).reshape(2, NFR * HW, K_COL)
    pool = build_pool_matrix()
    t_all = stream_forward(params["cnn"],
                           stack_streams(params["templ"], params["tempr"]),
                           cols, pool)                    # (2, B*S, D_MODEL)
    out = fuse_head_forward(params, t_all)                # (B*S, 5)
    return out.reshape(Bn, Sn, N_CLASSES)


# ---------------------------------------------------------------------------
# Deterministic parameter construction (synthetic, no checkpoints).
# ---------------------------------------------------------------------------
def init_params(key):
    ks = jax.random.split(key, 22)
    nrm = lambda k, shape, s=0.1: (s * jax.random.normal(k, shape)).astype(jnp.float32)

    def temporal_params(base):
        return {
            "win": nrm(base[0], (FEAT_DIM, D_MODEL)),
            "bin": nrm(base[1], (1, D_MODEL)),
            "wl": nrm(base[2], (N_LAYER, D_MODEL, D_MODEL)),
            "bl": nrm(base[3], (N_LAYER, 1, D_MODEL)),
            "al": nrm(base[4], (N_LAYER, 1, D_MODEL), 1.0),
            "wout": nrm(base[5], (D_MODEL, D_MODEL)),
            "bout": nrm(base[6], (1, D_MODEL)),
        }

    return {
        "cnn": {
            "w1": nrm(ks[0], (K_COL, CONV_CH)),
            "b1": nrm(ks[1], (1, CONV_CH)),
            "w2": nrm(ks[2], (CONV_CH, FEAT_DIM)),
            "b2": nrm(ks[3], (1, FEAT_DIM)),
        },
        "templ": temporal_params(ks[4:11]),
        "tempr": temporal_params(ks[11:18]),
        "fuse_vl": nrm(ks[18], (1, D_MODEL), 1.0),
        "fuse_vr": nrm(ks[19], (1, D_MODEL), 1.0),
        "head_w": nrm(ks[20], (2 * D_MODEL + 2, N_CLASSES)),
        "head_b": nrm(ks[21], (1, N_CLASSES)),
    }


if __name__ == "__main__":
    key = jax.random.PRNGKey(0)
    k_in_l, k_in_r, k_param = jax.random.split(key, 3)

    segL = jax.random.normal(k_in_l, (B, S, SEG_LEN, C, H, W), dtype=jnp.float32)
    segR = jax.random.normal(k_in_r, (B, S, SEG_LEN, C, H, W), dtype=jnp.float32)
    params = init_params(k_param)

    fwd = jax.jit(emoformer_forward)
    out = jax.block_until_ready(fwd(params, segL, segR))

    assert out.shape == (B, S, N_CLASSES), out.shape
    assert bool(jnp.all(jnp.isfinite(out)))
    print("KERNEL_OK")
</pallas_src>

<mosaic_0001>
module attributes {stable_mosaic.version = 11 : i64} {
  func.func @stream_kernel(%arg0: i32, %arg1: i32, %arg2: memref<1x2048x27xf32, #tpu.memory_space<vmem>>, %arg3: memref<32x2048xf32, #tpu.memory_space<vmem>>, %arg4: memref<27x8xf32, #tpu.memory_space<vmem>>, %arg5: memref<1x8xf32, #tpu.memory_space<vmem>>, %arg6: memref<8x64xf32, #tpu.memory_space<vmem>>, %arg7: memref<1x64xf32, #tpu.memory_space<vmem>>, %arg8: memref<1x64x32xf32, #tpu.memory_space<vmem>>, %arg9: memref<1x1x32xf32, #tpu.memory_space<vmem>>, %arg10: memref<1x2x32x32xf32, #tpu.memory_space<vmem>>, %arg11: memref<1x2x1x32xf32, #tpu.memory_space<vmem>>, %arg12: memref<1x2x1x32xf32, #tpu.memory_space<vmem>>, %arg13: memref<1x32x32xf32, #tpu.memory_space<vmem>>, %arg14: memref<1x1x32xf32, #tpu.memory_space<vmem>>, %arg15: memref<1x6x32xf32, #tpu.memory_space<vmem>>, %arg16: memref<32x8xf32, #tpu.memory_space<vmem>>, %arg17: memref<32x32xf32, #tpu.memory_space<vmem>>) attributes {dimension_semantics = [#tpu.dimension_semantics<parallel>, #tpu.dimension_semantics<arbitrary>], iteration_bounds = array<i64: 2, 3>, scalar_prefetch = 0 : i64, scratch_operands = 2 : i64, tpu.core_type = #tpu.core_type<tc>, window_params = [{transform_indices = @transform_0, window_bounds = array<i64: 1, 2048, 27>}, {transform_indices = @transform_1, window_bounds = array<i64: 32, 2048>}, {pipeline_mode = #tpu.pipeline_mode<synchronous>, transform_indices = @transform_2, window_bounds = array<i64: 27, 8>}, {pipeline_mode = #tpu.pipeline_mode<synchronous>, transform_indices = @transform_3, window_bounds = array<i64: 1, 8>}, {pipeline_mode = #tpu.pipeline_mode<synchronous>, transform_indices = @transform_4, window_bounds = array<i64: 8, 64>}, {pipeline_mode = #tpu.pipeline_mode<synchronous>, transform_indices = @transform_5, window_bounds = array<i64: 1, 64>}, {transform_indices = @transform_6, window_bounds = array<i64: 1, 64, 32>}, {transform_indices = @transform_7, window_bounds = array<i64: 1, 1, 32>}, {transform_indices = @transform_8, window_bounds = array<i64: 1, 2, 32, 32>}, {transform_indices = @transform_9, window_bounds = array<i64: 1, 2, 1, 32>}, {transform_indices = @transform_10, window_bounds = array<i64: 1, 2, 1, 32>}, {transform_indices = @transform_11, window_bounds = array<i64: 1, 32, 32>}, {transform_indices = @transform_12, window_bounds = array<i64: 1, 1, 32>}, {transform_indices = @transform_13, window_bounds = array<i64: 1, 6, 32>}]} {
    %c0_i32 = arith.constant 0 : i32
    %0 = arith.cmpi eq, %arg1, %c0_i32 : i32
    %1 = arith.extui %0 : i1 to i32
    %c0_i32_0 = arith.constant 0 : i32
    %2 = arith.cmpi ne, %1, %c0_i32_0 : i32
    scf.if %2 {
      %cst_16 = arith.constant 0.000000e+00 : f32
      %20 = vector.broadcast %cst_16 : f32 to vector<32x8xf32>
      %c0_17 = arith.constant 0 : index
      %c0_18 = arith.constant 0 : index
      %21 = vector.load %arg16[%c0_17, %c0_18] : memref<32x8xf32, #tpu.memory_space<vmem>>, vector<32x8xf32>
      tpu.vector_store %arg16[%c0_17, %c0_18], %20 {strides = array<i32>} : memref<32x8xf32, #tpu.memory_space<vmem>>, vector<32x8xf32>,
    } else {
    }
    %c0 = arith.constant 0 : index
    %c0_1 = arith.constant 0 : index
    %c0_2 = arith.constant 0 : index
    %3 = vector.load %arg2[%c0, %c0_1, %c0_2] : memref<1x2048x27xf32, #tpu.memory_space<vmem>>, vector<1x2048x27xf32>
    %4 = vector.shape_cast %3 : vector<1x2048x27xf32> to vector<2048x27xf32>
    %c0_3 = arith.constant 0 : index
    %c0_4 = arith.constant 0 : index
    %5 = vector.load %arg4[%c0_3, %c0_4] : memref<27x8xf32, #tpu.memory_space<vmem>>, vector<27x8xf32>
    %cst = arith.constant dense<0.000000e+00> : vector<2048x8xf32>
    %6 = tpu.matmul %4, %5, %cst {dimension_numbers = #tpu.dot_dimension_numbers<[1], [0], [0], [1], [0, 0, 1, 1], [], []>} : vector<2048x27xf32>, vector<27x8xf32>, vector<2048x8xf32> -> vector<2048x8xf32>
    %c0_5 = arith.constant 0 : index
    %c0_6 = arith.constant 0 : index
    %7 = vector.load %arg5[%c0_5, %c0_6] : memref<1x8xf32, #tpu.memory_space<vmem>>, vector<1x8xf32>
    %8 = vector.broadcast %7 : vector<1x8xf32> to vector<2048x8xf32>
    %9 = arith.addf %6, %8 : vector<2048x8xf32>
    %cst_7 = arith.constant 0.000000e+00 : f32
    %10 = vector.broadcast %cst_7 : f32 to vector<2048x8xf32>
    %11 = arith.maximumf %9, %10 : vector<2048x8xf32>
    %c0_8 = arith.constant 0 : index
    %c0_9 = arith.constant 0 : index
    %12 = vector.load %arg16[%c0_8, %c0_9] : memref<32x8xf32, #tpu.memory_space<vmem>>, vector<32x8xf32>
    %c0_10 = arith.constant 0 : index
    %c0_11 = arith.constant 0 : index
    %13 = vector.load %arg3[%c0_10, %c0_11] : memref<32x2048xf32, #tpu.memory_space<vmem>>, vector<32x2048xf32>
    %cst_12 = arith.constant dense<0.000000e+00> : vector<32x8xf32>
    %14 = tpu.matmul %13, %11, %cst_12 {dimension_numbers = #tpu.dot_dimension_numbers<[1], [0], [0], [1], [0, 0, 1, 1], [], []>} : vector<32x2048xf32>, vector<2048x8xf32>, vector<32x8xf32> -> vector<32x8xf32>
    %15 = arith.addf %12, %14 : vector<32x8xf32>
    %c0_13 = arith.constant 0 : index
    %c0_14 = arith.constant 0 : index
    %16 = vector.load %arg16[%c0_13, %c0_14] : memref<32x8xf32, #tpu.memory_space<vmem>>, vector<32x8xf32>
    tpu.vector_store %arg16[%c0_13, %c0_14], %15 {strides = array<i32>} : memref<32x8xf32, #tpu.memory_space<vmem>>, vector<32x8xf32>,
    %c2_i32 = arith.constant 2 : i32
    %17 = arith.cmpi eq, %arg1, %c2_i32 : i32
    %18 = arith.extui %17 : i1 to i32
    %c0_i32_15 = arith.constant 0 : i32
    %19 = arith.cmpi ne, %18, %c0_i32_15 : i32
    scf.if %19 {
      %c0_16 = arith.constant 0 : index
      %c0_17 = arith.constant 0 : index
      %20 = vector.load %arg16[%c0_16, %c0_17] : memref<32x8xf32, #tpu.memory_space<vmem>>, vector<32x8xf32>
      %c0_18 = arith.constant 0 : index
      %c0_19 = arith.constant 0 : index
      %21 = vector.load %arg6[%c0_18, %c0_19] : memref<8x64xf32, #tpu.memory_space<vmem>>, vector<8x64xf32>
      %cst_20 = arith.constant dense<0.000000e+00> : vector<32x64xf32>
      %22 = tpu.matmul %20, %21, %cst_20 {dimension_numbers = #tpu.dot_dimension_numbers<[1], [0], [0], [1], [0, 0, 1, 1], [], []>} : vector<32x8xf32>, vector<8x64xf32>, vector<32x64xf32> -> vector<32x64xf32>
      %c0_21 = arith.constant 0 : index
      %c0_22 = arith.constant 0 : index
      %23 = vector.load %arg7[%c0_21, %c0_22] : memref<1x64xf32, #tpu.memory_space<vmem>>, vector<1x64xf32>
      %24 = vector.broadcast %23 : vector<1x64xf32> to vector<32x64xf32>
      %25 = arith.addf %22, %24 : vector<32x64xf32>
      %c0_23 = arith.constant 0 : index
      %c0_24 = arith.constant 0 : index
      %c0_25 = arith.constant 0 : index
      %26 = vector.load %arg8[%c0_23, %c0_24, %c0_25] : memref<1x64x32xf32, #tpu.memory_space<vmem>>, vector<1x64x32xf32>
      %27 = vector.shape_cast %26 : vector<1x64x32xf32> to vector<64x32xf32>
      %cst_26 = arith.constant dense<0.000000e+00> : vector<32x32xf32>
      %28 = tpu.matmul %25, %27, %cst_26 {dimension_numbers = #tpu.dot_dimension_numbers<[1], [0], [0], [1], [0, 0, 1, 1], [], []>} : vector<32x64xf32>, vector<64x32xf32>, vector<32x32xf32> -> vector<32x32xf32>
      %c0_27 = arith.constant 0 : index
      %c0_28 = arith.constant 0 : index
      %c0_29 = arith.constant 0 : index
      %29 = vector.load %arg9[%c0_27, %c0_28, %c0_29] : memref<1x1x32xf32, #tpu.memory_space<vmem>>, vector<1x1x32xf32>
      %30 = vector.shape_cast %29 : vector<1x1x32xf32> to vector<1x32xf32>
      %31 = vector.broadcast %30 : vector<1x32xf32> to vector<32x32xf32>
      %32 = arith.addf %28, %31 : vector<32x32xf32>
      %c0_30 = arith.constant 0 : index
      %c0_31 = arith.constant 0 : index
      %33 = vector.load %arg17[%c0_30, %c0_31] : memref<32x32xf32, #tpu.memory_space<vmem>>, vector<32x32xf32>
      tpu.vector_store %arg17[%c0_30, %c0_31], %32 {strides = array<i32>} : memref<32x32xf32, #tpu.memory_space<vmem>>, vector<32x32xf32>,
      %c0_32 = arith.constant 0 : index
      %c0_33 = arith.constant 0 : index
      %34 = vector.load %arg17[%c0_32, %c0_33] : memref<32x32xf32, #tpu.memory_space<vmem>>, vector<32x32xf32>
      %c0_34 = arith.constant 0 : index
      %c0_35 = arith.constant 0 : index
      %c0_36 = arith.constant 0 : index
      %c0_37 = arith.constant 0 : index
      %35 = vector.load %arg10[%c0_34, %c0_35, %c0_36, %c0_37] : memref<1x2x32x32xf32, #tpu.memory_space<vmem>>, vector<1x1x32x32xf32>
      %36 = vector.shape_cast %35 : vector<1x1x32x32xf32> to vector<32x32xf32>
      %cst_38 = arith.constant dense<0.000000e+00> : vector<32x32xf32>
      %37 = tpu.matmul %34, %36, %cst_38 {dimension_numbers = #tpu.dot_dimension_numbers<[1], [0], [0], [1], [0, 0, 1, 1], [], []>} : vector<32x32xf32>, vector<32x32xf32>, vector<32x32xf32> -> vector<32x32xf32>
      %c0_39 = arith.constant 0 : index
      %c0_40 = arith.constant 0 : index
      %c0_41 = arith.constant 0 : index
      %c0_42 = arith.constant 0 : index
      %38 = vector.load %arg11[%c0_39, %c0_40, %c0_41, %c0_42] : memref<1x2x1x32xf32, #tpu.memory_space<vmem>>, vector<1x1x1x32xf32>
      %39 = vector.shape_cast %38 : vector<1x1x1x32xf32> to vector<1x32xf32>
      %40 = vector.broadcast %39 : vector<1x32xf32> to vector<32x32xf32>
      %41 = arith.addf %37, %40 : vector<32x32xf32>
      %42 = arith.negf %41 : vector<32x32xf32>
      %43 = math.exp %42 : vector<32x32xf32>
      %cst_43 = arith.constant 1.000000e+00 : f32
      %44 = vector.broadcast %cst_43 : f32 to vector<32x32xf32>
      %45 = arith.addf %44, %43 : vector<32x32xf32>
      %46 = arith.divf %44, %45 : vector<32x32xf32>
      %47 = arith.mulf %41, %46 : vector<32x32xf32>
      %c0_44 = arith.constant 0 : index
      %c0_45 = arith.constant 0 : index
      %c0_46 = arith.constant 0 : index
      %c0_47 = arith.constant 0 : index
      %48 = vector.load %arg12[%c0_44, %c0_45, %c0_46, %c0_47] : memref<1x2x1x32xf32, #tpu.memory_space<vmem>>, vector<1x1x1x32xf32>
      %49 = vector.shape_cast %48 : vector<1x1x1x32xf32> to vector<1x32xf32>
      %50 = arith.negf %49 : vector<1x32xf32>
      %51 = math.exp %50 : vector<1x32xf32>
      %cst_48 = arith.constant 1.000000e+00 : f32
      %52 = vector.broadcast %cst_48 : f32 to vector<1x32xf32>
      %53 = arith.addf %52, %51 : vector<1x32xf32>
      %54 = arith.divf %52, %53 : vector<1x32xf32>
      %cst_49 = arith.constant 0.000000e+00 : f32
      %55 = vector.broadcast %cst_49 : f32 to vector<8x32xf32>
      %56 = vector.broadcast %54 : vector<1x32xf32> to vector<8x32xf32>
      %57 = arith.mulf %56, %55 : vector<8x32xf32>
      %cst_50 = arith.constant 1.000000e+00 : f32
      %58 = vector.broadcast %cst_50 : f32 to vector<1x32xf32>
      %59 = arith.subf %58, %54 : vector<1x32xf32>
      %60 = vector.extract_strided_slice %47 {offsets = [0, 0], sizes = [8, 32], strides = [1, 1]} : vector<32x32xf32> to vector<8x32xf32>
      %61 = vector.broadcast %59 : vector<1x32xf32> to vector<8x32xf32>
      %62 = arith.mulf %61, %60 : vector<8x32xf32>
      %63 = arith.addf %57, %62 : vector<8x32xf32>
      %64 = vector.extract_strided_slice %34 {offsets = [0, 0], sizes = [8, 32], strides = [1, 1]} : vector<32x32xf32> to vector<8x32xf32>
      %65 = arith.addf %64, %63 : vector<8x32xf32>
      %c0_51 = arith.constant 0 : index
      %c0_52 = arith.constant 0 : index
      %66 = vector.load %arg17[%c0_51, %c0_52] : memref<32x32xf32, #tpu.memory_space<vmem>>, vector<8x32xf32>
      tpu.vector_store %arg17[%c0_51, %c0_52], %65 {strides = array<i32>} : memref<32x32xf32, #tpu.memory_space<vmem>>, vector<8x32xf32>,
      %67 = vector.broadcast %54 : vector<1x32xf32> to vector<8x32xf32>
      %68 = arith.mulf %67, %63 : vector<8x32xf32>
      %cst_53 = arith.constant 1.000000e+00 : f32
      %69 = vector.broadcast %cst_53 : f32 to vector<1x32xf32>
      %70 = arith.subf %69, %54 : vector<1x32xf32>
      %71 = vector.extract_strided_slice %47 {offsets = [8, 0], sizes = [8, 32], strides = [1, 1]} : vector<32x32xf32> to vector<8x32xf32>
      %72 = vector.broadcast %70 : vector<1x32xf32> to vector<8x32xf32>
      %73 = arith.mulf %72, %71 : vector<8x32xf32>
      %74 = arith.addf %68, %73 : vector<8x32xf32>
      %75 = vector.extract_strided_slice %34 {offsets = [8, 0], sizes = [8, 32], strides = [1, 1]} : vector<32x32xf32> to vector<8x32xf32>
      %76 = arith.addf %75, %74 : vector<8x32xf32>
      %c8 = arith.constant 8 : index
      %c0_54 = arith.constant 0 : index
      %77 = vector.load %arg17[%c8, %c0_54] : memref<32x32xf32, #tpu.memory_space<vmem>>, vector<8x32xf32>
      tpu.vector_store %arg17[%c8, %c0_54], %76 {strides = array<i32>} : memref<32x32xf32, #tpu.memory_space<vmem>>, vector<8x32xf32>,
      %78 = vector.broadcast %54 : vector<1x32xf32> to vector<8x32xf32>
      %79 = arith.mulf %78, %74 : vector<8x32xf32>
      %cst_55 = arith.constant 1.000000e+00 : f32
      %80 = vector.broadcast %cst_55 : f32 to vector<1x32xf32>
      %81 = arith.subf %80, %54 : vector<1x32xf32>
      %82 = vector.extract_strided_slice %47 {offsets = [16, 0], sizes = [8, 32], strides = [1, 1]} : vector<32x32xf32> to vector<8x32xf32>
      %83 = vector.broadcast %81 : vector<1x32xf32> to vector<8x32xf32>
      %84 = arith.mulf %83, %82 : vector<8x32xf32>
      %85 = arith.addf %79, %84 : vector<8x32xf32>
      %86 = vector.extract_strided_slice %34 {offsets = [16, 0], sizes = [8, 32], strides = [1, 1]} : vector<32x32xf32> to vector<8x32xf32>
      %87 = arith.addf %86, %85 : vector<8x32xf32>
      %c16 = arith.constant 16 : index
      %c0_56 = arith.constant 0 : index
      %88 = vector.load %arg17[%c16, %c0_56] : memref<32x32xf32, #tpu.memory_space<vmem>>, vector<8x32xf32>
      tpu.vector_store %arg17[%c16, %c0_56], %87 {strides = array<i32>} : memref<32x32xf32, #tpu.memory_space<vmem>>, vector<8x32xf32>,
      %89 = vector.broadcast %54 : vector<1x32xf32> to vector<8x32xf32>
      %90 = arith.mulf %89, %85 : vector<8x32xf32>
      %cst_57 = arith.constant 1.000000e+00 : f32
      %91 = vector.broadcast %cst_57 : f32 to vector<1x32xf32>
      %92 = arith.subf %91, %54 : vector<1x32xf32>
      %93 = vector.extract_strided_slice %47 {offsets = [24, 0], sizes = [8, 32], strides = [1, 1]} : vector<32x32xf32> to vector<8x32xf32>
      %94 = vector.broadcast %92 : vector<1x32xf32> to vector<8x32xf32>
      %95 = arith.mulf %94, %93 : vector<8x32xf32>
      %96 = arith.addf %90, %95 : vector<8x32xf32>
      %97 = vector.extract_strided_slice %34 {offsets = [24, 0], sizes = [8, 32], strides = [1, 1]} : vector<32x32xf32> to vector<8x32xf32>
      %98 = arith.addf %97, %96 : vector<8x32xf32>
      %c24 = arith.constant 24 : index
      %c0_58 = arith.constant 0 : index
      %99 = vector.load %arg17[%c24, %c0_58] : memref<32x32xf32, #tpu.memory_space<vmem>>, vector<8x32xf32>
      tpu.vector_store %arg17[%c24, %c0_58], %98 {strides = array<i32>} : memref<32x32xf32, #tpu.memory_space<vmem>>, vector<8x32xf32>,
      %c0_59 = arith.constant 0 : index
      %c0_60 = arith.constant 0 : index
      %100 = vector.load %arg17[%c0_59, %c0_60] : memref<32x32xf32, #tpu.memory_space<vmem>>, vector<32x32xf32>
      %c0_61 = arith.constant 0 : index
      %c1 = arith.constant 1 : index
      %c0_62 = arith.constant 0 : index
      %c0_63 = arith.constant 0 : index
      %101 = vector.load %arg10[%c0_61, %c1, %c0_62, %c0_63] : memref<1x2x32x32xf32, #tpu.memory_space<vmem>>, vector<1x1x32x32xf32>
      %102 = vector.shape_cast %101 : vector<1x1x32x32xf32> to vector<32x32xf32>
      %cst_64 = arith.constant dense<0.000000e+00> : vector<32x32xf32>
      %103 = tpu.matmul %100, %102, %cst_64 {dimension_numbers = #tpu.dot_dimension_numbers<[1], [0], [0], [1], [0, 0, 1, 1], [], []>} : vector<32x32xf32>, vector<32x32xf32>, vector<32x32xf32> -> vector<32x32xf32>
      %c0_65 = arith.constant 0 : index
      %c1_66 = arith.constant 1 : index
      %c0_67 = arith.constant 0 : index
      %c0_68 = arith.constant 0 : index
      %104 = vector.load %arg11[%c0_65, %c1_66, %c0_67, %c0_68] : memref<1x2x1x32xf32, #tpu.memory_space<vmem>>, vector<1x1x1x32xf32>
      %105 = vector.shape_cast %104 : vector<1x1x1x32xf32> to vector<1x32xf32>
      %106 = vector.broadcast %105 : vector<1x32xf32> to vector<32x32xf32>
      %107 = arith.addf %103, %106 : vector<32x32xf32>
      %108 = arith.negf %107 : vector<32x32xf32>
      %109 = math.exp %108 : vector<32x32xf32>
      %cst_69 = arith.constant 1.000000e+00 : f32
      %110 = vector.broadcast %cst_69 : f32 to vector<32x32xf32>
      %111 = arith.addf %110, %109 : vector<32x32xf32>
      %112 = arith.divf %110, %111 : vector<32x32xf32>
      %113 = arith.mulf %107, %112 : vector<32x32xf32>
      %c0_70 = arith.constant 0 : index
      %c1_71 = arith.constant 1 : index
      %c0_72 = arith.constant 0 : index
      %c0_73 = arith.constant 0 : index
      %114 = vector.load %arg12[%c0_70, %c1_71, %c0_72, %c0_73] : memref<1x2x1x32xf32, #tpu.memory_space<vmem>>, vector<1x1x1x32xf32>
      %115 = vector.shape_cast %114 : vector<1x1x1x32xf32> to vector<1x32xf32>
      %116 = arith.negf %115 : vector<1x32xf32>
      %117 = math.exp %116 : vector<1x32xf32>
      %cst_74 = arith.constant 1.000000e+00 : f32
      %118 = vector.broadcast %cst_74 : f32 to vector<1x32xf32>
      %119 = arith.addf %118, %117 : vector<1x32xf32>
      %120 = arith.divf %118, %119 : vector<1x32xf32>
      %cst_75 = arith.constant 0.000000e+00 : f32
      %121 = vector.broadcast %cst_75 : f32 to vector<8x32xf32>
      %122 = vector.broadcast %120 : vector<1x32xf32> to vector<8x32xf32>
      %123 = arith.mulf %122, %121 : vector<8x32xf32>
      %cst_76 = arith.constant 1.000000e+00 : f32
      %124 = vector.broadcast %cst_76 : f32 to vector<1x32xf32>
      %125 = arith.subf %124, %120 : vector<1x32xf32>
      %126 = vector.extract_strided_slice %113 {offsets = [0, 0], sizes = [8, 32], strides = [1, 1]} : vector<32x32xf32> to vector<8x32xf32>
      %127 = vector.broadcast %125 : vector<1x32xf32> to vector<8x32xf32>
      %128 = arith.mulf %127, %126 : vector<8x32xf32>
      %129 = arith.addf %123, %128 : vector<8x32xf32>
      %130 = vector.extract_strided_slice %100 {offsets = [0, 0], sizes = [8, 32], strides = [1, 1]} : vector<32x32xf32> to vector<8x32xf32>
      %131 = arith.addf %130, %129 : vector<8x32xf32>
      %c0_77 = arith.constant 0 : index
      %c0_78 = arith.constant 0 : index
      %132 = vector.load %arg17[%c0_77, %c0_78] : memref<32x32xf32, #tpu.memory_space<vmem>>, vector<8x32xf32>
      tpu.vector_store %arg17[%c0_77, %c0_78], %131 {strides = array<i32>} : memref<32x32xf32, #tpu.memory_space<vmem>>, vector<8x32xf32>,
      %133 = vector.broadcast %120 : vector<1x32xf32> to vector<8x32xf32>
      %134 = arith.mulf %133, %129 : vector<8x32xf32>
      %cst_79 = arith.constant 1.000000e+00 : f32
      %135 = vector.broadcast %cst_79 : f32 to vector<1x32xf32>
      %136 = arith.subf %135, %120 : vector<1x32xf32>
      %137 = vector.extract_strided_slice %113 {offsets = [8, 0], sizes = [8, 32], strides = [1, 1]} : vector<32x32xf32> to vector<8x32xf32>
      %138 = vector.broadcast %136 : vector<1x32xf32> to vector<8x32xf32>
      %139 = arith.mulf %138, %137 : vector<8x32xf32>
      %140 = arith.addf %134, %139 : vector<8x32xf32>
      %141 = vector.extract_strided_slice %100 {offsets = [8, 0], sizes = [8, 32], strides = [1, 1]} : vector<32x32xf32> to vector<8x32xf32>
      %142 = arith.addf %141, %140 : vector<8x32xf32>
      %c8_80 = arith.constant 8 : index
      %c0_81 = arith.constant 0 : index
      %143 = vector.load %arg17[%c8_80, %c0_81] : memref<32x32xf32, #tpu.memory_space<vmem>>, vector<8x32xf32>
      tpu.vector_store %arg17[%c8_80, %c0_81], %142 {strides = array<i32>} : memref<32x32xf32, #tpu.memory_space<vmem>>, vector<8x32xf32>,
      %144 = vector.broadcast %120 : vector<1x32xf32> to vector<8x32xf32>
      %145 = arith.mulf %144, %140 : vector<8x32xf32>
      %cst_82 = arith.constant 1.000000e+00 : f32
      %146 = vector.broadcast %cst_82 : f32 to vector<1x32xf32>
      %147 = arith.subf %146, %120 : vector<1x32xf32>
      %148 = vector.extract_strided_slice %113 {offsets = [16, 0], sizes = [8, 32], strides = [1, 1]} : vector<32x32xf32> to vector<8x32xf32>
      %149 = vector.broadcast %147 : vector<1x32xf32> to vector<8x32xf32>
      %150 = arith.mulf %149, %148 : vector<8x32xf32>
      %151 = arith.addf %145, %150 : vector<8x32xf32>
      %152 = vector.extract_strided_slice %100 {offsets = [16, 0], sizes = [8, 32], strides = [1, 1]} : vector<32x32xf32> to vector<8x32xf32>
      %153 = arith.addf %152, %151 : vector<8x32xf32>
      %c16_83 = arith.constant 16 : index
      %c0_84 = arith.constant 0 : index
      %154 = vector.load %arg17[%c16_83, %c0_84] : memref<32x32xf32, #tpu.memory_space<vmem>>, vector<8x32xf32>
      tpu.vector_store %arg17[%c16_83, %c0_84], %153 {strides = array<i32>} : memref<32x32xf32, #tpu.memory_space<vmem>>, vector<8x32xf32>,
      %155 = vector.broadcast %120 : vector<1x32xf32> to vector<8x32xf32>
      %156 = arith.mulf %155, %151 : vector<8x32xf32>
      %cst_85 = arith.constant 1.000000e+00 : f32
      %157 = vector.broadcast %cst_85 : f32 to vector<1x32xf32>
      %158 = arith.subf %157, %120 : vector<1x32xf32>
      %159 = vector.extract_strided_slice %113 {offsets = [24, 0], sizes = [8, 32], strides = [1, 1]} : vector<32x32xf32> to vector<8x32xf32>
      %160 = vector.broadcast %158 : vector<1x32xf32> to vector<8x32xf32>
      %161 = arith.mulf %160, %159 : vector<8x32xf32>
      %162 = arith.addf %156, %161 : vector<8x32xf32>
      %163 = vector.extract_strided_slice %100 {offsets = [24, 0], sizes = [8, 32], strides = [1, 1]} : vector<32x32xf32> to vector<8x32xf32>
      %164 = arith.addf %163, %162 : vector<8x32xf32>
      %c24_86 = arith.constant 24 : index
      %c0_87 = arith.constant 0 : index
      %165 = vector.load %arg17[%c24_86, %c0_87] : memref<32x32xf32, #tpu.memory_space<vmem>>, vector<8x32xf32>
      tpu.vector_store %arg17[%c24_86, %c0_87], %164 {strides = array<i32>} : memref<32x32xf32, #tpu.memory_space<vmem>>, vector<8x32xf32>,
      %c24_88 = arith.constant 24 : index
      %c0_89 = arith.constant 0 : index
      %166 = vector.load %arg17[%c24_88, %c0_89] : memref<32x32xf32, #tpu.memory_space<vmem>>, vector<8x32xf32>
      %c0_90 = arith.constant 0 : index
      %c0_91 = arith.constant 0 : index
      %c0_92 = arith.constant 0 : index
      %167 = vector.load %arg13[%c0_90, %c0_91, %c0_92] : memref<1x32x32xf32, #tpu.memory_space<vmem>>, vector<1x32x32xf32>
      %168 = vector.shape_cast %167 : vector<1x32x32xf32> to vector<32x32xf32>
      %cst_93 = arith.constant dense<0.000000e+00> : vector<8x32xf32>
      %169 = tpu.matmul %166, %168, %cst_93 {dimension_numbers = #tpu.dot_dimension_numbers<[1], [0], [0], [1], [0, 0, 1, 1], [], []>} : vector<8x32xf32>, vector<32x32xf32>, vector<8x32xf32> -> vector<8x32xf32>
      %c0_94 = arith.constant 0 : index
      %c0_95 = arith.constant 0 : index
      %c0_96 = arith.constant 0 : index
      %170 = vector.load %arg14[%c0_94, %c0_95, %c0_96] : memref<1x1x32xf32, #tpu.memory_space<vmem>>, vector<1x1x32xf32>
      %171 = vector.shape_cast %170 : vector<1x1x32xf32> to vector<1x32xf32>
      %172 = vector.broadcast %171 : vector<1x32xf32> to vector<8x32xf32>
      %173 = arith.addf %169, %172 : vector<8x32xf32>
      %174 = vector.extract_strided_slice %173 {offsets = [0, 0], sizes = [6, 32], strides = [1, 1]} : vector<8x32xf32> to vector<6x32xf32>
      %c0_97 = arith.constant 0 : index
      %c0_98 = arith.constant 0 : index
      %c0_99 = arith.constant 0 : index
      %175 = vector.load %arg15[%c0_97, %c0_98, %c0_99] : memref<1x6x32xf32, #tpu.memory_space<vmem>>, vector<1x6x32xf32>
      %176 = vector.shape_cast %175 : vector<1x6x32xf32> to vector<6x32xf32>
      %177 = vector.shape_cast %174 : vector<6x32xf32> to vector<1x6x32xf32>
      tpu.vector_store %arg15[%c0_97, %c0_98, %c0_99], %177 {strides = array<i32>} : memref<1x6x32xf32, #tpu.memory_space<vmem>>, vector<1x6x32xf32>,
    } else {
    }
    return
  }
  func.func @transform_0(%arg0: i32, %arg1: i32) -> (i32, i32, i32) {
    %c0_i32 = arith.constant 0 : i32
    %c0_i32_0 = arith.constant 0 : i32
    return %arg0, %arg1, %c0_i32 : i32, i32, i32
  }
  func.func @transform_1(%arg0: i32, %arg1: i32) -> (i32, i32) {
    %c0_i32 = arith.constant 0 : i32
    %c0_i32_0 = arith.constant 0 : i32
    return %c0_i32, %arg1 : i32, i32
  }
  func.func @transform_2(%arg0: i32, %arg1: i32) -> (i32, i32) {
    %c0_i32 = arith.constant 0 : i32
    %c0_i32_0 = arith.constant 0 : i32
    %c0_i32_1 = arith.constant 0 : i32
    return %c0_i32, %c0_i32_0 : i32, i32
  }
  func.func @transform_3(%arg0: i32, %arg1: i32) -> (i32, i32) {
    %c0_i32 = arith.constant 0 : i32
    %c0_i32_0 = arith.constant 0 : i32
    %c0_i32_1 = arith.constant 0 : i32
    return %c0_i32, %c0_i32_0 : i32, i32
  }
  func.func @transform_4(%arg0: i32, %arg1: i32) -> (i32, i32) {
    %c0_i32 = arith.constant 0 : i32
    %c0_i32_0 = arith.constant 0 : i32
    %c0_i32_1 = arith.constant 0 : i32
    return %c0_i32, %c0_i32_0 : i32, i32
  }
  func.func @transform_5(%arg0: i32, %arg1: i32) -> (i32, i32) {
    %c0_i32 = arith.constant 0 : i32
    %c0_i32_0 = arith.constant 0 : i32
    %c0_i32_1 = arith.constant 0 : i32
    return %c0_i32, %c0_i32_0 : i32, i32
  }
  func.func @transform_6(%arg0: i32, %arg1: i32) -> (i32, i32, i32) {
    %c0_i32 = arith.constant 0 : i32
    %c0_i32_0 = arith.constant 0 : i32
    %c0_i32_1 = arith.constant 0 : i32
    return %arg0, %c0_i32, %c0_i32_0 : i32, i32, i32
  }
  func.func @transform_7(%arg0: i32, %arg1: i32) -> (i32, i32, i32) {
    %c0_i32 = arith.constant 0 : i32
    %c0_i32_0 = arith.constant 0 : i32
    %c0_i32_1 = arith.constant 0 : i32
    return %arg0, %c0_i32, %c0_i32_0 : i32, i32, i32
  }
  func.func @transform_8(%arg0: i32, %arg1: i32) -> (i32, i32, i32, i32) {
    %c0_i32 = arith.constant 0 : i32
    %c0_i32_0 = arith.constant 0 : i32
    %c0_i32_1 = arith.constant 0 : i32
    %c0_i32_2 = arith.constant 0 : i32
    return %arg0, %c0_i32, %c0_i32_0, %c0_i32_1 : i32, i32, i32, i32
  }
  func.func @transform_9(%arg0: i32, %arg1: i32) -> (i32, i32, i32, i32) {
    %c0_i32 = arith.constant 0 : i32
    %c0_i32_0 = arith.constant 0 : i32
    %c0_i32_1 = arith.constant 0 : i32
    %c0_i32_2 = arith.constant 0 : i32
    return %arg0, %c0_i32, %c0_i32_0, %c0_i32_1 : i32, i32, i32, i32
  }
  func.func @transform_10(%arg0: i32, %arg1: i32) -> (i32, i32, i32, i32) {
    %c0_i32 = arith.constant 0 : i32
    %c0_i32_0 = arith.constant 0 : i32
    %c0_i32_1 = arith.constant 0 : i32
    %c0_i32_2 = arith.constant 0 : i32
    return %arg0, %c0_i32, %c0_i32_0, %c0_i32_1 : i32, i32, i32, i32
  }
  func.func @transform_11(%arg0: i32, %arg1: i32) -> (i32, i32, i32) {
    %c0_i32 = arith.constant 0 : i32
    %c0_i32_0 = arith.constant 0 : i32
    %c0_i32_1 = arith.constant 0 : i32
    return %arg0, %c0_i32, %c0_i32_0 : i32, i32, i32
  }
  func.func @transform_12(%arg0: i32, %arg1: i32) -> (i32, i32, i32) {
    %c0_i32 = arith.constant 0 : i32
    %c0_i32_0 = arith.constant 0 : i32
    %c0_i32_1 = arith.constant 0 : i32
    return %arg0, %c0_i32, %c0_i32_0 : i32, i32, i32
  }
  func.func @transform_13(%arg0: i32, %arg1: i32) -> (i32, i32, i32) {
    %c0_i32 = arith.constant 0 : i32
    %c0_i32_0 = arith.constant 0 : i32
    %c0_i32_1 = arith.constant 0 : i32
    return %arg0, %c0_i32, %c0_i32_0 : i32, i32, i32
  }
}

module attributes {stable_mosaic.version = 11 : i64} {
  func.func @fuse_head_kernel(%arg0: memref<2x6x32xf32, #tpu.memory_space<vmem>>, %arg1: memref<1x32xf32, #tpu.memory_space<vmem>>, %arg2: memref<1x32xf32, #tpu.memory_space<vmem>>, %arg3: memref<32x5xf32, #tpu.memory_space<vmem>>, %arg4: memref<32x5xf32, #tpu.memory_space<vmem>>, %arg5: memref<1x5xf32, #tpu.memory_space<vmem>>, %arg6: memref<1x5xf32, #tpu.memory_space<vmem>>, %arg7: memref<1x5xf32, #tpu.memory_space<vmem>>, %arg8: memref<6x5xf32, #tpu.memory_space<vmem>>) attributes {dimension_semantics = [], scalar_prefetch = 0 : i64, scratch_operands = 0 : i64, tpu.core_type = #tpu.core_type<tc>} {
    %c0 = arith.constant 0 : index
    %c0_0 = arith.constant 0 : index
    %c0_1 = arith.constant 0 : index
    %0 = vector.load %arg0[%c0, %c0_0, %c0_1] : memref<2x6x32xf32, #tpu.memory_space<vmem>>, vector<1x6x32xf32>
    %1 = vector.shape_cast %0 : vector<1x6x32xf32> to vector<6x32xf32>
    %c1 = arith.constant 1 : index
    %c0_2 = arith.constant 0 : index
    %c0_3 = arith.constant 0 : index
    %2 = vector.load %arg0[%c1, %c0_2, %c0_3] : memref<2x6x32xf32, #tpu.memory_space<vmem>>, vector<1x6x32xf32>
    %3 = vector.shape_cast %2 : vector<1x6x32xf32> to vector<6x32xf32>
    %c0_4 = arith.constant 0 : index
    %c0_5 = arith.constant 0 : index
    %4 = vector.load %arg1[%c0_4, %c0_5] : memref<1x32xf32, #tpu.memory_space<vmem>>, vector<1x32xf32>
    %5 = vector.broadcast %4 : vector<1x32xf32> to vector<6x32xf32>
    %6 = arith.mulf %1, %5 : vector<6x32xf32>
    %cst = arith.constant dense<0.000000e+00> : vector<6xf32>
    %7 = vector.multi_reduction <add>, %6, %cst [1] : vector<6x32xf32> to vector<6xf32>
    %8 = vector.shape_cast %7 : vector<6xf32> to vector<6x1xf32>
    %c0_6 = arith.constant 0 : index
    %c0_7 = arith.constant 0 : index
    %9 = vector.load %arg2[%c0_6, %c0_7] : memref<1x32xf32, #tpu.memory_space<vmem>>, vector<1x32xf32>
    %10 = vector.broadcast %9 : vector<1x32xf32> to vector<6x32xf32>
    %11 = arith.mulf %3, %10 : vector<6x32xf32>
    %cst_8 = arith.constant dense<0.000000e+00> : vector<6xf32>
    %12 = vector.multi_reduction <add>, %11, %cst_8 [1] : vector<6x32xf32> to vector<6xf32>
    %13 = vector.shape_cast %12 : vector<6xf32> to vector<6x1xf32>
    %14 = arith.maximumf %8, %13 : vector<6x1xf32>
    %15 = arith.subf %8, %14 : vector<6x1xf32>
    %16 = math.exp %15 : vector<6x1xf32>
    %17 = arith.subf %13, %14 : vector<6x1xf32>
    %18 = math.exp %17 : vector<6x1xf32>
    %19 = arith.addf %16, %18 : vector<6x1xf32>
    %cst_9 = arith.constant 1.000000e+00 : f32
    %20 = vector.broadcast %cst_9 : f32 to vector<6x1xf32>
    %21 = arith.divf %20, %19 : vector<6x1xf32>
    %22 = arith.mulf %16, %21 : vector<6x1xf32>
    %23 = arith.mulf %18, %21 : vector<6x1xf32>
    %24 = vector.broadcast %22 : vector<6x1xf32> to vector<6x32xf32>
    %25 = arith.mulf %24, %1 : vector<6x32xf32>
    %c0_10 = arith.constant 0 : index
    %c0_11 = arith.constant 0 : index
    %26 = vector.load %arg3[%c0_10, %c0_11] : memref<32x5xf32, #tpu.memory_space<vmem>>, vector<32x5xf32>
    %cst_12 = arith.constant dense<0.000000e+00> : vector<6x5xf32>
    %27 = tpu.matmul %25, %26, %cst_12 {dimension_numbers = #tpu.dot_dimension_numbers<[1], [0], [0], [1], [0, 0, 1, 1], [], []>} : vector<6x32xf32>, vector<32x5xf32>, vector<6x5xf32> -> vector<6x5xf32>
    %28 = vector.broadcast %23 : vector<6x1xf32> to vector<6x32xf32>
    %29 = arith.mulf %28, %3 : vector<6x32xf32>
    %c0_13 = arith.constant 0 : index
    %c0_14 = arith.constant 0 : index
    %30 = vector.load %arg4[%c0_13, %c0_14] : memref<32x5xf32, #tpu.memory_space<vmem>>, vector<32x5xf32>
    %cst_15 = arith.constant dense<0.000000e+00> : vector<6x5xf32>
    %31 = tpu.matmul %29, %30, %cst_15 {dimension_numbers = #tpu.dot_dimension_numbers<[1], [0], [0], [1], [0, 0, 1, 1], [], []>} : vector<6x32xf32>, vector<32x5xf32>, vector<6x5xf32> -> vector<6x5xf32>
    %32 = arith.addf %27, %31 : vector<6x5xf32>
    %c0_16 = arith.constant 0 : index
    %c0_17 = arith.constant 0 : index
    %33 = vector.load %arg5[%c0_16, %c0_17] : memref<1x5xf32, #tpu.memory_space<vmem>>, vector<1x5xf32>
    %34 = vector.broadcast %22 : vector<6x1xf32> to vector<6x5xf32>
    %35 = vector.broadcast %33 : vector<1x5xf32> to vector<6x5xf32>
    %36 = arith.mulf %34, %35 : vector<6x5xf32>
    %37 = arith.addf %32, %36 : vector<6x5xf32>
    %c0_18 = arith.constant 0 : index
    %c0_19 = arith.constant 0 : index
    %38 = vector.load %arg6[%c0_18, %c0_19] : memref<1x5xf32, #tpu.memory_space<vmem>>, vector<1x5xf32>
    %39 = vector.broadcast %23 : vector<6x1xf32> to vector<6x5xf32>
    %40 = vector.broadcast %38 : vector<1x5xf32> to vector<6x5xf32>
    %41 = arith.mulf %39, %40 : vector<6x5xf32>
    %42 = arith.addf %37, %41 : vector<6x5xf32>
    %c0_20 = arith.constant 0 : index
    %c0_21 = arith.constant 0 : index
    %43 = vector.load %arg7[%c0_20, %c0_21] : memref<1x5xf32, #tpu.memory_space<vmem>>, vector<1x5xf32>
    %44 = vector.broadcast %43 : vector<1x5xf32> to vector<6x5xf32>
    %45 = arith.addf %42, %44 : vector<6x5xf32>
    %c0_22 = arith.constant 0 : index
    %c0_23 = arith.constant 0 : index
    %46 = vector.load %arg8[%c0_22, %c0_23] : memref<6x5xf32, #tpu.memory_space<vmem>>, vector<6x5xf32>
    tpu.vector_store %arg8[%c0_22, %c0_23], %45 {strides = array<i32>} : memref<6x5xf32, #tpu.memory_space<vmem>>, vector<6x5xf32>,
    return
  }
}

</mosaic_0001>

<llo_original>
// kernel: emoformer_forward.3
$region0: #{emoformer_forward.3}
  #allocation0 [shape = 'u32[]', space=smem, size = 0x4, offset = 0x4, fixed_abs, tag = 'smem constant byte address 0x4 - core index']
  #allocation1 [shape = 'u32[72,128]{1,0:T(1,128)}', space=vmem, size = 0x9000, scoped, tag = 'internal scratch']
  %s0 = inlined_call_operand.vmem [shape: f32[2,6,32], index: 0, kind: input, shape index: {}]
  %s1 = inlined_call_operand.vmem [shape: f32[1,32], index: 1, kind: input, shape index: {}]
  %s2 = inlined_call_operand.vmem [shape: f32[1,32], index: 2, kind: input, shape index: {}]
  %s3 = inlined_call_operand.vmem [shape: f32[32,5], index: 3, kind: input, shape index: {}]
  %s4 = inlined_call_operand.vmem [shape: f32[32,5], index: 4, kind: input, shape index: {}]
  %s5 = inlined_call_operand.vmem [shape: f32[1,5], index: 5, kind: input, shape index: {}]
  %s6 = inlined_call_operand.vmem [shape: f32[1,5], index: 6, kind: input, shape index: {}]
  %s7 = inlined_call_operand.vmem [shape: f32[1,5], index: 7, kind: input, shape index: {}]
  %s8 = inlined_call_operand.vmem [shape: f32[6,5], index: 8, kind: output, shape index: {}]
  %s9 = sld [smem:[#allocation0]]
  $region42: #{emoformer_forward.3} parent=0
    _
  %s11 = ssub.s32 1, %s9
  %s12 = scalar_select 0, %s11, %s9
  // Predicated region
  $region2: #{emoformer_forward.3} parent=0 // pred_check
    _
  $region3: #{emoformer_forward.3} parent=0 // pred_check_branch
    %14 = sbr.rel (0) target = $region5
  $region4: #{emoformer_forward.3} parent=0 // pred_region
    _
  $region5: #{emoformer_forward.3} parent=0 // pred_fallthru
    _
  // Predicated region
  $region6: #{emoformer_forward.3} parent=0 // pred_check
    _
  $region7: #{emoformer_forward.3} parent=0 // pred_check_branch
    %16 = sbr.rel (0) target = $region9
  $region8: #{emoformer_forward.3} parent=0 // pred_region
    _
  $region9: #{emoformer_forward.3} parent=0 // pred_fallthru
    _
  // Predicated region
  $region10: #{emoformer_forward.3} parent=0 // pred_check
    _
  $region11: #{emoformer_forward.3} parent=0 // pred_check_branch
    %18 = sbr.rel (0) target = $region13
  $region12: #{emoformer_forward.3} parent=0 // pred_region
    _
  $region13: #{emoformer_forward.3} parent=0 // pred_fallthru
    _
  // Predicated region
  $region14: #{emoformer_forward.3} parent=0 // pred_check
    _
  $region15: #{emoformer_forward.3} parent=0 // pred_check_branch
    %20 = sbr.rel (0) target = $region17
  $region16: #{emoformer_forward.3} parent=0 // pred_region
    _
  $region17: #{emoformer_forward.3} parent=0 // pred_fallthru
    _
  // Predicated region
  $region18: #{emoformer_forward.3} parent=0 // pred_check
    _
  $region19: #{emoformer_forward.3} parent=0 // pred_check_branch
    %22 = sbr.rel (0) target = $region21
  $region20: #{emoformer_forward.3} parent=0 // pred_region
    _
  $region21: #{emoformer_forward.3} parent=0 // pred_fallthru
    _
  // Predicated region
  $region22: #{emoformer_forward.3} parent=0 // pred_check
    _
  $region23: #{emoformer_forward.3} parent=0 // pred_check_branch
    %24 = sbr.rel (0) target = $region25
  $region24: #{emoformer_forward.3} parent=0 // pred_region
    _
  $region25: #{emoformer_forward.3} parent=0 // pred_fallthru
    _
  // Predicated region
  $region26: #{emoformer_forward.3} parent=0 // pred_check
    _
  $region27: #{emoformer_forward.3} parent=0 // pred_check_branch
    %26 = sbr.rel (0) target = $region29
  $region28: #{emoformer_forward.3} parent=0 // pred_region
    _
  $region29: #{emoformer_forward.3} parent=0 // pred_fallthru
    _
  // Predicated region
  $region30: #{emoformer_forward.3} parent=0 // pred_check
    _
  $region31: #{emoformer_forward.3} parent=0 // pred_check_branch
    %28 = sbr.rel (0) target = $region33
  $region32: #{emoformer_forward.3} parent=0 // pred_region
    _
  $region33: #{emoformer_forward.3} parent=0 // pred_fallthru
    _
  %v29 = vld [vmem:[%s0] sm:$0x3f]
  %s30 = scalar_lea.vmem %s0, 8
  %v31 = vld [vmem:[%s30] sm:$0x3f]
  %v32 = vld [vmem:[%s1] sm:$0x1]
  %v34 = vperm.slane %v32, 0
  %v36 = vmul.f32 %v29, %v34
  %vm37 = vcmask 259072
  %v38 = vsel %vm37, %v36, 0.0
  %39 = vadd.xlane.f32.xlu0 %v38
  %v40 = vpop.xlane.xlu0 %39
  %v41 = vld [vmem:[%s2] sm:$0x1]
  %v43 = vperm.slane %v41, 0
  %v45 = vmul.f32 %v31, %v43
  %v46 = vsel %vm37, %v45, 0.0
  %47 = vadd.xlane.f32.xlu0 %v46
  %v48 = vpop.xlane.xlu0 %47
  %v49 = vmax.f32 %v40, %v48
  %v50 = vsub.f32 %v40, %v49
  %v51 = vmul.f32 %v50, 1.442695
  %v52 = vpow.pop %v51
  %v53 = vsub.f32 %v48, %v49
  %v54 = vmul.f32 %v53, 1.442695
  %v55 = vpow.pop %v54
  %v56 = vadd.f32 %v52, %v55
  %v57 = vrcp.pop %v56
  %v58 = vmul.f32 %v56, %v57
  %v59 = vsub.f32 1.0, %v58
  %v60 = vmul.f32 %v57, %v59
  %v61 = vadd.f32 %v57, %v60
  %vm62 = vweird.f32 %v56
  %vm63 = vweird.f32 %v57
  %vm64 = vmor %vm62, %vm63
  %v65 = vsel %vm64, %v57, %v61
  %v66 = vand.u32 2147483647, %v56
  %vm67 = vcmp.eq.f32.partialorder %v66, 8.507059e+37
  %v68 = vand.u32 %v56, 2147483648
  %v69 = vor.u32 1.1754944e-38, %v68
  %v70 = vsel %vm67, %v69, %v65
  %v71 = vmul.f32 1.0, %v70
  %v72 = vmul.f32 %v52, %v71
  %v73 = vmul.f32 %v55, %v71
  %v74 = vmul.f32 %v72, %v29
  %v75 = vld [vmem:[%s3] sm:$0xff]
  %v76 = vld [vmem:[%s3 + $0x8] sm:$0xff]
  %v77 = vld [vmem:[%s3 + $0x10] sm:$0xff]
  %v78 = vld [vmem:[%s3 + $0x18] sm:$0xff]
  %v79 = vmul.f32 %v73, %v31
  %v80 = vld [vmem:[%s4] sm:$0xff]
  %v81 = vld [vmem:[%s4 + $0x8] sm:$0xff]
  %v82 = vld [vmem:[%s4 + $0x10] sm:$0xff]
  %v83 = vld [vmem:[%s4 + $0x18] sm:$0xff]
  %vm84 = vcmask 261120
  %v86 = vsel %vm84, %v79, 0
  %88 = vmatpush.msra.mxu0 0.0
  %89 = vmatpush.msra.mxu0 0.0
  %90 = vmatpush.msra.mxu0 0.0
  %91 = vmatpush.msra.mxu0 0.0
  %92 = vmatpush.msra.mxu0 0.0
  %93 = vmatpush.msra.mxu0 0.0
  %94 = vmatpush.msra.mxu0 0.0
  %95 = vmatpush.msra.mxu0 0.0
  %96 = vmatpush.msra.mxu0 0.0
  %97 = vmatpush.msra.mxu0 0.0
  %98 = vmatpush.msra.mxu0 0.0
  %99 = vmatpush.msra.mxu0 0.0
  %100 = vmatpush.msra.mxu0 %v83
  %101 = vmatpush.msra.mxu0 %v82
  %102 = vmatpush.msra.mxu0 %v81
  %103 = vmatpush.msra.mxu0 %v80
  %104 = vmatmul.f32.gmra.mxu0 %v86
  %v105 = vpop.f32.mrf.mxu0
  %v106 = vadd.f32 0.0, %v105
  %107 = vdwg.mxu0
  %v109 = vsel %vm84, %v74, 0
  %111 = vmatpush.msra.mxu0 0.0
  %112 = vmatpush.msra.mxu0 0.0
  %113 = vmatpush.msra.mxu0 0.0
  %114 = vmatpush.msra.mxu0 0.0
  %115 = vmatpush.msra.mxu0 0.0
  %116 = vmatpush.msra.mxu0 0.0
  %117 = vmatpush.msra.mxu0 0.0
  %118 = vmatpush.msra.mxu0 0.0
  %119 = vmatpush.msra.mxu0 0.0
  %120 = vmatpush.msra.mxu0 0.0
  %121 = vmatpush.msra.mxu0 0.0
  %122 = vmatpush.msra.mxu0 0.0
  %123 = vmatpush.msra.mxu0 %v78
  %124 = vmatpush.msra.mxu0 %v77
  %125 = vmatpush.msra.mxu0 %v76
  %126 = vmatpush.msra.mxu0 %v75
  %127 = vmatmul.f32.gmra.mxu0 %v109
  %v128 = vpop.f32.mrf.mxu0
  %v129 = vadd.f32 %v106, %v128
  %130 = vdwg.mxu0
  %v131 = vld [vmem:[%s5] sm:$0x1]
  %v133 = vperm.slane %v131, 0
  %v135 = vmul.f32 %v72, %v133
  %v136 = vadd.f32 %v129, %v135
  %v137 = vld [vmem:[%s6] sm:$0x1]
  %v139 = vperm.slane %v137, 0
  %v141 = vmul.f32 %v73, %v139
  %v142 = vadd.f32 %v136, %v141
  %v143 = vld [vmem:[%s7] sm:$0x1]
  %v145 = vperm.slane %v143, 0
  %v147 = vadd.f32 %v142, %v145
  %vm148 = vcmask 37888
  %149 = vst.msk [vmem:[%s8] sm:$0x3f] %vm148, %v147
  // Predicated region
  $region34: #{emoformer_forward.3} parent=0 // pred_check
    _
  $region35: #{emoformer_forward.3} parent=0 // pred_check_branch
    %151 = sbr.rel (0) target = $region37
  $region36: #{emoformer_forward.3} parent=0 // pred_region
    _
  $region37: #{emoformer_forward.3} parent=0 // pred_fallthru
    _
  // Predicated region
  $region38: #{emoformer_forward.3} parent=0 // pred_check
    _
  $region39: #{emoformer_forward.3} parent=0 // pred_check_branch
    %153 = sbr.rel (0) target = $region41
  $region40: #{emoformer_forward.3} parent=0 // pred_region
    _
  $region41: #{emoformer_forward.3} parent=0 // pred_fallthru
    _

// kernel: emoformer_forward.2
$region0: #{emoformer_forward.2}
  #allocation0 [shape = 'u32[]', space=smem, size = 0x4, offset = 0x4, fixed_abs, tag = 'smem constant byte address 0x4 - core index']
  #allocation1 [shape = 'u32[72,128]{1,0:T(1,128)}', space=vmem, size = 0x9000, scoped, tag = 'internal scratch']
  #allocation2 [shape = 'f32[32,8]{1,0:T(8,128)}', space=vmem, size = 0x4000, scoped, tag = 'scratch operand']
  #allocation3 [shape = 'f32[32,32]{1,0:T(8,128)}', space=vmem, size = 0x4000, scoped, tag = 'scratch operand']
  %s0 = inlined_call_operand.vmem [shape: f32[2,6144,27], index: 0, kind: input, shape index: {}]
  %s1 = inlined_call_operand.vmem [shape: f32[32,6144], index: 1, kind: input, shape index: {}]
  %s2 = inlined_call_operand.vmem [shape: f32[27,8], index: 2, kind: input, shape index: {}]
  %s3 = inlined_call_operand.vmem [shape: f32[1,8], index: 3, kind: input, shape index: {}]
  %s4 = inlined_call_operand.vmem [shape: f32[8,64], index: 4, kind: input, shape index: {}]
  %s5 = inlined_call_operand.vmem [shape: f32[1,64], index: 5, kind: input, shape index: {}]
  %s6 = inlined_call_operand.vmem [shape: f32[2,64,32], index: 6, kind: input, shape index: {}]
  %s7 = inlined_call_operand.vmem [shape: f32[2,1,32], index: 7, kind: input, shape index: {}]
  %s8 = inlined_call_operand.vmem [shape: f32[2,2,32,32], index: 8, kind: input, shape index: {}]
  %s9 = inlined_call_operand.vmem [shape: f32[2,2,1,32], index: 9, kind: input, shape index: {}]
  %s10 = inlined_call_operand.vmem [shape: f32[2,2,1,32], index: 10, kind: input, shape index: {}]
  %s11 = inlined_call_operand.vmem [shape: f32[2,32,32], index: 11, kind: input, shape index: {}]
  %s12 = inlined_call_operand.vmem [shape: f32[2,1,32], index: 12, kind: input, shape index: {}]
  %s13 = inlined_call_operand.vmem [shape: f32[2,6,32], index: 13, kind: output, shape index: {}]
  %s14 = sld [smem:[#allocation0]]
  $region116: #{emoformer_forward.2} parent=0
    _
  %s16 = ssub.s32 1, %s14
  %s17 = scalar_select 0, %s16, %s14
  $region1: #{emoformer_forward.2} parent=0
    #allocation4 [shape = 'u8[524288]{0}', space=vmem, size = 0x80000, scoped, tag = 'input window, operand 1']
    loop: start=0, step=1, limit=8
    $region2: #{emoformer_forward.2} parent=1 // loop_pre_header
      _
    $region3: #{emoformer_forward.2} parent=1 // loop_header
      %s19 = sphi 0, %s23
      %p20 = scmp.ge.s32.totalorder %s19, 8
      %s26 = sphi 0, %s38
      %s27 = sphi 0, %s34
      %s28 = sphi 0, %s26
      %s29 = sphi 0, %s27
      %s30 = sphi 0, %s28
      %s31 = sphi 0, %s29
      %s43 = sphi 0, %s45
      %s46 = sphi 0, %s43
      %s47 = sphi 0, %s46
      %s63 = sphi 0, %s47
      %s69 = sphi 0, %s71
      %s72 = sphi 0, %s69
      %s73 = sphi 0, %s72
      %s89 = sphi 0, %s73
      %s93 = sphi 0, %s93
      %s95 = sphi 0, %s93
      %s96 = sphi 0, %s95
      %s110 = sphi 0, %s96
      %s114 = sphi 0, %s114
      %s116 = sphi 0, %s114
      %s117 = sphi 0, %s116
      %s131 = sphi 0, %s117
      %s135 = sphi 0, %s135
      %s137 = sphi 0, %s135
      %s138 = sphi 0, %s137
      %s152 = sphi 0, %s138
      %s156 = sphi 0, %s156
      %s158 = sphi 0, %s156
      %s159 = sphi 0, %s158
      %s173 = sphi 0, %s159
      %s179 = sphi 0, %s181
      %s182 = sphi 0, %s179
      %s183 = sphi 0, %s182
      %s199 = sphi 0, %s183
      %s205 = sphi 0, %s207
      %s208 = sphi 0, %s205
      %s209 = sphi 0, %s208
      %s225 = sphi 0, %s209
      %s231 = sphi 0, %s233
      %s234 = sphi 0, %s231
      %s235 = sphi 0, %s234
      %s251 = sphi 0, %s235
      %s257 = sphi 0, %s259
      %s260 = sphi 0, %s257
      %s261 = sphi 0, %s260
      %s277 = sphi 0, %s261
      %s283 = sphi 0, %s285
      %s286 = sphi 0, %s283
      %s287 = sphi 0, %s286
      %s303 = sphi 0, %s287
      %s309 = sphi 0, %s311
      %s312 = sphi 0, %s309
      %s313 = sphi 0, %s312
      %s329 = sphi 0, %s313
      %s335 = sphi 0, %s337
      %s338 = sphi 0, %s335
      %s339 = sphi 0, %s338
      %s355 = sphi 0, %s339
      %s361 = sphi 0, %s363
      %s364 = sphi 0, %s361
      %s365 = sphi 0, %s364
      %s381 = sphi 0, %s365
    $region4: #{emoformer_forward.2} parent=1 // loop_header_branch
      %22 = sbr.rel (%p20) target = $region8
    $region5: #{emoformer_forward.2} parent=1 // loop_body
      %s24 = ssub.s32 %s19, 1
      %s25 = ssub.s32 %s19, 2
      %s32 = sadd.s32 1, %s27
      %p33 = scmp.ge.s32.totalorder %s32, 3
      %s34 = scalar_select %p33, 0, %s32
      %s35 = sadd.s32 1, %s26
      %s36 = scalar_select %p33, %s35, %s26
      %p37 = scmp.ge.s32.totalorder %s36, 2
      %s38 = scalar_select %p37, 0, %s36
      %s39 = ssub.s32 %s26, %s38
      %s40 = ssub.s32 %s27, %s34
      %s41 = sor.u32 %s39, %s40
      %p42 = scmp.eq.s32.totalorder %s41, 0
      %s44 = sadd.s32 %s43, 1
      %s45 = scalar_select %p42, %s43, %s44
      %p48 = pneg %p42
      %p49 = scmp.eq.s32.totalorder %s19, 5
      %p50 = por %p48, %p49
      %p51 = scmp.ne.s32.totalorder %s43, %s46
      %p52 = scmp.eq.s32.totalorder %s19, 0
      %p53 = por %p51, %p52
      %p54 = scmp.ne.s32.totalorder %s43, %s46
      %p55 = scmp.eq.s32.totalorder %s24, 5
      %p56 = por %p54, %p55
      %p57 = scmp.ne.s32.totalorder %s46, %s47
      %p58 = scmp.eq.s32.totalorder %s24, 0
      %p59 = por %p57, %p58
      %p60 = scmp.ne.s32.totalorder %s46, %s47
      %p61 = scmp.eq.s32.totalorder %s25, 5
      %p62 = por %p60, %p61
      %p64 = scmp.ne.s32.totalorder %s47, %s63
      %p65 = scmp.eq.s32.totalorder %s25, 0
      %p66 = por %p64, %p65
      %s67 = ssub.s32 %s27, %s34
      %p68 = scmp.eq.s32.totalorder %s67, 0
      %s70 = sadd.s32 %s69, 1
      %s71 = scalar_select %p68, %s69, %s70
      %p74 = pneg %p68
      %p75 = scmp.eq.s32.totalorder %s19, 5
      %p76 = por %p74, %p75
      %p77 = scmp.ne.s32.totalorder %s69, %s72
      %p78 = scmp.eq.s32.totalorder %s19, 0
      %p79 = por %p77, %p78
      %p80 = scmp.ne.s32.totalorder %s69, %s72
      %p81 = scmp.eq.s32.totalorder %s24, 5
      %p82 = por %p80, %p81
      %p83 = scmp.ne.s32.totalorder %s72, %s73
      %p84 = scmp.eq.s32.totalorder %s24, 0
      %p85 = por %p83, %p84
      %p86 = scmp.ne.s32.totalorder %s72, %s73
      %p87 = scmp.eq.s32.totalorder %s25, 5
      %p88 = por %p86, %p87
      %p90 = scmp.ne.s32.totalorder %s73, %s89
      %p91 = scmp.eq.s32.totalorder %s25, 0
      %p92 = por %p90, %p91
      %s94 = sadd.s32 %s93, 1
      %p97 = scmp.eq.s32.totalorder %s19, 5
      %p98 = scmp.ne.s32.totalorder %s93, %s95
      %p99 = scmp.eq.s32.totalorder %s19, 0
      %p100 = por %p98, %p99
      %p101 = scmp.ne.s32.totalorder %s93, %s95
      %p102 = scmp.eq.s32.totalorder %s24, 5
      %p103 = por %p101, %p102
      %p104 = scmp.ne.s32.totalorder %s95, %s96
      %p105 = scmp.eq.s32.totalorder %s24, 0
      %p106 = por %p104, %p105
      %p107 = scmp.ne.s32.totalorder %s95, %s96
      %p108 = scmp.eq.s32.totalorder %s25, 5
      %p109 = por %p107, %p108
      %p111 = scmp.ne.s32.totalorder %s96, %s110
      %p112 = scmp.eq.s32.totalorder %s25, 0
      %p113 = por %p111, %p112
      %s115 = sadd.s32 %s114, 1
      %p118 = scmp.eq.s32.totalorder %s19, 5
      %p119 = scmp.ne.s32.totalorder %s114, %s116
      %p120 = scmp.eq.s32.totalorder %s19, 0
      %p121 = por %p119, %p120
      %p122 = scmp.ne.s32.totalorder %s114, %s116
      %p123 = scmp.eq.s32.totalorder %s24, 5
      %p124 = por %p122, %p123
      %p125 = scmp.ne.s32.totalorder %s116, %s117
      %p126 = scmp.eq.s32.totalorder %s24, 0
      %p127 = por %p125, %p126
      %p128 = scmp.ne.s32.totalorder %s116, %s117
      %p129 = scmp.eq.s32.totalorder %s25, 5
      %p130 = por %p128, %p129
      %p132 = scmp.ne.s32.totalorder %s117, %s131
      %p133 = scmp.eq.s32.totalorder %s25, 0
      %p134 = por %p132, %p133
      %s136 = sadd.s32 %s135, 1
      %p139 = scmp.eq.s32.totalorder %s19, 5
      %p140 = scmp.ne.s32.totalorder %s135, %s137
      %p141 = scmp.eq.s32.totalorder %s19, 0
      %p142 = por %p140, %p141
      %p143 = scmp.ne.s32.totalorder %s135, %s137
      %p144 = scmp.eq.s32.totalorder %s24, 5
      %p145 = por %p143, %p144
      %p146 = scmp.ne.s32.totalorder %s137, %s138
      %p147 = scmp.eq.s32.totalorder %s24, 0
      %p148 = por %p146, %p147
      %p149 = scmp.ne.s32.totalorder %s137, %s138
      %p150 = scmp.eq.s32.totalorder %s25, 5
      %p151 = por %p149, %p150
      %p153 = scmp.ne.s32.totalorder %s138, %s152
      %p154 = scmp.eq.s32.totalorder %s25, 0
      %p155 = por %p153, %p154
      %s157 = sadd.s32 %s156, 1
      %p160 = scmp.eq.s32.totalorder %s19, 5
      %p161 = scmp.ne.s32.totalorder %s156, %s158
      %p162 = scmp.eq.s32.totalorder %s19, 0
      %p163 = por %p161, %p162
      %p164 = scmp.ne.s32.totalorder %s156, %s158
      %p165 = scmp.eq.s32.totalorder %s24, 5
      %p166 = por %p164, %p165
      %p167 = scmp.ne.s32.totalorder %s158, %s159
      %p168 = scmp.eq.s32.totalorder %s24, 0
      %p169 = por %p167, %p168
      %p170 = scmp.ne.s32.totalorder %s158, %s159
      %p171 = scmp.eq.s32.totalorder %s25, 5
      %p172 = por %p170, %p171
      %p174 = scmp.ne.s32.totalorder %s159, %s173
      %p175 = scmp.eq.s32.totalorder %s25, 0
      %p176 = por %p174, %p175
      %s177 = ssub.s32 %s26, %s38
      %p178 = scmp.eq.s32.totalorder %s177, 0
      %s180 = sadd.s32 %s179, 1
      %s181 = scalar_select %p178, %s179, %s180
      %p184 = pneg %p178
      %p185 = scmp.eq.s32.totalorder %s19, 5
      %p186 = por %p184, %p185
      %p187 = scmp.ne.s32.totalorder %s179, %s182
      %p188 = scmp.eq.s32.totalorder %s19, 0
      %p189 = por %p187, %p188
      %p190 = scmp.ne.s32.totalorder %s179, %s182
      %p191 = scmp.eq.s32.totalorder %s24, 5
      %p192 = por %p190, %p191
      %p193 = scmp.ne.s32.totalorder %s182, %s183
      %p194 = scmp.eq.s32.totalorder %s24, 0
      %p195 = por %p193, %p194
      %p196 = scmp.ne.s32.totalorder %s182, %s183
      %p197 = scmp.eq.s32.totalorder %s25, 5
      %p198 = por %p196, %p197
      %p200 = scmp.ne.s32.totalorder %s183, %s199
      %p201 = scmp.eq.s32.totalorder %s25, 0
      %p202 = por %p200, %p201
      %s203 = ssub.s32 %s26, %s38
      %p204 = scmp.eq.s32.totalorder %s203, 0
      %s206 = sadd.s32 %s205, 1
      %s207 = scalar_select %p204, %s205, %s206
      %p210 = pneg %p204
      %p211 = scmp.eq.s32.totalorder %s19, 5
      %p212 = por %p210, %p211
      %p213 = scmp.ne.s32.totalorder %s205, %s208
      %p214 = scmp.eq.s32.totalorder %s19, 0
      %p215 = por %p213, %p214
      %p216 = scmp.ne.s32.totalorder %s205, %s208
      %p217 = scmp.eq.s32.totalorder %s24, 5
      %p218 = por %p216, %p217
      %p219 = scmp.ne.s32.totalorder %s208, %s209
      %p220 = scmp.eq.s32.totalorder %s24, 0
      %p221 = por %p219, %p220
      %p222 = scmp.ne.s32.totalorder %s208, %s209
      %p223 = scmp.eq.s32.totalorder %s25, 5
      %p224 = por %p222, %p223
      %p226 = scmp.ne.s32.totalorder %s209, %s225
      %p227 = scmp.eq.s32.totalorder %s25, 0
      %p228 = por %p226, %p227
      %s229 = ssub.s32 %s26, %s38
      %p230 = scmp.eq.s32.totalorder %s229, 0
      %s232 = sadd.s32 %s231, 1
      %s233 = scalar_select %p230, %s231, %s232
      %p236 = pneg %p230
      %p237 = scmp.eq.s32.totalorder %s19, 5
      %p238 = por %p236, %p237
      %p239 = scmp.ne.s32.totalorder %s231, %s234
      %p240 = scmp.eq.s32.totalorder %s19, 0
      %p241 = por %p239, %p240
      %p242 = scmp.ne.s32.totalorder %s231, %s234
      %p243 = scmp.eq.s32.totalorder %s24, 5
      %p244 = por %p242, %p243
      %p245 = scmp.ne.s32.totalorder %s234, %s235
      %p246 = scmp.eq.s32.totalorder %s24, 0
      %p247 = por %p245, %p246
      %p248 = scmp.ne.s32.totalorder %s234, %s235
      %p249 = scmp.eq.s32.totalorder %s25, 5
      %p250 = por %p248, %p249
      %p252 = scmp.ne.s32.totalorder %s235, %s251
      %p253 = scmp.eq.s32.totalorder %s25, 0
      %p254 = por %p252, %p253
      %s255 = ssub.s32 %s26, %s38
      %p256 = scmp.eq.s32.totalorder %s255, 0
      %s258 = sadd.s32 %s257, 1
      %s259 = scalar_select %p256, %s257, %s258
      %p262 = pneg %p256
      %p263 = scmp.eq.s32.totalorder %s19, 5
      %p264 = por %p262, %p263
      %p265 = scmp.ne.s32.totalorder %s257, %s260
      %p266 = scmp.eq.s32.totalorder %s19, 0
      %p267 = por %p265, %p266
      %p268 = scmp.ne.s32.totalorder %s257, %s260
      %p269 = scmp.eq.s32.totalorder %s24, 5
      %p270 = por %p268, %p269
      %p271 = scmp.ne.s32.totalorder %s260, %s261
      %p272 = scmp.eq.s32.totalorder %s24, 0
      %p273 = por %p271, %p272
      %p274 = scmp.ne.s32.totalorder %s260, %s261
      %p275 = scmp.eq.s32.totalorder %s25, 5
      %p276 = por %p274, %p275
      %p278 = scmp.ne.s32.totalorder %s261, %s277
      %p279 = scmp.eq.s32.totalorder %s25, 0
      %p280 = por %p278, %p279
      %s281 = ssub.s32 %s26, %s38
      %p282 = scmp.eq.s32.totalorder %s281, 0
      %s284 = sadd.s32 %s283, 1
      %s285 = scalar_select %p282, %s283, %s284
      %p288 = pneg %p282
      %p289 = scmp.eq.s32.totalorder %s19, 5
      %p290 = por %p288, %p289
      %p291 = scmp.ne.s32.totalorder %s283, %s286
      %p292 = scmp.eq.s32.totalorder %s19, 0
      %p293 = por %p291, %p292
      %p294 = scmp.ne.s32.totalorder %s283, %s286
      %p295 = scmp.eq.s32.totalorder %s24, 5
      %p296 = por %p294, %p295
      %p297 = scmp.ne.s32.totalorder %s286, %s287
      %p298 = scmp.eq.s32.totalorder %s24, 0
      %p299 = por %p297, %p298
      %p300 = scmp.ne.s32.totalorder %s286, %s287
      %p301 = scmp.eq.s32.totalorder %s25, 5
      %p302 = por %p300, %p301
      %p304 = scmp.ne.s32.totalorder %s287, %s303
      %p305 = scmp.eq.s32.totalorder %s25, 0
      %p306 = por %p304, %p305
      %s307 = ssub.s32 %s26, %s38
      %p308 = scmp.eq.s32.totalorder %s307, 0
      %s310 = sadd.s32 %s309, 1
      %s311 = scalar_select %p308, %s309, %s310
      %p314 = pneg %p308
      %p315 = scmp.eq.s32.totalorder %s19, 5
      %p316 = por %p314, %p315
      %p317 = scmp.ne.s32.totalorder %s309, %s312
      %p318 = scmp.eq.s32.totalorder %s19, 0
      %p319 = por %p317, %p318
      %p320 = scmp.ne.s32.totalorder %s309, %s312
      %p321 = scmp.eq.s32.totalorder %s24, 5
      %p322 = por %p320, %p321
      %p323 = scmp.ne.s32.totalorder %s312, %s313
      %p324 = scmp.eq.s32.totalorder %s24, 0
      %p325 = por %p323, %p324
      %p326 = scmp.ne.s32.totalorder %s312, %s313
      %p327 = scmp.eq.s32.totalorder %s25, 5
      %p328 = por %p326, %p327
      %p330 = scmp.ne.s32.totalorder %s313, %s329
      %p331 = scmp.eq.s32.totalorder %s25, 0
      %p332 = por %p330, %p331
      %s333 = ssub.s32 %s26, %s38
      %p334 = scmp.eq.s32.totalorder %s333, 0
      %s336 = sadd.s32 %s335, 1
      %s337 = scalar_select %p334, %s335, %s336
      %p340 = pneg %p334
      %p341 = scmp.eq.s32.totalorder %s19, 5
      %p342 = por %p340, %p341
      %p343 = scmp.ne.s32.totalorder %s335, %s338
      %p344 = scmp.eq.s32.totalorder %s19, 0
      %p345 = por %p343, %p344
      %p346 = scmp.ne.s32.totalorder %s335, %s338
      %p347 = scmp.eq.s32.totalorder %s24, 5
      %p348 = por %p346, %p347
      %p349 = scmp.ne.s32.totalorder %s338, %s339
      %p350 = scmp.eq.s32.totalorder %s24, 0
      %p351 = por %p349, %p350
      %p352 = scmp.ne.s32.totalorder %s338, %s339
      %p353 = scmp.eq.s32.totalorder %s25, 5
      %p354 = por %p352, %p353
      %p356 = scmp.ne.s32.totalorder %s339, %s355
      %p357 = scmp.eq.s32.totalorder %s25, 0
      %p358 = por %p356, %p357
      %s359 = ssub.s32 %s26, %s38
      %p360 = scmp.eq.s32.totalorder %s359, 0
      %s362 = sadd.s32 %s361, 1
      %s363 = scalar_select %p360, %s361, %s362
      %p366 = pneg %p360
      %p367 = scmp.eq.s32.totalorder %s19, 5
      %p368 = por %p366, %p367
      %p369 = scmp.ne.s32.totalorder %s361, %s364
      %p370 = scmp.eq.s32.totalorder %s19, 0
      %p371 = por %p369, %p370
      %p372 = scmp.ne.s32.totalorder %s361, %s364
      %p373 = scmp.eq.s32.totalorder %s24, 5
      %p374 = por %p372, %p373
      %p375 = scmp.ne.s32.totalorder %s364, %s365
      %p376 = scmp.eq.s32.totalorder %s24, 0
      %p377 = por %p375, %p376
      %p378 = scmp.ne.s32.totalorder %s364, %s365
      %p379 = scmp.eq.s32.totalorder %s25, 5
      %p380 = por %p378, %p379
      %p382 = scmp.ne.s32.totalorder %s365, %s381
      %p383 = scmp.eq.s32.totalorder %s25, 0
      %p384 = por %p382, %p383
      %p385 = scmp.le.s32.totalorder 1, %s19
      %p386 = scmp.lt.s32.totalorder %s19, 7
      %p387 = pnand %p385, %p386
      %p388 = pneg %p387
      // Predicated region
      $region9: #{emoformer_forward.2} parent=5 // pred_check
        _
      $region10: #{emoformer_forward.2} parent=5 // pred_check_branch
        %390 = sbr.rel (%p387) target = $region12
      $region11: #{emoformer_forward.2} parent=5 // pred_region
        %s391 = ssub.s32 %s19, 1
        // Predicated region
        $region13: #{emoformer_forward.2} parent=11 // pred_check
          %p392 = pneg %p106
        $region14: #{emoformer_forward.2} parent=11 // pred_check_branch
          %394 = sbr.rel (%p392) target = $region16
        $region15: #{emoformer_forward.2} parent=11 // pred_region
          _
        $region16: #{emoformer_forward.2} parent=11 // pred_fallthru
          _
        // Predicated region
        $region17: #{emoformer_forward.2} parent=11 // pred_check
          %p395 = pneg %p127
        $region18: #{emoformer_forward.2} parent=11 // pred_check_branch
          %397 = sbr.rel (%p395) target = $region20
        $region19: #{emoformer_forward.2} parent=11 // pred_region
          _
        $region20: #{emoformer_forward.2} parent=11 // pred_fallthru
          _
        // Predicated region
        $region21: #{emoformer_forward.2} parent=11 // pred_check
          %p398 = pneg %p148
        $region22: #{emoformer_forward.2} parent=11 // pred_check_branch
          %400 = sbr.rel (%p398) target = $region24
        $region23: #{emoformer_forward.2} parent=11 // pred_region
          _
        $region24: #{emoformer_forward.2} parent=11 // pred_fallthru
          _
        // Predicated region
        $region25: #{emoformer_forward.2} parent=11 // pred_check
          %p401 = pneg %p169
        $region26: #{emoformer_forward.2} parent=11 // pred_check_branch
          %403 = sbr.rel (%p401) target = $region28
        $region27: #{emoformer_forward.2} parent=11 // pred_region
          _
        $region28: #{emoformer_forward.2} parent=11 // pred_fallthru
          _
      $region12: #{emoformer_forward.2} parent=5 // pred_fallthru
        _
      %p404 = scmp.lt.s32.totalorder %s19, 6
      // Predicated region
      $region29: #{emoformer_forward.2} parent=5 // pred_check
        %p405 = pneg %p404
      $region30: #{emoformer_forward.2} parent=5 // pred_check_branch
        %407 = sbr.rel (%p405) target = $region32
      $region31: #{emoformer_forward.2} parent=5 // pred_region
        // Predicated region
        $region33: #{emoformer_forward.2} parent=31 // pred_check
          %p408 = pneg %p53
        $region34: #{emoformer_forward.2} parent=31 // pred_check_branch
          %410 = sbr.rel (%p408) target = $region36
        $region35: #{emoformer_forward.2} parent=31 // pred_region
          %s411 = smul.u32 256, %s27
          %p412 = scmp.lt.s32.totalorder %s26, 1
          %s413 = scalar_select %p412, %s26, 1
          %p414 = scmp.lt.s32.totalorder %s411, 767
          %s415 = scalar_select %p414, %s411, 767
          %s416 = smul.addr %s413, 768
          %s417 = sadd.s32 %s415, %s416
          %s418 = smul.addr %s417, 8
          %s419 = scalar_lea.vmem %s0, %s418
          %s420 = smul.u32 256, %s27
        $region36: #{emoformer_forward.2} parent=31 // pred_fallthru
          _
        // Predicated region
        $region37: #{emoformer_forward.2} parent=31 // pred_check
          %p421 = pneg %p79
        $region38: #{emoformer_forward.2} parent=31 // pred_check_branch
          %423 = sbr.rel (%p421) target = $region40
        $region39: #{emoformer_forward.2} parent=31 // pred_region
          %s424 = sand.u32 %s69, 1
          %s425 = sand.u32 %s69, 1
          %s426 = smul.addr %s425, 512
          %s427 = scalar_lea.vmem [#allocation4], %s426
          %s428 = smul.u32 16, %s27
          %s429 = smul.addr %s428, 8
          %s430 = scalar_lea.vmem %s1, %s429
          // Predicated region
          $region41: #{emoformer_forward.2} parent=39 // pred_check
            _
          $region42: #{emoformer_forward.2} parent=39 // pred_check_branch
            %432 = sbr.rel (0) target = $region44
          $region43: #{emoformer_forward.2} parent=39 // pred_region
            // Predicated region
            $region45: #{emoformer_forward.2} parent=43 // pred_check
              _
            $region46: #{emoformer_forward.2} parent=43 // pred_check_branch
              %434 = sbr.rel (0) target = $region48
            $region47: #{emoformer_forward.2} parent=43 // pred_region
              loop: start=0, step=1, limit=1
              $region49: #{emoformer_forward.2} parent=47 // loop_pre_header
                _
              $region50: #{emoformer_forward.2} parent=47 // loop_header
                %s436 = sphi 0, %s440
                %p437 = scmp.ge.s32.totalorder %s436, 1
                %s441 = sphi %s430, %s430
                %s442 = sphi %s427, %s427
              $region51: #{emoformer_forward.2} parent=47 // loop_header_branch
                %439 = sbr.rel (%p437) target = $region55
              $region52: #{emoformer_forward.2} parent=47 // loop_body
                %v443 = vld [vmem:[%s441] sm:$0xff]
                %444 = vst [vmem:[%s442] sm:$0xff] %v443
                %v445 = vld [vmem:[%s441 + $0x8] sm:$0xff]
                %446 = vst [vmem:[%s442 + $0x8] sm:$0xff] %v445
                %v447 = vld [vmem:[%s441 + $0x10] sm:$0xff]
                %448 = vst [vmem:[%s442 + $0x10] sm:$0xff] %v447
                %v449 = vld [vmem:[%s441 + $0x18] sm:$0xff]
                %450 = vst [vmem:[%s442 + $0x18] sm:$0xff] %v449
                %v451 = vld [vmem:[%s441 + $0x20] sm:$0xff]
                %452 = vst [vmem:[%s442 + $0x20] sm:$0xff] %v451
                %v453 = vld [vmem:[%s441 + $0x28] sm:$0xff]
                %454 = vst [vmem:[%s442 + $0x28] sm:$0xff] %v453
                %v455 = vld [vmem:[%s441 + $0x30] sm:$0xff]
                %456 = vst [vmem:[%s442 + $0x30] sm:$0xff] %v455
                %v457 = vld [vmem:[%s441 + $0x38] sm:$0xff]
                %458 = vst [vmem:[%s442 + $0x38] sm:$0xff] %v457
                %v459 = vld [vmem:[%s441 + $0x40] sm:$0xff]
                %460 = vst [vmem:[%s442 + $0x40] sm:$0xff] %v459
                %v461 = vld [vmem:[%s441 + $0x48] sm:$0xff]
                %462 = vst [vmem:[%s442 + $0x48] sm:$0xff] %v461
                %v463 = vld [vmem:[%s441 + $0x50] sm:$0xff]
                %464 = vst [vmem:[%s442 + $0x50] sm:$0xff] %v463
                %v465 = vld [vmem:[%s441 + $0x58] sm:$0xff]
                %466 = vst [vmem:[%s442 + $0x58] sm:$0xff] %v465
                %v467 = vld [vmem:[%s441 + $0x60] sm:$0xff]
                %468 = vst [vmem:[%s442 + $0x60] sm:$0xff] %v467
                %v469 = vld [vmem:[%s441 + $0x68] sm:$0xff]
                %470 = vst [vmem:[%s442 + $0x68] sm:$0xff] %v469
                %v471 = vld [vmem:[%s441 + $0x70] sm:$0xff]
                %472 = vst [vmem:[%s442 + $0x70] sm:$0xff] %v471
                %v473 = vld [vmem:[%s441 + $0x78] sm:$0xff]
                %474 = vst [vmem:[%s442 + $0x78] sm:$0xff] %v473
                %v475 = vld [vmem:[%s441 + $0x180] sm:$0xff]
                %476 = vst [vmem:[%s442 + $0x80] sm:$0xff] %v475
                %v477 = vld [vmem:[%s441 + $0x188] sm:$0xff]
                %478 = vst [vmem:[%s442 + $0x88] sm:$0xff] %v477
                %v479 = vld [vmem:[%s441 + $0x190] sm:$0xff]
                %480 = vst [vmem:[%s442 + $0x90] sm:$0xff] %v479
                %v481 = vld [vmem:[%s441 + $0x198] sm:$0xff]
                %482 = vst [vmem:[%s442 + $0x98] sm:$0xff] %v481
                %v483 = vld [vmem:[%s441 + $0x1a0] sm:$0xff]
                %484 = vst [vmem:[%s442 + $0xa0] sm:$0xff] %v483
                %v485 = vld [vmem:[%s441 + $0x1a8] sm:$0xff]
                %486 = vst [vmem:[%s442 + $0xa8] sm:$0xff] %v485
                %v487 = vld [vmem:[%s441 + $0x1b0] sm:$0xff]
                %488 = vst [vmem:[%s442 + $0xb0] sm:$0xff] %v487
                %v489 = vld [vmem:[%s441 + $0x1b8] sm:$0xff]
                %490 = vst [vmem:[%s442 + $0xb8] sm:$0xff] %v489
                %v491 = vld [vmem:[%s441 + $0x1c0] sm:$0xff]
                %492 = vst [vmem:[%s442 + $0xc0] sm:$0xff] %v491
                %v493 = vld [vmem:[%s441 + $0x1c8] sm:$0xff]
                %494 = vst [vmem:[%s442 + $0xc8] sm:$0xff] %v493
                %v495 = vld [vmem:[%s441 + $0x1d0] sm:$0xff]
                %496 = vst [vmem:[%s442 + $0xd0] sm:$0xff] %v495
                %v497 = vld [vmem:[%s441 + $0x1d8] sm:$0xff]
                %498 = vst [vmem:[%s442 + $0xd8] sm:$0xff] %v497
                %v499 = vld [vmem:[%s441 + $0x1e0] sm:$0xff]
                %500 = vst [vmem:[%s442 + $0xe0] sm:$0xff] %v499
                %v501 = vld [vmem:[%s441 + $0x1e8] sm:$0xff]
                %502 = vst [vmem:[%s442 + $0xe8] sm:$0xff] %v501
                %v503 = vld [vmem:[%s441 + $0x1f0] sm:$0xff]
                %504 = vst [vmem:[%s442 + $0xf0] sm:$0xff] %v503
                %v505 = vld [vmem:[%s441 + $0x1f8] sm:$0xff]
                %506 = vst [vmem:[%s442 + $0xf8] sm:$0xff] %v505
                %v507 = vld [vmem:[%s441 + $0x300] sm:$0xff]
                %508 = vst [vmem:[%s442 + $0x100] sm:$0xff] %v507
                %v509 = vld [vmem:[%s441 + $0x308] sm:$0xff]
                %510 = vst [vmem:[%s442 + $0x108] sm:$0xff] %v509
                %v511 = vld [vmem:[%s441 + $0x310] sm:$0xff]
                %512 = vst [vmem:[%s442 + $0x110] sm:$0xff] %v511
                %v513 = vld [vmem:[%s441 + $0x318] sm:$0xff]
                %514 = vst [vmem:[%s442 + $0x118] sm:$0xff] %v513
                %v515 = vld [vmem:[%s441 + $0x320] sm:$0xff]
                %516 = vst [vmem:[%s442 + $0x120] sm:$0xff] %v515
                %v517 = vld [vmem:[%s441 + $0x328] sm:$0xff]
                %518 = vst [vmem:[%s442 + $0x128] sm:$0xff] %v517
                %v519 = vld [vmem:[%s441 + $0x330] sm:$0xff]
                %520 = vst [vmem:[%s442 + $0x130] sm:$0xff] %v519
                %v521 = vld [vmem:[%s441 + $0x338] sm:$0xff]
                %522 = vst [vmem:[%s442 + $0x138] sm:$0xff] %v521
                %v523 = vld [vmem:[%s441 + $0x340] sm:$0xff]
                %524 = vst [vmem:[%s442 + $0x140] sm:$0xff] %v523
                %v525 = vld [vmem:[%s441 + $0x348] sm:$0xff]
                %526 = vst [vmem:[%s442 + $0x148] sm:$0xff] %v525
                %v527 = vld [vmem:[%s441 + $0x350] sm:$0xff]
                %528 = vst [vmem:[%s442 + $0x150] sm:$0xff] %v527
                %v529 = vld [vmem:[%s441 + $0x358] sm:$0xff]
                %530 = vst [vmem:[%s442 + $0x158] sm:$0xff] %v529
                %v531 = vld [vmem:[%s441 + $0x360] sm:$0xff]
                %532 = vst [vmem:[%s442 + $0x160] sm:$0xff] %v531
                %v533 = vld [vmem:[%s441 + $0x368] sm:$0xff]
                %534 = vst [vmem:[%s442 + $0x168] sm:$0xff] %v533
                %v535 = vld [vmem:[%s441 + $0x370] sm:$0xff]
                %536 = vst [vmem:[%s442 + $0x170] sm:$0xff] %v535
                %v537 = vld [vmem:[%s441 + $0x378] sm:$0xff]
                %538 = vst [vmem:[%s442 + $0x178] sm:$0xff] %v537
                %v539 = vld [vmem:[%s441 + $0x480] sm:$0xff]
                %540 = vst [vmem:[%s442 + $0x180] sm:$0xff] %v539
                %v541 = vld [vmem:[%s441 + $0x488] sm:$0xff]
                %542 = vst [vmem:[%s442 + $0x188] sm:$0xff] %v541
                %v543 = vld [vmem:[%s441 + $0x490] sm:$0xff]
                %544 = vst [vmem:[%s442 + $0x190] sm:$0xff] %v543
                %v545 = vld [vmem:[%s441 + $0x498] sm:$0xff]
                %546 = vst [vmem:[%s442 + $0x198] sm:$0xff] %v545
                %v547 = vld [vmem:[%s441 + $0x4a0] sm:$0xff]
                %548 = vst [vmem:[%s442 + $0x1a0] sm:$0xff] %v547
                %v549 = vld [vmem:[%s441 + $0x4a8] sm:$0xff]
                %550 = vst [vmem:[%s442 + $0x1a8] sm:$0xff] %v549
                %v551 = vld [vmem:[%s441 + $0x4b0] sm:$0xff]
                %552 = vst [vmem:[%s442 + $0x1b0] sm:$0xff] %v551
                %v553 = vld [vmem:[%s441 + $0x4b8] sm:$0xff]
                %554 = vst [vmem:[%s442 + $0x1b8] sm:$0xff] %v553
                %v555 = vld [vmem:[%s441 + $0x4c0] sm:$0xff]
                %556 = vst [vmem:[%s442 + $0x1c0] sm:$0xff] %v555
                %v557 = vld [vmem:[%s441 + $0x4c8] sm:$0xff]
                %558 = vst [vmem:[%s442 + $0x1c8] sm:$0xff] %v557
                %v559 = vld [vmem:[%s441 + $0x4d0] sm:$0xff]
                %560 = vst [vmem:[%s442 + $0x1d0] sm:$0xff] %v559
                %v561 = vld [vmem:[%s441 + $0x4d8] sm:$0xff]
                %562 = vst [vmem:[%s442 + $0x1d8] sm:$0xff] %v561
                %v563 = vld [vmem:[%s441 + $0x4e0] sm:$0xff]
                %564 = vst [vmem:[%s442 + $0x1e0] sm:$0xff] %v563
                %v565 = vld [vmem:[%s441 + $0x4e8] sm:$0xff]
                %566 = vst [vmem:[%s442 + $0x1e8] sm:$0xff] %v565
                %v567 = vld [vmem:[%s441 + $0x4f0] sm:$0xff]
                %568 = vst [vmem:[%s442 + $0x1f0] sm:$0xff] %v567
                %v569 = vld [vmem:[%s441 + $0x4f8] sm:$0xff]
                %570 = vst [vmem:[%s442 + $0x1f8] sm:$0xff] %v569
              $region53: #{emoformer_forward.2} parent=47 // loop_footer
                %s440 = sadd.s32 1, %s436
              $region54: #{emoformer_forward.2} parent=47 // loop_footer_branch
                %435 = sbr.rel target = $region50
              $region55: #{emoformer_forward.2} parent=47 // loop_exit
                _
            $region48: #{emoformer_forward.2} parent=43 // pred_fallthru
              _
            // Predicated region
            $region56: #{emoformer_forward.2} parent=43 // pred_check
              _
            $region57: #{emoformer_forward.2} parent=43 // pred_check_branch
              %572 = sbr.rel target = $region59
            $region58: #{emoformer_forward.2} parent=43 // pred_region
              _
            $region59: #{emoformer_forward.2} parent=43 // pred_fallthru
              _
          $region44: #{emoformer_forward.2} parent=39 // pred_fallthru
            _
          %573 = vnop
        $region40: #{emoformer_forward.2} parent=31 // pred_fallthru
          _
        // Predicated region
        $region60: #{emoformer_forward.2} parent=31 // pred_check
          %p574 = pneg %p189
        $region61: #{emoformer_forward.2} parent=31 // pred_check_branch
          %576 = sbr.rel (%p574) target = $region63
        $region62: #{emoformer_forward.2} parent=31 // pred_region
          %p577 = scmp.lt.s32.totalorder %s26, 1
          %s578 = scalar_select %p577, %s26, 1
          %s579 = smul.addr %s578, 8
          %s580 = smul.addr %s579, 8
          %s581 = scalar_lea.vmem %s6, %s580
        $region63: #{emoformer_forward.2} parent=31 // pred_fallthru
          _
        // Predicated region
        $region64: #{emoformer_forward.2} parent=31 // pred_check
          %p582 = pneg %p215
        $region65: #{emoformer_forward.2} parent=31 // pred_check_branch
          %584 = sbr.rel (%p582) target = $region67
        $region66: #{emoformer_forward.2} parent=31 // pred_region
          %p585 = scmp.lt.s32.totalorder %s26, 1
          %s586 = scalar_select %p585, %s26, 1
          %s587 = scalar_lea.vmem %s7, %s586
        $region67: #{emoformer_forward.2} parent=31 // pred_fallthru
          _
        // Predicated region
        $region68: #{emoformer_forward.2} parent=31 // pred_check
          %p588 = pneg %p241
        $region69: #{emoformer_forward.2} parent=31 // pred_check_branch
          %590 = sbr.rel (%p588) target = $region71
        $region70: #{emoformer_forward.2} parent=31 // pred_region
          %p591 = scmp.lt.s32.totalorder %s26, 1
          %s592 = scalar_select %p591, %s26, 1
          %s593 = smul.addr %s592, 8
          %s594 = smul.addr %s593, 8
          %s595 = scalar_lea.vmem %s8, %s594
        $region71: #{emoformer_forward.2} parent=31 // pred_fallthru
          _
        // Predicated region
        $region72: #{emoformer_forward.2} parent=31 // pred_check
          %p596 = pneg %p267
        $region73: #{emoformer_forward.2} parent=31 // pred_check_branch
          %598 = sbr.rel (%p596) target = $region75
        $region74: #{emoformer_forward.2} parent=31 // pred_region
          %p599 = scmp.lt.s32.totalorder %s26, 1
          %s600 = scalar_select %p599, %s26, 1
          %s601 = smul.addr %s600, 2
          %s602 = scalar_lea.vmem %s9, %s601
        $region75: #{emoformer_forward.2} parent=31 // pred_fallthru
          _
        // Predicated region
        $region76: #{emoformer_forward.2} parent=31 // pred_check
          %p603 = pneg %p293
        $region77: #{emoformer_forward.2} parent=31 // pred_check_branch
          %605 = sbr.rel (%p603) target = $region79
        $region78: #{emoformer_forward.2} parent=31 // pred_region
          %p606 = scmp.lt.s32.totalorder %s26, 1
          %s607 = scalar_select %p606, %s26, 1
          %s608 = smul.addr %s607, 2
          %s609 = scalar_lea.vmem %s10, %s608
        $region79: #{emoformer_forward.2} parent=31 // pred_fallthru
          _
        // Predicated region
        $region80: #{emoformer_forward.2} parent=31 // pred_check
          %p610 = pneg %p319
        $region81: #{emoformer_forward.2} parent=31 // pred_check_branch
          %612 = sbr.rel (%p610) target = $region83
        $region82: #{emoformer_forward.2} parent=31 // pred_region
          %p613 = scmp.lt.s32.totalorder %s26, 1
          %s614 = scalar_select %p613, %s26, 1
          %s615 = smul.addr %s614, 4
          %s616 = smul.addr %s615, 8
          %s617 = scalar_lea.vmem %s11, %s616
        $region83: #{emoformer_forward.2} parent=31 // pred_fallthru
          _
        // Predicated region
        $region84: #{emoformer_forward.2} parent=31 // pred_check
          %p618 = pneg %p345
        $region85: #{emoformer_forward.2} parent=31 // pred_check_branch
          %620 = sbr.rel (%p618) target = $region87
        $region86: #{emoformer_forward.2} parent=31 // pred_region
          %p621 = scmp.lt.s32.totalorder %s26, 1
          %s622 = scalar_select %p621, %s26, 1
          %s623 = scalar_lea.vmem %s12, %s622
        $region87: #{emoformer_forward.2} parent=31 // pred_fallthru
          _
      $region32: #{emoformer_forward.2} parent=5 // pred_fallthru
        _
      %p624 = scmp.le.s32.totalorder 1, %s19
      %p625 = scmp.lt.s32.totalorder %s19, 7
      %p626 = pnand %p624, %p625
      %p627 = pneg %p626
      // Predicated region
      $region88: #{emoformer_forward.2} parent=5 // pred_check
        _
      $region89: #{emoformer_forward.2} parent=5 // pred_check_branch
        %629 = sbr.rel (%p626) target = $region91
      $region90: #{emoformer_forward.2} parent=5 // pred_region
        %s630 = ssub.s32 %s19, 1
        %s631 = sand.u32 %s72, 1
        %s632 = sand.u32 %s72, 1
        %s633 = smul.addr %s632, 512
        %s634 = scalar_lea.vmem [#allocation4], %s633
        // Predicated region
        $region92: #{emoformer_forward.2} parent=90 // pred_check
          %p635 = pneg %p85
        $region93: #{emoformer_forward.2} parent=90 // pred_check_branch
          %637 = sbr.rel (%p635) target = $region95
        $region94: #{emoformer_forward.2} parent=90 // pred_region
          _
        $region95: #{emoformer_forward.2} parent=90 // pred_fallthru
          _
        %s638 = smul.u32 256, %s29
        %p639 = scmp.lt.s32.totalorder %s28, 1
        %s640 = scalar_select %p639, %s28, 1
        %p641 = scmp.lt.s32.totalorder %s638, 767
        %s642 = scalar_select %p641, %s638, 767
        %s643 = smul.addr %s640, 768
        %s644 = sadd.s32 %s642, %s643
        %s645 = smul.addr %s644, 8
        %s646 = scalar_lea.vmem %s0, %s645
        %p647 = pneg %p59
        %p648 = pneg %p56
        %s649 = sand.u32 %s72, 1
        %s650 = sand.u32 %s72, 1
        %s651 = smul.addr %s650, 512
        %s652 = scalar_lea.vmem [#allocation4], %s651
        %p653 = pneg %p85
        %p654 = pneg %p82
        %p655 = pneg %p106
        %p656 = pneg %p103
        %p657 = pneg %p127
        %p658 = pneg %p124
        %p659 = pneg %p148
        %p660 = pneg %p145
        %p661 = pneg %p169
        %p662 = pneg %p166
        %p663 = scmp.lt.s32.totalorder %s28, 1
        %s664 = scalar_select %p663, %s28, 1
        %s665 = smul.addr %s664, 8
        %s666 = smul.addr %s665, 8
        %s667 = scalar_lea.vmem %s6, %s666
        %p668 = pneg %p195
        %p669 = pneg %p192
        %p670 = scmp.lt.s32.totalorder %s28, 1
        %s671 = scalar_select %p670, %s28, 1
        %s672 = scalar_lea.vmem %s7, %s671
        %p673 = pneg %p221
        %p674 = pneg %p218
        %p675 = scmp.lt.s32.totalorder %s28, 1
        %s676 = scalar_select %p675, %s28, 1
        %s677 = smul.addr %s676, 8
        %s678 = smul.addr %s677, 8
        %s679 = scalar_lea.vmem %s8, %s678
        %p680 = pneg %p247
        %p681 = pneg %p244
        %p682 = scmp.lt.s32.totalorder %s28, 1
        %s683 = scalar_select %p682, %s28, 1
        %s684 = smul.addr %s683, 2
        %s685 = scalar_lea.vmem %s9, %s684
        %p686 = pneg %p273
        %p687 = pneg %p270
        %p688 = scmp.lt.s32.totalorder %s28, 1
        %s689 = scalar_select %p688, %s28, 1
        %s690 = smul.addr %s689, 2
        %s691 = scalar_lea.vmem %s10, %s690
        %p692 = pneg %p299
        %p693 = pneg %p296
        %p694 = scmp.lt.s32.totalorder %s28, 1
        %s695 = scalar_select %p694, %s28, 1
        %s696 = smul.addr %s695, 4
        %s697 = smul.addr %s696, 8
        %s698 = scalar_lea.vmem %s11, %s697
        %p699 = pneg %p325
        %p700 = pneg %p322
        %p701 = scmp.lt.s32.totalorder %s28, 1
        %s702 = scalar_select %p701, %s28, 1
        %s703 = scalar_lea.vmem %s12, %s702
        %p704 = pneg %p351
        %p705 = pneg %p348
        %p706 = pneg %p377
        %p707 = pneg %p374
        %p708 = scmp.lt.s32.totalorder %s28, 1
        %s709 = scalar_select %p708, %s28, 1
        %s710 = smul.addr %s709, 8
        %s711 = scalar_lea.vmem %s13, %s710
        %s712 = smul.u32 256, %s29
        %p713 = scmp.lt.s32.totalorder %s28, 1
        %s714 = scalar_select %p713, %s28, 1
        %p715 = scmp.lt.s32.totalorder %s712, 767
        %s716 = scalar_select %p715, %s712, 767
        %s717 = smul.addr %s714, 768
        %s718 = sadd.s32 %s716, %s717
        %s719 = smul.addr %s718, 8
        %s720 = scalar_lea.vmem %s0, %s719
        %s721 = smul.u32 256, %s29
        %s722 = smul.u32 16, %s29
        %p723 = scmp.lt.s32.totalorder %s28, 1
        %s724 = scalar_select %p723, %s28, 1
        %s725 = smul.addr %s724, 8
        %s726 = smul.addr %s725, 8
        %s727 = scalar_lea.vmem %s6, %s726
        %p728 = scmp.lt.s32.totalorder %s28, 1
        %s729 = scalar_select %p728, %s28, 1
        %s730 = scalar_lea.vmem %s7, %s729
        %p731 = scmp.lt.s32.totalorder %s28, 1
        %s732 = scalar_select %p731, %s28, 1
        %s733 = smul.addr %s732, 8
        %s734 = smul.addr %s733, 8
        %s735 = scalar_lea.vmem %s8, %s734
        %p736 = scmp.lt.s32.totalorder %s28, 1
        %s737 = scalar_select %p736, %s28, 1
        %s738 = smul.addr %s737, 2
        %s739 = scalar_lea.vmem %s9, %s738
        %p740 = scmp.lt.s32.totalorder %s28, 1
        %s741 = scalar_select %p740, %s28, 1
        %s742 = smul.addr %s741, 2
        %s743 = scalar_lea.vmem %s10, %s742
        %p744 = scmp.lt.s32.totalorder %s28, 1
        %s745 = scalar_select %p744, %s28, 1
        %s746 = smul.addr %s745, 4
        %s747 = smul.addr %s746, 8
        %s748 = scalar_lea.vmem %s11, %s747
        %p749 = scmp.lt.s32.totalorder %s28, 1
        %s750 = scalar_select %p749, %s28, 1
        %s751 = scalar_lea.vmem %s12, %s750
        %p752 = scmp.lt.s32.totalorder %s28, 1
        %s753 = scalar_select %p752, %s28, 1
        %s754 = smul.addr %s753, 8
        %s755 = scalar_lea.vmem %s13, %s754
        %p756 = scmp.eq.s32.totalorder %s29, 0
        // Predicated region
        $region96: #{emoformer_forward.2} parent=90 // pred_check
          %p757 = pneg %p756
        $region97: #{emoformer_forward.2} parent=90 // pred_check_branch
          %759 = sbr.rel (%p757) target = $region99
        $region98: #{emoformer_forward.2} parent=90 // pred_region
          %vm760 = vcmask 64512
          %761 = vst.msk [vmem:[#allocation2] sm:$0xff] %vm760, 0.0
          %762 = vst.msk [vmem:[#allocation2 + $0x8] sm:$0xff] %vm760, 0.0
          %763 = vst.msk [vmem:[#allocation2 + $0x10] sm:$0xff] %vm760, 0.0
          %764 = vst.msk [vmem:[#allocation2 + $0x18] sm:$0xff] %vm760, 0.0
        $region99: #{emoformer_forward.2} parent=90 // pred_fallthru
          _
        %v765 = vld [vmem:[%s720] sm:$0xff]
        %v766 = vld [vmem:[%s720 + $0x8] sm:$0xff]
        %v767 = vld [vmem:[%s720 + $0x10] sm:$0xff]
        %v768 = vld [vmem:[%s720 + $0x18] sm:$0xff]
        %v769 = vld [vmem:[%s720 + $0x20] sm:$0xff]
        %v770 = vld [vmem:[%s720 + $0x28] sm:$0xff]
        %v771 = vld [vmem:[%s720 + $0x30] sm:$0xff]
        %v772 = vld [vmem:[%s720 + $0x38] sm:$0xff]
        %v773 = vld [vmem:[%s720 + $0x40] sm:$0xff]
        %v774 = vld [vmem:[%s720 + $0x48] sm:$0xff]
        %v775 = vld [vmem:[%s720 + $0x50] sm:$0xff]
        %v776 = vld [vmem:[%s720 + $0x58] sm:$0xff]
        %v777 = vld [vmem:[%s720 + $0x60] sm:$0xff]
        %v778 = vld [vmem:[%s720 + $0x68] sm:$0xff]
        %v779 = vld [vmem:[%s720 + $0x70] sm:$0xff]
        %v780 = vld [vmem:[%s720 + $0x78] sm:$0xff]
        %v781 = vld [vmem:[%s720 + $0x80] sm:$0xff]
        %v782 = vld [vmem:[%s720 + $0x88] sm:$0xff]
        %v783 = vld [vmem:[%s720 + $0x90] sm:$0xff]
        %v784 = vld [vmem:[%s720 + $0x98] sm:$0xff]
        %v785 = vld [vmem:[%s720 + $0xa0] sm:$0xff]
        %v786 = vld [vmem:[%s720 + $0xa8] sm:$0xff]
        %v787 = vld [vmem:[%s720 + $0xb0] sm:$0xff]
        %v788 = vld [vmem:[%s720 + $0xb8] sm:$0xff]
        %v789 = vld [vmem:[%s720 + $0xc0] sm:$0xff]
        %v790 = vld [vmem:[%s720 + $0xc8] sm:$0xff]
        %v791 = vld [vmem:[%s720 + $0xd0] sm:$0xff]
        %v792 = vld [vmem:[%s720 + $0xd8] sm:$0xff]
        %v793 = vld [vmem:[%s720 + $0xe0] sm:$0xff]
        %v794 = vld [vmem:[%s720 + $0xe8] sm:$0xff]
        %v795 = vld [vmem:[%s720 + $0xf0] sm:$0xff]
        %v796 = vld [vmem:[%s720 + $0xf8] sm:$0xff]
        %v797 = vld [vmem:[%s720 + $0x100] sm:$0xff]
        %v798 = vld [vmem:[%s720 + $0x108] sm:$0xff]
        %v799 = vld [vmem:[%s720 + $0x110] sm:$0xff]
        %v800 = vld [vmem:[%s720 + $0x118] sm:$0xff]
        %v801 = vld [vmem:[%s720 + $0x120] sm:$0xff]
        %v802 = vld [vmem:[%s720 + $0x128] sm:$0xff]
        %v803 = vld [vmem:[%s720 + $0x130] sm:$0xff]
        %v804 = vld [vmem:[%s720 + $0x138] sm:$0xff]
        %v805 = vld [vmem:[%s720 + $0x140] sm:$0xff]
        %v806 = vld [vmem:[%s720 + $0x148] sm:$0xff]
        %v807 = vld [vmem:[%s720 + $0x150] sm:$0xff]
        %v808 = vld [vmem:[%s720 + $0x158] sm:$0xff]
        %v809 = vld [vmem:[%s720 + $0x160] sm:$0xff]
        %v810 = vld [vmem:[%s720 + $0x168] sm:$0xff]
        %v811 = vld [vmem:[%s720 + $0x170] sm:$0xff]
        %v812 = vld [vmem:[%s720 + $0x178] sm:$0xff]
        %v813 = vld [vmem:[%s720 + $0x180] sm:$0xff]
        %v814 = vld [vmem:[%s720 + $0x188] sm:$0xff]
        %v815 = vld [vmem:[%s720 + $0x190] sm:$0xff]
        %v816 = vld [vmem:[%s720 + $0x198] sm:$0xff]
        %v817 = vld [vmem:[%s720 + $0x1a0] sm:$0xff]
        %v818 = vld [vmem:[%s720 + $0x1a8] sm:$0xff]
        %v819 = vld [vmem:[%s720 + $0x1b0] sm:$0xff]
        %v820 = vld [vmem:[%s720 + $0x1b8] sm:$0xff]
        %v821 = vld [vmem:[%s720 + $0x1c0] sm:$0xff]
        %v822 = vld [vmem:[%s720 + $0x1c8] sm:$0xff]
        %v823 = vld [vmem:[%s720 + $0x1d0] sm:$0xff]
        %v824 = vld [vmem:[%s720 + $0x1d8] sm:$0xff]
        %v825 = vld [vmem:[%s720 + $0x1e0] sm:$0xff]
        %v826 = vld [vmem:[%s720 + $0x1e8] sm:$0xff]
        %v827 = vld [vmem:[%s720 + $0x1f0] sm:$0xff]
        %v828 = vld [vmem:[%s720 + $0x1f8] sm:$0xff]
        %v829 = vld [vmem:[%s720 + $0x200] sm:$0xff]
        %v830 = vld [vmem:[%s720 + $0x208] sm:$0xff]
        %v831 = vld [vmem:[%s720 + $0x210] sm:$0xff]
        %v832 = vld [vmem:[%s720 + $0x218] sm:$0xff]
        %v833 = vld [vmem:[%s720 + $0x220] sm:$0xff]
        %v834 = vld [vmem:[%s720 + $0x228] sm:$0xff]
        %v835 = vld [vmem:[%s720 + $0x230] sm:$0xff]
        %v836 = vld [vmem:[%s720 + $0x238] sm:$0xff]
        %v837 = vld [vmem:[%s720 + $0x240] sm:$0xff]
        %v838 = vld [vmem:[%s720 + $0x248] sm:$0xff]
        %v839 = vld [vmem:[%s720 + $0x250] sm:$0xff]
        %v840 = vld [vmem:[%s720 + $0x258] sm:$0xff]
        %v841 = vld [vmem:[%s720 + $0x260] sm:$0xff]
        %v842 = vld [vmem:[%s720 + $0x268] sm:$0xff]
        %v843 = vld [vmem:[%s720 + $0x270] sm:$0xff]
        %v844 = vld [vmem:[%s720 + $0x278] sm:$0xff]
        %v845 = vld [vmem:[%s720 + $0x280] sm:$0xff]
        %v846 = vld [vmem:[%s720 + $0x288] sm:$0xff]
        %v847 = vld [vmem:[%s720 + $0x290] sm:$0xff]
        %v848 = vld [vmem:[%s720 + $0x298] sm:$0xff]
        %v849 = vld [vmem:[%s720 + $0x2a0] sm:$0xff]
        %v850 = vld [vmem:[%s720 + $0x2a8] sm:$0xff]
        %v851 = vld [vmem:[%s720 + $0x2b0] sm:$0xff]
        %v852 = vld [vmem:[%s720 + $0x2b8] sm:$0xff]
        %v853 = vld [vmem:[%s720 + $0x2c0] sm:$0xff]
        %v854 = vld [vmem:[%s720 + $0x2c8] sm:$0xff]
        %v855 = vld [vmem:[%s720 + $0x2d0] sm:$0xff]
        %v856 = vld [vmem:[%s720 + $0x2d8] sm:$0xff]
        %v857 = vld [vmem:[%s720 + $0x2e0] sm:$0xff]
        %v858 = vld [vmem:[%s720 + $0x2e8] sm:$0xff]
        %v859 = vld [vmem:[%s720 + $0x2f0] sm:$0xff]
        %v860 = vld [vmem:[%s720 + $0x2f8] sm:$0xff]
        %v861 = vld [vmem:[%s720 + $0x300] sm:$0xff]
        %v862 = vld [vmem:[%s720 + $0x308] sm:$0xff]
        %v863 = vld [vmem:[%s720 + $0x310] sm:$0xff]
        %v864 = vld [vmem:[%s720 + $0x318] sm:$0xff]
        %v865 = vld [vmem:[%s720 + $0x320] sm:$0xff]
        %v866 = vld [vmem:[%s720 + $0x328] sm:$0xff]
        %v867 = vld [vmem:[%s720 + $0x330] sm:$0xff]
        %v868 = vld [vmem:[%s720 + $0x338] sm:$0xff]
        %v869 = vld [vmem:[%s720 + $0x340] sm:$0xff]
        %v870 = vld [vmem:[%s720 + $0x348] sm:$0xff]
        %v871 = vld [vmem:[%s720 + $0x350] sm:$0xff]
        %v872 = vld [vmem:[%s720 + $0x358] sm:$0xff]
        %v873 = vld [vmem:[%s720 + $0x360] sm:$0xff]
        %v874 = vld [vmem:[%s720 + $0x368] sm:$0xff]
        %v875 = vld [vmem:[%s720 + $0x370] sm:$0xff]
        %v876 = vld [vmem:[%s720 + $0x378] sm:$0xff]
        %v877 = vld [vmem:[%s720 + $0x380] sm:$0xff]
        %v878 = vld [vmem:[%s720 + $0x388] sm:$0xff]
        %v879 = vld [vmem:[%s720 + $0x390] sm:$0xff]
        %v880 = vld [vmem:[%s720 + $0x398] sm:$0xff]
        %v881 = vld [vmem:[%s720 + $0x3a0] sm:$0xff]
        %v882 = vld [vmem:[%s720 + $0x3a8] sm:$0xff]
        %v883 = vld [vmem:[%s720 + $0x3b0] sm:$0xff]
        %v884 = vld [vmem:[%s720 + $0x3b8] sm:$0xff]
        %v885 = vld [vmem:[%s720 + $0x3c0] sm:$0xff]
        %v886 = vld [vmem:[%s720 + $0x3c8] sm:$0xff]
        %v887 = vld [vmem:[%s720 + $0x3d0] sm:$0xff]
        %v888 = vld [vmem:[%s720 + $0x3d8] sm:$0xff]
        %v889 = vld [vmem:[%s720 + $0x3e0] sm:$0xff]
        %v890 = vld [vmem:[%s720 + $0x3e8] sm:$0xff]
        %v891 = vld [vmem:[%s720 + $0x3f0] sm:$0xff]
        %v892 = vld [vmem:[%s720 + $0x3f8] sm:$0xff]
        %v893 = vld [vmem:[%s720 + $0x400] sm:$0xff]
        %v894 = vld [vmem:[%s720 + $0x408] sm:$0xff]
        %v895 = vld [vmem:[%s720 + $0x410] sm:$0xff]
        %v896 = vld [vmem:[%s720 + $0x418] sm:$0xff]
        %v897 = vld [vmem:[%s720 + $0x420] sm:$0xff]
        %v898 = vld [vmem:[%s720 + $0x428] sm:$0xff]
        %v899 = vld [vmem:[%s720 + $0x430] sm:$0xff]
        %v900 = vld [vmem:[%s720 + $0x438] sm:$0xff]
        %v901 = vld [vmem:[%s720 + $0x440] sm:$0xff]
        %v902 = vld [vmem:[%s720 + $0x448] sm:$0xff]
        %v903 = vld [vmem:[%s720 + $0x450] sm:$0xff]
        %v904 = vld [vmem:[%s720 + $0x458] sm:$0xff]
        %v905 = vld [vmem:[%s720 + $0x460] sm:$0xff]
        %v906 = vld [vmem:[%s720 + $0x468] sm:$0xff]
        %v907 = vld [vmem:[%s720 + $0x470] sm:$0xff]
        %v908 = vld [vmem:[%s720 + $0x478] sm:$0xff]
        %v909 = vld [vmem:[%s720 + $0x480] sm:$0xff]
        %v910 = vld [vmem:[%s720 + $0x488] sm:$0xff]
        %v911 = vld [vmem:[%s720 + $0x490] sm:$0xff]
        %v912 = vld [vmem:[%s720 + $0x498] sm:$0xff]
        %v913 = vld [vmem:[%s720 + $0x4a0] sm:$0xff]
        %v914 = vld [vmem:[%s720 + $0x4a8] sm:$0xff]
        %v915 = vld [vmem:[%s720 + $0x4b0] sm:$0xff]
        %v916 = vld [vmem:[%s720 + $0x4b8] sm:$0xff]
        %v917 = vld [vmem:[%s720 + $0x4c0] sm:$0xff]
        %v918 = vld [vmem:[%s720 + $0x4c8] sm:$0xff]
        %v919 = vld [vmem:[%s720 + $0x4d0] sm:$0xff]
        %v920 = vld [vmem:[%s720 + $0x4d8] sm:$0xff]
        %v921 = vld [vmem:[%s720 + $0x4e0] sm:$0xff]
        %v922 = vld [vmem:[%s720 + $0x4e8] sm:$0xff]
        %v923 = vld [vmem:[%s720 + $0x4f0] sm:$0xff]
        %v924 = vld [vmem:[%s720 + $0x4f8] sm:$0xff]
        %v925 = vld [vmem:[%s720 + $0x500] sm:$0xff]
        %v926 = vld [vmem:[%s720 + $0x508] sm:$0xff]
        %v927 = vld [vmem:[%s720 + $0x510] sm:$0xff]
        %v928 = vld [vmem:[%s720 + $0x518] sm:$0xff]
        %v929 = vld [vmem:[%s720 + $0x520] sm:$0xff]
        %v930 = vld [vmem:[%s720 + $0x528] sm:$0xff]
        %v931 = vld [vmem:[%s720 + $0x530] sm:$0xff]
        %v932 = vld [vmem:[%s720 + $0x538] sm:$0xff]
        %v933 = vld [vmem:[%s720 + $0x540] sm:$0xff]
        %v934 = vld [vmem:[%s720 + $0x548] sm:$0xff]
        %v935 = vld [vmem:[%s720 + $0x550] sm:$0xff]
        %v936 = vld [vmem:[%s720 + $0x558] sm:$0xff]
        %v937 = vld [vmem:[%s720 + $0x560] sm:$0xff]
        %v938 = vld [vmem:[%s720 + $0x568] sm:$0xff]
        %v939 = vld [vmem:[%s720 + $0x570] sm:$0xff]
        %v940 = vld [vmem:[%s720 + $0x578] sm:$0xff]
        %v941 = vld [vmem:[%s720 + $0x580] sm:$0xff]
        %v942 = vld [vmem:[%s720 + $0x588] sm:$0xff]
        %v943 = vld [vmem:[%s720 + $0x590] sm:$0xff]
        %v944 = vld [vmem:[%s720 + $0x598] sm:$0xff]
        %v945 = vld [vmem:[%s720 + $0x5a0] sm:$0xff]
        %v946 = vld [vmem:[%s720 + $0x5a8] sm:$0xff]
        %v947 = vld [vmem:[%s720 + $0x5b0] sm:$0xff]
        %v948 = vld [vmem:[%s720 + $0x5b8] sm:$0xff]
        %v949 = vld [vmem:[%s720 + $0x5c0] sm:$0xff]
        %v950 = vld [vmem:[%s720 + $0x5c8] sm:$0xff]
        %v951 = vld [vmem:[%s720 + $0x5d0] sm:$0xff]
        %v952 = vld [vmem:[%s720 + $0x5d8] sm:$0xff]
        %v953 = vld [vmem:[%s720 + $0x5e0] sm:$0xff]
        %v954 = vld [vmem:[%s720 + $0x5e8] sm:$0xff]
        %v955 = vld [vmem:[%s720 + $0x5f0] sm:$0xff]
        %v956 = vld [vmem:[%s720 + $0x5f8] sm:$0xff]
        %v957 = vld [vmem:[%s720 + $0x600] sm:$0xff]
        %v958 = vld [vmem:[%s720 + $0x608] sm:$0xff]
        %v959 = vld [vmem:[%s720 + $0x610] sm:$0xff]
        %v960 = vld [vmem:[%s720 + $0x618] sm:$0xff]
        %v961 = vld [vmem:[%s720 + $0x620] sm:$0xff]
        %v962 = vld [vmem:[%s720 + $0x628] sm:$0xff]
        %v963 = vld [vmem:[%s720 + $0x630] sm:$0xff]
        %v964 = vld [vmem:[%s720 + $0x638] sm:$0xff]
        %v965 = vld [vmem:[%s720 + $0x640] sm:$0xff]
        %v966 = vld [vmem:[%s720 + $0x648] sm:$0xff]
        %v967 = vld [vmem:[%s720 + $0x650] sm:$0xff]
        %v968 = vld [vmem:[%s720 + $0x658] sm:$0xff]
        %v969 = vld [vmem:[%s720 + $0x660] sm:$0xff]
        %v970 = vld [vmem:[%s720 + $0x668] sm:$0xff]
        %v971 = vld [vmem:[%s720 + $0x670] sm:$0xff]
        %v972 = vld [vmem:[%s720 + $0x678] sm:$0xff]
        %v973 = vld [vmem:[%s720 + $0x680] sm:$0xff]
        %v974 = vld [vmem:[%s720 + $0x688] sm:$0xff]
        %v975 = vld [vmem:[%s720 + $0x690] sm:$0xff]
        %v976 = vld [vmem:[%s720 + $0x698] sm:$0xff]
        %v977 = vld [vmem:[%s720 + $0x6a0] sm:$0xff]
        %v978 = vld [vmem:[%s720 + $0x6a8] sm:$0xff]
        %v979 = vld [vmem:[%s720 + $0x6b0] sm:$0xff]
        %v980 = vld [vmem:[%s720 + $0x6b8] sm:$0xff]
        %v981 = vld [vmem:[%s720 + $0x6c0] sm:$0xff]
        %v982 = vld [vmem:[%s720 + $0x6c8] sm:$0xff]
        %v983 = vld [vmem:[%s720 + $0x6d0] sm:$0xff]
        %v984 = vld [vmem:[%s720 + $0x6d8] sm:$0xff]
        %v985 = vld [vmem:[%s720 + $0x6e0] sm:$0xff]
        %v986 = vld [vmem:[%s720 + $0x6e8] sm:$0xff]
        %v987 = vld [vmem:[%s720 + $0x6f0] sm:$0xff]
        %v988 = vld [vmem:[%s720 + $0x6f8] sm:$0xff]
        %v989 = vld [vmem:[%s720 + $0x700] sm:$0xff]
        %v990 = vld [vmem:[%s720 + $0x708] sm:$0xff]
        %v991 = vld [vmem:[%s720 + $0x710] sm:$0xff]
        %v992 = vld [vmem:[%s720 + $0x718] sm:$0xff]
        %v993 = vld [vmem:[%s720 + $0x720] sm:$0xff]
        %v994 = vld [vmem:[%s720 + $0x728] sm:$0xff]
        %v995 = vld [vmem:[%s720 + $0x730] sm:$0xff]
        %v996 = vld [vmem:[%s720 + $0x738] sm:$0xff]
        %v997 = vld [vmem:[%s720 + $0x740] sm:$0xff]
        %v998 = vld [vmem:[%s720 + $0x748] sm:$0xff]
        %v999 = vld [vmem:[%s720 + $0x750] sm:$0xff]
        %v1000 = vld [vmem:[%s720 + $0x758] sm:$0xff]
        %v1001 = vld [vmem:[%s720 + $0x760] sm:$0xff]
        %v1002 = vld [vmem:[%s720 + $0x768] sm:$0xff]
        %v1003 = vld [vmem:[%s720 + $0x770] sm:$0xff]
        %v1004 = vld [vmem:[%s720 + $0x778] sm:$0xff]
        %v1005 = vld [vmem:[%s720 + $0x780] sm:$0xff]
        %v1006 = vld [vmem:[%s720 + $0x788] sm:$0xff]
        %v1007 = vld [vmem:[%s720 + $0x790] sm:$0xff]
        %v1008 = vld [vmem:[%s720 + $0x798] sm:$0xff]
        %v1009 = vld [vmem:[%s720 + $0x7a0] sm:$0xff]
        %v1010 = vld [vmem:[%s720 + $0x7a8] sm:$0xff]
        %v1011 = vld [vmem:[%s720 + $0x7b0] sm:$0xff]
        %v1012 = vld [vmem:[%s720 + $0x7b8] sm:$0xff]
        %v1013 = vld [vmem:[%s720 + $0x7c0] sm:$0xff]
        %v1014 = vld [vmem:[%s720 + $0x7c8] sm:$0xff]
        %v1015 = vld [vmem:[%s720 + $0x7d0] sm:$0xff]
        %v1016 = vld [vmem:[%s720 + $0x7d8] sm:$0xff]
        %v1017 = vld [vmem:[%s720 + $0x7e0] sm:$0xff]
        %v1018 = vld [vmem:[%s720 + $0x7e8] sm:$0xff]
        %v1019 = vld [vmem:[%s720 + $0x7f0] sm:$0xff]
        %v1020 = vld [vmem:[%s720 + $0x7f8] sm:$0xff]
        %v1021 = vld [vmem:[%s2] sm:$0xff]
        %v1022 = vld [vmem:[%s2 + $0x8] sm:$0xff]
        %v1023 = vld [vmem:[%s2 + $0x10] sm:$0xff]
        %v1024 = vld [vmem:[%s2 + $0x18] sm:$0x7]
        %v1025 = vld [vmem:[%s3] sm:$0x1]
        %v1027 = vperm.slane %v1025, 0
        %vm1029 = vcmask 220160
        %v1031 = vsel %vm1029, %v765, 0
        %v1034 = vsel %vm1029, %v766, 0
        %v1037 = vsel %vm1029, %v767, 0
        %v1040 = vsel %vm1029, %v768, 0
        %v1043 = vsel %vm1029, %v769, 0
        %v1046 = vsel %vm1029, %v770, 0
        %v1049 = vsel %vm1029, %v771, 0
        %v1052 = vsel %vm1029, %v772, 0
        %v1055 = vsel %vm1029, %v773, 0
        %v1058 = vsel %vm1029, %v774, 0
        %v1061 = vsel %vm1029, %v775, 0
        %v1064 = vsel %vm1029, %v776, 0
        %v1067 = vsel %vm1029, %v777, 0
        %v1070 = vsel %vm1029, %v778, 0
        %v1073 = vsel %vm1029, %v779, 0
        %v1076 = vsel %vm1029, %v780, 0
        %v1079 = vsel %vm1029, %v781, 0
        %v1082 = vsel %vm1029, %v782, 0
        %v1085 = vsel %vm1029, %v783, 0
        %v1088 = vsel %vm1029, %v784, 0
        %v1091 = vsel %vm1029, %v785, 0
        %v1094 = vsel %vm1029, %v786, 0
        %v1097 = vsel %vm1029, %v787, 0
        %v1100 = vsel %vm1029, %v788, 0
        %v1103 = vsel %vm1029, %v789, 0
        %v1106 = vsel %vm1029, %v790, 0
        %v1109 = vsel %vm1029, %v791, 0
        %v1112 = vsel %vm1029, %v792, 0
        %v1115 = vsel %vm1029, %v793, 0
        %v1118 = vsel %vm1029, %v794, 0
        %v1121 = vsel %vm1029, %v795, 0
        %v1124 = vsel %vm1029, %v796, 0
        %v1127 = vsel %vm1029, %v797, 0
        %v1130 = vsel %vm1029, %v798, 0
        %v1133 = vsel %vm1029, %v799, 0
        %v1136 = vsel %vm1029, %v800, 0
        %v1139 = vsel %vm1029, %v801, 0
        %v1142 = vsel %vm1029, %v802, 0
        %v1145 = vsel %vm1029, %v803, 0
        %v1148 = vsel %vm1029, %v804, 0
        %v1151 = vsel %vm1029, %v805, 0
        %v1154 = vsel %vm1029, %v806, 0
        %v1157 = vsel %vm1029, %v807, 0
        %v1160 = vsel %vm1029, %v808, 0
        %v1163 = vsel %vm1029, %v809, 0
        %v1166 = vsel %vm1029, %v810, 0
        %v1169 = vsel %vm1029, %v811, 0
        %v1172 = vsel %vm1029, %v812, 0
        %v1175 = vsel %vm1029, %v813, 0
        %v1178 = vsel %vm1029, %v814, 0
        %v1181 = vsel %vm1029, %v815, 0
        %v1184 = vsel %vm1029, %v816, 0
        %v1187 = vsel %vm1029, %v817, 0
        %v1190 = vsel %vm1029, %v818, 0
        %v1193 = vsel %vm1029, %v819, 0
        %v1196 = vsel %vm1029, %v820, 0
        %v1199 = vsel %vm1029, %v821, 0
        %v1202 = vsel %vm1029, %v822, 0
        %v1205 = vsel %vm1029, %v823, 0
        %v1208 = vsel %vm1029, %v824, 0
        %v1211 = vsel %vm1029, %v825, 0
        %v1214 = vsel %vm1029, %v826, 0
        %v1217 = vsel %vm1029, %v827, 0
        %v1220 = vsel %vm1029, %v828, 0
        %v1223 = vsel %vm1029, %v829, 0
        %v1226 = vsel %vm1029, %v830, 0
        %v1229 = vsel %vm1029, %v831, 0
        %v1232 = vsel %vm1029, %v832, 0
        %v1235 = vsel %vm1029, %v833, 0
        %v1238 = vsel %vm1029, %v834, 0
        %v1241 = vsel %vm1029, %v835, 0
        %v1244 = vsel %vm1029, %v836, 0
        %v1247 = vsel %vm1029, %v837, 0
        %v1250 = vsel %vm1029, %v838, 0
        %v1253 = vsel %vm1029, %v839, 0
        %v1256 = vsel %vm1029, %v840, 0
        %v1259 = vsel %vm1029, %v841, 0
        %v1262 = vsel %vm1029, %v842, 0
        %v1265 = vsel %vm1029, %v843, 0
        %v1268 = vsel %vm1029, %v844, 0
        %v1271 = vsel %vm1029, %v845, 0
        %v1274 = vsel %vm1029, %v846, 0
        %v1277 = vsel %vm1029, %v847, 0
        %v1280 = vsel %vm1029, %v848, 0
        %v1283 = vsel %vm1029, %v849, 0
        %v1286 = vsel %vm1029, %v850, 0
        %v1289 = vsel %vm1029, %v851, 0
        %v1292 = vsel %vm1029, %v852, 0
        %v1295 = vsel %vm1029, %v853, 0
        %v1298 = vsel %vm1029, %v854, 0
        %v1301 = vsel %vm1029, %v855, 0
        %v1304 = vsel %vm1029, %v856, 0
        %v1307 = vsel %vm1029, %v857, 0
        %v1310 = vsel %vm1029, %v858, 0
        %v1313 = vsel %vm1029, %v859, 0
        %v1316 = vsel %vm1029, %v860, 0
        %v1319 = vsel %vm1029, %v861, 0
        %v1322 = vsel %vm1029, %v862, 0
        %v1325 = vsel %vm1029, %v863, 0
        %v1328 = vsel %vm1029, %v864, 0
        %v1331 = vsel %vm1029, %v865, 0
        %v1334 = vsel %vm1029, %v866, 0
        %v1337 = vsel %vm1029, %v867, 0
        %v1340 = vsel %vm1029, %v868, 0
        %v1343 = vsel %vm1029, %v869, 0
        %v1346 = vsel %vm1029, %v870, 0
        %v1349 = vsel %vm1029, %v871, 0
        %v1352 = vsel %vm1029, %v872, 0
        %v1355 = vsel %vm1029, %v873, 0
        %v1358 = vsel %vm1029, %v874, 0
        %v1361 = vsel %vm1029, %v875, 0
        %v1364 = vsel %vm1029, %v876, 0
        %v1367 = vsel %vm1029, %v877, 0
        %v1370 = vsel %vm1029, %v878, 0
        %v1373 = vsel %vm1029, %v879, 0
        %v1376 = vsel %vm1029, %v880, 0
        %v1379 = vsel %vm1029, %v881, 0
        %v1382 = vsel %vm1029, %v882, 0
        %v1385 = vsel %vm1029, %v883, 0
        %v1388 = vsel %vm1029, %v884, 0
        %v1391 = vsel %vm1029, %v885, 0
        %v1394 = vsel %vm1029, %v886, 0
        %v1397 = vsel %vm1029, %v887, 0
        %v1400 = vsel %vm1029, %v888, 0
        %v1403 = vsel %vm1029, %v889, 0
        %v1406 = vsel %vm1029, %v890, 0
        %v1409 = vsel %vm1029, %v891, 0
        %v1412 = vsel %vm1029, %v892, 0
        %v1415 = vsel %vm1029, %v893, 0
        %v1418 = vsel %vm1029, %v894, 0
        %v1421 = vsel %vm1029, %v895, 0
        %v1424 = vsel %vm1029, %v896, 0
        %v1427 = vsel %vm1029, %v897, 0
        %v1430 = vsel %vm1029, %v898, 0
        %v1433 = vsel %vm1029, %v899, 0
        %v1436 = vsel %vm1029, %v900, 0
        %v1439 = vsel %vm1029, %v901, 0
        %v1442 = vsel %vm1029, %v902, 0
        %v1445 = vsel %vm1029, %v903, 0
        %v1448 = vsel %vm1029, %v904, 0
        %v1451 = vsel %vm1029, %v905, 0
        %v1454 = vsel %vm1029, %v906, 0
        %v1457 = vsel %vm1029, %v907, 0
        %v1460 = vsel %vm1029, %v908, 0
        %v1463 = vsel %vm1029, %v909, 0
        %v1466 = vsel %vm1029, %v910, 0
        %v1469 = vsel %vm1029, %v911, 0
        %v1472 = vsel %vm1029, %v912, 0
        %v1475 = vsel %vm1029, %v913, 0
        %v1478 = vsel %vm1029, %v914, 0
        %v1481 = vsel %vm1029, %v915, 0
        %v1484 = vsel %vm1029, %v916, 0
        %v1487 = vsel %vm1029, %v917, 0
        %v1490 = vsel %vm1029, %v918, 0
        %v1493 = vsel %vm1029, %v919, 0
        %v1496 = vsel %vm1029, %v920, 0
        %v1499 = vsel %vm1029, %v921, 0
        %v1502 = vsel %vm1029, %v922, 0
        %v1505 = vsel %vm1029, %v923, 0
        %v1508 = vsel %vm1029, %v924, 0
        %v1511 = vsel %vm1029, %v925, 0
        %v1514 = vsel %vm1029, %v926, 0
        %v1517 = vsel %vm1029, %v927, 0
        %v1520 = vsel %vm1029, %v928, 0
        %v1523 = vsel %vm1029, %v929, 0
        %v1526 = vsel %vm1029, %v930, 0
        %v1529 = vsel %vm1029, %v931, 0
        %v1532 = vsel %vm1029, %v932, 0
        %v1535 = vsel %vm1029, %v933, 0
        %v1538 = vsel %vm1029, %v934, 0
        %v1541 = vsel %vm1029, %v935, 0
        %v1544 = vsel %vm1029, %v936, 0
        %v1547 = vsel %vm1029, %v937, 0
        %v1550 = vsel %vm1029, %v938, 0
        %v1553 = vsel %vm1029, %v939, 0
        %v1556 = vsel %vm1029, %v940, 0
        %v1559 = vsel %vm1029, %v941, 0
        %v1562 = vsel %vm1029, %v942, 0
        %v1565 = vsel %vm1029, %v943, 0
        %v1568 = vsel %vm1029, %v944, 0
        %v1571 = vsel %vm1029, %v945, 0
        %v1574 = vsel %vm1029, %v946, 0
        %v1577 = vsel %vm1029, %v947, 0
        %v1580 = vsel %vm1029, %v948, 0
        %v1583 = vsel %vm1029, %v949, 0
        %v1586 = vsel %vm1029, %v950, 0
        %v1589 = vsel %vm1029, %v951, 0
        %v1592 = vsel %vm1029, %v952, 0
        %v1595 = vsel %vm1029, %v953, 0
        %v1598 = vsel %vm1029, %v954, 0
        %v1601 = vsel %vm1029, %v955, 0
        %v1604 = vsel %vm1029, %v956, 0
        %v1607 = vsel %vm1029, %v957, 0
        %v1610 = vsel %vm1029, %v958, 0
        %v1613 = vsel %vm1029, %v959, 0
        %v1616 = vsel %vm1029, %v960, 0
        %v1619 = vsel %vm1029, %v961, 0
        %v1622 = vsel %vm1029, %v962, 0
        %v1625 = vsel %vm1029, %v963, 0
        %v1628 = vsel %vm1029, %v964, 0
        %v1631 = vsel %vm1029, %v965, 0
        %v1634 = vsel %vm1029, %v966, 0
        %v1637 = vsel %vm1029, %v967, 0
        %v1640 = vsel %vm1029, %v968, 0
        %v1643 = vsel %vm1029, %v969, 0
        %v1646 = vsel %vm1029, %v970, 0
        %v1649 = vsel %vm1029, %v971, 0
        %v1652 = vsel %vm1029, %v972, 0
        %v1655 = vsel %vm1029, %v973, 0
        %v1658 = vsel %vm1029, %v974, 0
        %v1661 = vsel %vm1029, %v975, 0
        %v1664 = vsel %vm1029, %v976, 0
        %v1667 = vsel %vm1029, %v977, 0
        %v1670 = vsel %vm1029, %v978, 0
        %v1673 = vsel %vm1029, %v979, 0
        %v1676 = vsel %vm1029, %v980, 0
        %v1679 = vsel %vm1029, %v981, 0
        %v1682 = vsel %vm1029, %v982, 0
        %v1685 = vsel %vm1029, %v983, 0
        %v1688 = vsel %vm1029, %v984, 0
        %v1691 = vsel %vm1029, %v985, 0
        %v1694 = vsel %vm1029, %v986, 0
        %v1697 = vsel %vm1029, %v987, 0
        %v1700 = vsel %vm1029, %v988, 0
        %v1703 = vsel %vm1029, %v989, 0
        %v1706 = vsel %vm1029, %v990, 0
        %v1709 = vsel %vm1029, %v991, 0
        %v1712 = vsel %vm1029, %v992, 0
        %v1715 = vsel %vm1029, %v993, 0
        %v1718 = vsel %vm1029, %v994, 0
        %v1721 = vsel %vm1029, %v995, 0
        %v1724 = vsel %vm1029, %v996, 0
        %v1727 = vsel %vm1029, %v997, 0
        %v1730 = vsel %vm1029, %v998, 0
        %v1733 = vsel %vm1029, %v999, 0
        %v1736 = vsel %vm1029, %v1000, 0
        %v1739 = vsel %vm1029, %v1001, 0
        %v1742 = vsel %vm1029, %v1002, 0
        %v1745 = vsel %vm1029, %v1003, 0
        %v1748 = vsel %vm1029, %v1004, 0
        %v1751 = vsel %vm1029, %v1005, 0
        %v1754 = vsel %vm1029, %v1006, 0
        %v1757 = vsel %vm1029, %v1007, 0
        %v1760 = vsel %vm1029, %v1008, 0
        %v1763 = vsel %vm1029, %v1009, 0
        %v1766 = vsel %vm1029, %v1010, 0
        %v1769 = vsel %vm1029, %v1011, 0
        %v1772 = vsel %vm1029, %v1012, 0
        %v1775 = vsel %vm1029, %v1013, 0
        %v1778 = vsel %vm1029, %v1014, 0
        %v1781 = vsel %vm1029, %v1015, 0
        %v1784 = vsel %vm1029, %v1016, 0
        %v1787 = vsel %vm1029, %v1017, 0
        %v1790 = vsel %vm1029, %v1018, 0
        %v1793 = vsel %vm1029, %v1019, 0
        %v1796 = vsel %vm1029, %v1020, 0
        %vm1798 = vcmask 1042432
        %v1800 = vsel %vm1798, %v1024, 0
        %1802 = vmatpush.msra.mxu0 0.0
        %1803 = vmatpush.msra.mxu0 0.0
        %1804 = vmatpush.msra.mxu0 0.0
        %1805 = vmatpush.msra.mxu0 0.0
        %1806 = vmatpush.msra.mxu0 0.0
        %1807 = vmatpush.msra.mxu0 0.0
        %1808 = vmatpush.msra.mxu0 0.0
        %1809 = vmatpush.msra.mxu0 0.0
        %1810 = vmatpush.msra.mxu0 0.0
        %1811 = vmatpush.msra.mxu0 0.0
        %1812 = vmatpush.msra.mxu0 0.0
        %1813 = vmatpush.msra.mxu0 0.0
        %1814 = vmatpush.msra.mxu0 %v1800
        %1815 = vmatpush.msra.mxu0 %v1023
        %1816 = vmatpush.msra.mxu0 %v1022
        %1817 = vmatpush.msra.mxu0 %v1021
        %1818 = vmatmul.f32.gmra.mxu0 %v1031
        %v1819 = vpop.f32.mrf.mxu0
        %v1820 = vadd.f32 %v1027, %v1819
        %1821 = vmatmul.f32.gmra.mxu0 %v1034
        %v1822 = vpop.f32.mrf.mxu0
        %v1823 = vadd.f32 %v1027, %v1822
        %1824 = vmatmul.f32.gmra.mxu0 %v1037
        %v1825 = vpop.f32.mrf.mxu0
        %v1826 = vadd.f32 %v1027, %v1825
        %1827 = vmatmul.f32.gmra.mxu0 %v1040
        %v1828 = vpop.f32.mrf.mxu0
        %v1829 = vadd.f32 %v1027, %v1828
        %1830 = vmatmul.f32.gmra.mxu0 %v1043
        %v1831 = vpop.f32.mrf.mxu0
        %v1832 = vadd.f32 %v1027, %v1831
        %1833 = vmatmul.f32.gmra.mxu0 %v1046
        %v1834 = vpop.f32.mrf.mxu0
        %v1835 = vadd.f32 %v1027, %v1834
        %1836 = vmatmul.f32.gmra.mxu0 %v1049
        %v1837 = vpop.f32.mrf.mxu0
        %v1838 = vadd.f32 %v1027, %v1837
        %1839 = vmatmul.f32.gmra.mxu0 %v1052
        %v1840 = vpop.f32.mrf.mxu0
        %v1841 = vadd.f32 %v1027, %v1840
        %1842 = vmatmul.f32.gmra.mxu0 %v1055
        %v1843 = vpop.f32.mrf.mxu0
        %v1844 = vadd.f32 %v1027, %v1843
        %1845 = vmatmul.f32.gmra.mxu0 %v1058
        %v1846 = vpop.f32.mrf.mxu0
        %v1847 = vadd.f32 %v1027, %v1846
        %1848 = vmatmul.f32.gmra.mxu0 %v1061
        %v1849 = vpop.f32.mrf.mxu0
        %v1850 = vadd.f32 %v1027, %v1849
        %1851 = vmatmul.f32.gmra.mxu0 %v1064
        %v1852 = vpop.f32.mrf.mxu0
        %v1853 = vadd.f32 %v1027, %v1852
        %1854 = vmatmul.f32.gmra.mxu0 %v1067
        %v1855 = vpop.f32.mrf.mxu0
        %v1856 = vadd.f32 %v1027, %v1855
        %1857 = vmatmul.f32.gmra.mxu0 %v1070
        %v1858 = vpop.f32.mrf.mxu0
        %v1859 = vadd.f32 %v1027, %v1858
        %1860 = vmatmul.f32.gmra.mxu0 %v1073
        %v1861 = vpop.f32.mrf.mxu0
        %v1862 = vadd.f32 %v1027, %v1861
        %1863 = vmatmul.f32.gmra.mxu0 %v1076
        %v1864 = vpop.f32.mrf.mxu0
        %v1865 = vadd.f32 %v1027, %v1864
        %1866 = vmatmul.f32.gmra.mxu0 %v1079
        %v1867 = vpop.f32.mrf.mxu0
        %v1868 = vadd.f32 %v1027, %v1867
        %1869 = vmatmul.f32.gmra.mxu0 %v1082
        %v1870 = vpop.f32.mrf.mxu0
        %v1871 = vadd.f32 %v1027, %v1870
        %1872 = vmatmul.f32.gmra.mxu0 %v1085
        %v1873 = vpop.f32.mrf.mxu0
        %v1874 = vadd.f32 %v1027, %v1873
        %1875 = vmatmul.f32.gmra.mxu0 %v1088
        %v1876 = vpop.f32.mrf.mxu0
        %v1877 = vadd.f32 %v1027, %v1876
        %1878 = vmatmul.f32.gmra.mxu0 %v1091
        %v1879 = vpop.f32.mrf.mxu0
        %v1880 = vadd.f32 %v1027, %v1879
        %1881 = vmatmul.f32.gmra.mxu0 %v1094
        %v1882 = vpop.f32.mrf.mxu0
        %v1883 = vadd.f32 %v1027, %v1882
        %1884 = vmatmul.f32.gmra.mxu0 %v1097
        %v1885 = vpop.f32.mrf.mxu0
        %v1886 = vadd.f32 %v1027, %v1885
        %1887 = vmatmul.f32.gmra.mxu0 %v1100
        %v1888 = vpop.f32.mrf.mxu0
        %v1889 = vadd.f32 %v1027, %v1888
        %1890 = vmatmul.f32.gmra.mxu0 %v1103
        %v1891 = vpop.f32.mrf.mxu0
        %v1892 = vadd.f32 %v1027, %v1891
        %1893 = vmatmul.f32.gmra.mxu0 %v1106
        %v1894 = vpop.f32.mrf.mxu0
        %v1895 = vadd.f32 %v1027, %v1894
        %1896 = vmatmul.f32.gmra.mxu0 %v1109
        %v1897 = vpop.f32.mrf.mxu0
        %v1898 = vadd.f32 %v1027, %v1897
        %1899 = vmatmul.f32.gmra.mxu0 %v1112
        %v1900 = vpop.f32.mrf.mxu0
        %v1901 = vadd.f32 %v1027, %v1900
        %1902 = vmatmul.f32.gmra.mxu0 %v1115
        %v1903 = vpop.f32.mrf.mxu0
        %v1904 = vadd.f32 %v1027, %v1903
        %1905 = vmatmul.f32.gmra.mxu0 %v1118
        %v1906 = vpop.f32.mrf.mxu0
        %v1907 = vadd.f32 %v1027, %v1906
        %1908 = vmatmul.f32.gmra.mxu0 %v1121
        %v1909 = vpop.f32.mrf.mxu0
        %v1910 = vadd.f32 %v1027, %v1909
        %1911 = vmatmul.f32.gmra.mxu0 %v1124
        %v1912 = vpop.f32.mrf.mxu0
        %v1913 = vadd.f32 %v1027, %v1912
        %1914 = vmatmul.f32.gmra.mxu0 %v1127
        %v1915 = vpop.f32.mrf.mxu0
        %v1916 = vadd.f32 %v1027, %v1915
        %1917 = vmatmul.f32.gmra.mxu0 %v1130
        %v1918 = vpop.f32.mrf.mxu0
        %v1919 = vadd.f32 %v1027, %v1918
        %1920 = vmatmul.f32.gmra.mxu0 %v1133
        %v1921 = vpop.f32.mrf.mxu0
        %v1922 = vadd.f32 %v1027, %v1921
        %1923 = vmatmul.f32.gmra.mxu0 %v1136
        %v1924 = vpop.f32.mrf.mxu0
        %v1925 = vadd.f32 %v1027, %v1924
        %1926 = vmatmul.f32.gmra.mxu0 %v1139
        %v1927 = vpop.f32.mrf.mxu0
        %v1928 = vadd.f32 %v1027, %v1927
        %1929 = vmatmul.f32.gmra.mxu0 %v1142
        %v1930 = vpop.f32.mrf.mxu0
        %v1931 = vadd.f32 %v1027, %v1930
        %1932 = vmatmul.f32.gmra.mxu0 %v1145
        %v1933 = vpop.f32.mrf.mxu0
        %v1934 = vadd.f32 %v1027, %v1933
        %1935 = vmatmul.f32.gmra.mxu0 %v1148
        %v1936 = vpop.f32.mrf.mxu0
        %v1937 = vadd.f32 %v1027, %v1936
        %1938 = vmatmul.f32.gmra.mxu0 %v1151
        %v1939 = vpop.f32.mrf.mxu0
        %v1940 = vadd.f32 %v1027, %v1939
        %1941 = vmatmul.f32.gmra.mxu0 %v1154
        %v1942 = vpop.f32.mrf.mxu0
        %v1943 = vadd.f32 %v1027, %v1942
        %1944 = vmatmul.f32.gmra.mxu0 %v1157
        %v1945 = vpop.f32.mrf.mxu0
        %v1946 = vadd.f32 %v1027, %v1945
        %1947 = vmatmul.f32.gmra.mxu0 %v1160
        %v1948 = vpop.f32.mrf.mxu0
        %v1949 = vadd.f32 %v1027, %v1948
        %1950 = vmatmul.f32.gmra.mxu0 %v1163
        %v1951 = vpop.f32.mrf.mxu0
        %v1952 = vadd.f32 %v1027, %v1951
        %1953 = vmatmul.f32.gmra.mxu0 %v1166
        %v1954 = vpop.f32.mrf.mxu0
        %v1955 = vadd.f32 %v1027, %v1954
        %1956 = vmatmul.f32.gmra.mxu0 %v1169
        %v1957 = vpop.f32.mrf.mxu0
        %v1958 = vadd.f32 %v1027, %v1957
        %1959 = vmatmul.f32.gmra.mxu0 %v1172
        %v1960 = vpop.f32.mrf.mxu0
        %v1961 = vadd.f32 %v1027, %v1960
        %1962 = vmatmul.f32.gmra.mxu0 %v1175
        %v1963 = vpop.f32.mrf.mxu0
        %v1964 = vadd.f32 %v1027, %v1963
        %1965 = vmatmul.f32.gmra.mxu0 %v1178
        %v1966 = vpop.f32.mrf.mxu0
        %v1967 = vadd.f32 %v1027, %v1966
        %1968 = vmatmul.f32.gmra.mxu0 %v1181
        %v1969 = vpop.f32.mrf.mxu0
        %v1970 = vadd.f32 %v1027, %v1969
        %1971 = vmatmul.f32.gmra.mxu0 %v1184
        %v1972 = vpop.f32.mrf.mxu0
        %v1973 = vadd.f32 %v1027, %v1972
        %1974 = vmatmul.f32.gmra.mxu0 %v1187
        %v1975 = vpop.f32.mrf.mxu0
        %v1976 = vadd.f32 %v1027, %v1975
        %1977 = vmatmul.f32.gmra.mxu0 %v1190
        %v1978 = vpop.f32.mrf.mxu0
        %v1979 = vadd.f32 %v1027, %v1978
        %1980 = vmatmul.f32.gmra.mxu0 %v1193
        %v1981 = vpop.f32.mrf.mxu0
        %v1982 = vadd.f32 %v1027, %v1981
        %1983 = vmatmul.f32.gmra.mxu0 %v1196
        %v1984 = vpop.f32.mrf.mxu0
        %v1985 = vadd.f32 %v1027, %v1984
        %1986 = vmatmul.f32.gmra.mxu0 %v1199
        %v1987 = vpop.f32.mrf.mxu0
        %v1988 = vadd.f32 %v1027, %v1987
        %1989 = vmatmul.f32.gmra.mxu0 %v1202
        %v1990 = vpop.f32.mrf.mxu0
        %v1991 = vadd.f32 %v1027, %v1990
        %1992 = vmatmul.f32.gmra.mxu0 %v1205
        %v1993 = vpop.f32.mrf.mxu0
        %v1994 = vadd.f32 %v1027, %v1993
        %1995 = vmatmul.f32.gmra.mxu0 %v1208
        %v1996 = vpop.f32.mrf.mxu0
        %v1997 = vadd.f32 %v1027, %v1996
        %1998 = vmatmul.f32.gmra.mxu0 %v1211
        %v1999 = vpop.f32.mrf.mxu0
        %v2000 = vadd.f32 %v1027, %v1999
        %2001 = vmatmul.f32.gmra.mxu0 %v1214
        %v2002 = vpop.f32.mrf.mxu0
        %v2003 = vadd.f32 %v1027, %v2002
        %2004 = vmatmul.f32.gmra.mxu0 %v1217
        %v2005 = vpop.f32.mrf.mxu0
        %v2006 = vadd.f32 %v1027, %v2005
        %2007 = vmatmul.f32.gmra.mxu0 %v1220
        %v2008 = vpop.f32.mrf.mxu0
        %v2009 = vadd.f32 %v1027, %v2008
        %2010 = vmatmul.f32.gmra.mxu0 %v1223
        %v2011 = vpop.f32.mrf.mxu0
        %v2012 = vadd.f32 %v1027, %v2011
        %2013 = vmatmul.f32.gmra.mxu0 %v1226
        %v2014 = vpop.f32.mrf.mxu0
        %v2015 = vadd.f32 %v1027, %v2014
        %2016 = vmatmul.f32.gmra.mxu0 %v1229
        %v2017 = vpop.f32.mrf.mxu0
        %v2018 = vadd.f32 %v1027, %v2017
        %2019 = vmatmul.f32.gmra.mxu0 %v1232
        %v2020 = vpop.f32.mrf.mxu0
        %v2021 = vadd.f32 %v1027, %v2020
        %2022 = vmatmul.f32.gmra.mxu0 %v1235
        %v2023 = vpop.f32.mrf.mxu0
        %v2024 = vadd.f32 %v1027, %v2023
        %2025 = vmatmul.f32.gmra.mxu0 %v1238
        %v2026 = vpop.f32.mrf.mxu0
        %v2027 = vadd.f32 %v1027, %v2026
        %2028 = vmatmul.f32.gmra.mxu0 %v1241
        %v2029 = vpop.f32.mrf.mxu0
        %v2030 = vadd.f32 %v1027, %v2029
        %2031 = vmatmul.f32.gmra.mxu0 %v1244
        %v2032 = vpop.f32.mrf.mxu0
        %v2033 = vadd.f32 %v1027, %v2032
        %2034 = vmatmul.f32.gmra.mxu0 %v1247
        %v2035 = vpop.f32.mrf.mxu0
        %v2036 = vadd.f32 %v1027, %v2035
        %2037 = vmatmul.f32.gmra.mxu0 %v1250
        %v2038 = vpop.f32.mrf.mxu0
        %v2039 = vadd.f32 %v1027, %v2038
        %2040 = vmatmul.f32.gmra.mxu0 %v1253
        %v2041 = vpop.f32.mrf.mxu0
        %v2042 = vadd.f32 %v1027, %v2041
        %2043 = vmatmul.f32.gmra.mxu0 %v1256
        %v2044 = vpop.f32.mrf.mxu0
        %v2045 = vadd.f32 %v1027, %v2044
        %2046 = vmatmul.f32.gmra.mxu0 %v1259
        %v2047 = vpop.f32.mrf.mxu0
        %v2048 = vadd.f32 %v1027, %v2047
        %2049 = vmatmul.f32.gmra.mxu0 %v1262
        %v2050 = vpop.f32.mrf.mxu0
        %v2051 = vadd.f32 %v1027, %v2050
        %2052 = vmatmul.f32.gmra.mxu0 %v1265
        %v2053 = vpop.f32.mrf.mxu0
        %v2054 = vadd.f32 %v1027, %v2053
        %2055 = vmatmul.f32.gmra.mxu0 %v1268
        %v2056 = vpop.f32.mrf.mxu0
        %v2057 = vadd.f32 %v1027, %v2056
        %2058 = vmatmul.f32.gmra.mxu0 %v1271
        %v2059 = vpop.f32.mrf.mxu0
        %v2060 = vadd.f32 %v1027, %v2059
        %2061 = vmatmul.f32.gmra.mxu0 %v1274
        %v2062 = vpop.f32.mrf.mxu0
        %v2063 = vadd.f32 %v1027, %v2062
        %2064 = vmatmul.f32.gmra.mxu0 %v1277
        %v2065 = vpop.f32.mrf.mxu0
        %v2066 = vadd.f32 %v1027, %v2065
        %2067 = vmatmul.f32.gmra.mxu0 %v1280
        %v2068 = vpop.f32.mrf.mxu0
        %v2069 = vadd.f32 %v1027, %v2068
        %2070 = vmatmul.f32.gmra.mxu0 %v1283
        %v2071 = vpop.f32.mrf.mxu0
        %v2072 = vadd.f32 %v1027, %v2071
        %2073 = vmatmul.f32.gmra.mxu0 %v1286
        %v2074 = vpop.f32.mrf.mxu0
        %v2075 = vadd.f32 %v1027, %v2074
        %2076 = vmatmul.f32.gmra.mxu0 %v1289
        %v2077 = vpop.f32.mrf.mxu0
        %v2078 = vadd.f32 %v1027, %v2077
        %2079 = vmatmul.f32.gmra.mxu0 %v1292
        %v2080 = vpop.f32.mrf.mxu0
        %v2081 = vadd.f32 %v1027, %v2080
        %2082 = vmatmul.f32.gmra.mxu0 %v1295
        %v2083 = vpop.f32.mrf.mxu0
        %v2084 = vadd.f32 %v1027, %v2083
        %2085 = vmatmul.f32.gmra.mxu0 %v1298
        %v2086 = vpop.f32.mrf.mxu0
        %v2087 = vadd.f32 %v1027, %v2086
        %2088 = vmatmul.f32.gmra.mxu0 %v1301
        %v2089 = vpop.f32.mrf.mxu0
        %v2090 = vadd.f32 %v1027, %v2089
        %2091 = vmatmul.f32.gmra.mxu0 %v1304
        %v2092 = vpop.f32.mrf.mxu0
        %v2093 = vadd.f32 %v1027, %v2092
        %2094 = vmatmul.f32.gmra.mxu0 %v1307
        %v2095 = vpop.f32.mrf.mxu0
        %v2096 = vadd.f32 %v1027, %v2095
        %2097 = vmatmul.f32.gmra.mxu0 %v1310
        %v2098 = vpop.f32.mrf.mxu0
        %v2099 = vadd.f32 %v1027, %v2098
        %2100 = vmatmul.f32.gmra.mxu0 %v1313
        %v2101 = vpop.f32.mrf.mxu0
        %v2102 = vadd.f32 %v1027, %v2101
        %2103 = vmatmul.f32.gmra.mxu0 %v1316
        %v2104 = vpop.f32.mrf.mxu0
        %v2105 = vadd.f32 %v1027, %v2104
        %2106 = vmatmul.f32.gmra.mxu0 %v1319
        %v2107 = vpop.f32.mrf.mxu0
        %v2108 = vadd.f32 %v1027, %v2107
        %2109 = vmatmul.f32.gmra.mxu0 %v1322
        %v2110 = vpop.f32.mrf.mxu0
        %v2111 = vadd.f32 %v1027, %v2110
        %2112 = vmatmul.f32.gmra.mxu0 %v1325
        %v2113 = vpop.f32.mrf.mxu0
        %v2114 = vadd.f32 %v1027, %v2113
        %2115 = vmatmul.f32.gmra.mxu0 %v1328
        %v2116 = vpop.f32.mrf.mxu0
        %v2117 = vadd.f32 %v1027, %v2116
        %2118 = vmatmul.f32.gmra.mxu0 %v1331
        %v2119 = vpop.f32.mrf.mxu0
        %v2120 = vadd.f32 %v1027, %v2119
        %2121 = vmatmul.f32.gmra.mxu0 %v1334
        %v2122 = vpop.f32.mrf.mxu0
        %v2123 = vadd.f32 %v1027, %v2122
        %2124 = vmatmul.f32.gmra.mxu0 %v1337
        %v2125 = vpop.f32.mrf.mxu0
        %v2126 = vadd.f32 %v1027, %v2125
        %2127 = vmatmul.f32.gmra.mxu0 %v1340
        %v2128 = vpop.f32.mrf.mxu0
        %v2129 = vadd.f32 %v1027, %v2128
        %2130 = vmatmul.f32.gmra.mxu0 %v1343
        %v2131 = vpop.f32.mrf.mxu0
        %v2132 = vadd.f32 %v1027, %v2131
        %2133 = vmatmul.f32.gmra.mxu0 %v1346
        %v2134 = vpop.f32.mrf.mxu0
        %v2135 = vadd.f32 %v1027, %v2134
        %2136 = vmatmul.f32.gmra.mxu0 %v1349
        %v2137 = vpop.f32.mrf.mxu0
        %v2138 = vadd.f32 %v1027, %v2137
        %2139 = vmatmul.f32.gmra.mxu0 %v1352
        %v2140 = vpop.f32.mrf.mxu0
        %v2141 = vadd.f32 %v1027, %v2140
        %2142 = vmatmul.f32.gmra.mxu0 %v1355
        %v2143 = vpop.f32.mrf.mxu0
        %v2144 = vadd.f32 %v1027, %v2143
        %2145 = vmatmul.f32.gmra.mxu0 %v1358
        %v2146 = vpop.f32.mrf.mxu0
        %v2147 = vadd.f32 %v1027, %v2146
        %2148 = vmatmul.f32.gmra.mxu0 %v1361
        %v2149 = vpop.f32.mrf.mxu0
        %v2150 = vadd.f32 %v1027, %v2149
        %2151 = vmatmul.f32.gmra.mxu0 %v1364
        %v2152 = vpop.f32.mrf.mxu0
        %v2153 = vadd.f32 %v1027, %v2152
        %2154 = vmatmul.f32.gmra.mxu0 %v1367
        %v2155 = vpop.f32.mrf.mxu0
        %v2156 = vadd.f32 %v1027, %v2155
        %2157 = vmatmul.f32.gmra.mxu0 %v1370
        %v2158 = vpop.f32.mrf.mxu0
        %v2159 = vadd.f32 %v1027, %v2158
        %2160 = vmatmul.f32.gmra.mxu0 %v1373
        %v2161 = vpop.f32.mrf.mxu0
        %v2162 = vadd.f32 %v1027, %v2161
        %2163 = vmatmul.f32.gmra.mxu0 %v1376
        %v2164 = vpop.f32.mrf.mxu0
        %v2165 = vadd.f32 %v1027, %v2164
        %2166 = vmatmul.f32.gmra.mxu0 %v1379
        %v2167 = vpop.f32.mrf.mxu0
        %v2168 = vadd.f32 %v1027, %v2167
        %2169 = vmatmul.f32.gmra.mxu0 %v1382
        %v2170 = vpop.f32.mrf.mxu0
        %v2171 = vadd.f32 %v1027, %v2170
        %2172 = vmatmul.f32.gmra.mxu0 %v1385
        %v2173 = vpop.f32.mrf.mxu0
        %v2174 = vadd.f32 %v1027, %v2173
        %2175 = vmatmul.f32.gmra.mxu0 %v1388
        %v2176 = vpop.f32.mrf.mxu0
        %v2177 = vadd.f32 %v1027, %v2176
        %2178 = vmatmul.f32.gmra.mxu0 %v1391
        %v2179 = vpop.f32.mrf.mxu0
        %v2180 = vadd.f32 %v1027, %v2179
        %2181 = vmatmul.f32.gmra.mxu0 %v1394
        %v2182 = vpop.f32.mrf.mxu0
        %v2183 = vadd.f32 %v1027, %v2182
        %2184 = vmatmul.f32.gmra.mxu0 %v1397
        %v2185 = vpop.f32.mrf.mxu0
        %v2186 = vadd.f32 %v1027, %v2185
        %2187 = vmatmul.f32.gmra.mxu0 %v1400
        %v2188 = vpop.f32.mrf.mxu0
        %v2189 = vadd.f32 %v1027, %v2188
        %2190 = vmatmul.f32.gmra.mxu0 %v1403
        %v2191 = vpop.f32.mrf.mxu0
        %v2192 = vadd.f32 %v1027, %v2191
        %2193 = vmatmul.f32.gmra.mxu0 %v1406
        %v2194 = vpop.f32.mrf.mxu0
        %v2195 = vadd.f32 %v1027, %v2194
        %2196 = vmatmul.f32.gmra.mxu0 %v1409
        %v2197 = vpop.f32.mrf.mxu0
        %v2198 = vadd.f32 %v1027, %v2197
        %2199 = vmatmul.f32.gmra.mxu0 %v1412
        %v2200 = vpop.f32.mrf.mxu0
        %v2201 = vadd.f32 %v1027, %v2200
        %2202 = vmatmul.f32.gmra.mxu0 %v1415
        %v2203 = vpop.f32.mrf.mxu0
        %v2204 = vadd.f32 %v1027, %v2203
        %2205 = vmatmul.f32.gmra.mxu0 %v1418
        %v2206 = vpop.f32.mrf.mxu0
        %v2207 = vadd.f32 %v1027, %v2206
        %2208 = vmatmul.f32.gmra.mxu0 %v1421
        %v2209 = vpop.f32.mrf.mxu0
        %v2210 = vadd.f32 %v1027, %v2209
        %2211 = vmatmul.f32.gmra.mxu0 %v1424
        %v2212 = vpop.f32.mrf.mxu0
        %v2213 = vadd.f32 %v1027, %v2212
        %2214 = vmatmul.f32.gmra.mxu0 %v1427
        %v2215 = vpop.f32.mrf.mxu0
        %v2216 = vadd.f32 %v1027, %v2215
        %2217 = vmatmul.f32.gmra.mxu0 %v1430
        %v2218 = vpop.f32.mrf.mxu0
        %v2219 = vadd.f32 %v1027, %v2218
        %2220 = vmatmul.f32.gmra.mxu0 %v1433
        %v2221 = vpop.f32.mrf.mxu0
        %v2222 = vadd.f32 %v1027, %v2221
        %2223 = vmatmul.f32.gmra.mxu0 %v1436
        %v2224 = vpop.f32.mrf.mxu0
        %v2225 = vadd.f32 %v1027, %v2224
        %2226 = vmatmul.f32.gmra.mxu0 %v1439
        %v2227 = vpop.f32.mrf.mxu0
        %v2228 = vadd.f32 %v1027, %v2227
        %2229 = vmatmul.f32.gmra.mxu0 %v1442
        %v2230 = vpop.f32.mrf.mxu0
        %v2231 = vadd.f32 %v1027, %v2230
        %2232 = vmatmul.f32.gmra.mxu0 %v1445
        %v2233 = vpop.f32.mrf.mxu0
        %v2234 = vadd.f32 %v1027, %v2233
        %2235 = vmatmul.f32.gmra.mxu0 %v1448
        %v2236 = vpop.f32.mrf.mxu0
        %v2237 = vadd.f32 %v1027, %v2236
        %2238 = vmatmul.f32.gmra.mxu0 %v1451
        %v2239 = vpop.f32.mrf.mxu0
        %v2240 = vadd.f32 %v1027, %v2239
        %2241 = vmatmul.f32.gmra.mxu0 %v1454
        %v2242 = vpop.f32.mrf.mxu0
        %v2243 = vadd.f32 %v1027, %v2242
        %2244 = vmatmul.f32.gmra.mxu0 %v1457
        %v2245 = vpop.f32.mrf.mxu0
        %v2246 = vadd.f32 %v1027, %v2245
        %2247 = vmatmul.f32.gmra.mxu0 %v1460
        %v2248 = vpop.f32.mrf.mxu0
        %v2249 = vadd.f32 %v1027, %v2248
        %2250 = vmatmul.f32.gmra.mxu0 %v1463
        %v2251 = vpop.f32.mrf.mxu0
        %v2252 = vadd.f32 %v1027, %v2251
        %2253 = vmatmul.f32.gmra.mxu0 %v1466
        %v2254 = vpop.f32.mrf.mxu0
        %v2255 = vadd.f32 %v1027, %v2254
        %2256 = vmatmul.f32.gmra.mxu0 %v1469
        %v2257 = vpop.f32.mrf.mxu0
        %v2258 = vadd.f32 %v1027, %v2257
        %2259 = vmatmul.f32.gmra.mxu0 %v1472
        %v2260 = vpop.f32.mrf.mxu0
        %v2261 = vadd.f32 %v1027, %v2260
        %2262 = vmatmul.f32.gmra.mxu0 %v1475
        %v2263 = vpop.f32.mrf.mxu0
        %v2264 = vadd.f32 %v1027, %v2263
        %2265 = vmatmul.f32.gmra.mxu0 %v1478
        %v2266 = vpop.f32.mrf.mxu0
        %v2267 = vadd.f32 %v1027, %v2266
        %2268 = vmatmul.f32.gmra.mxu0 %v1481
        %v2269 = vpop.f32.mrf.mxu0
        %v2270 = vadd.f32 %v1027, %v2269
        %2271 = vmatmul.f32.gmra.mxu0 %v1484
        %v2272 = vpop.f32.mrf.mxu0
        %v2273 = vadd.f32 %v1027, %v2272
        %2274 = vmatmul.f32.gmra.mxu0 %v1487
        %v2275 = vpop.f32.mrf.mxu0
        %v2276 = vadd.f32 %v1027, %v2275
        %2277 = vmatmul.f32.gmra.mxu0 %v1490
        %v2278 = vpop.f32.mrf.mxu0
        %v2279 = vadd.f32 %v1027, %v2278
        %2280 = vmatmul.f32.gmra.mxu0 %v1493
        %v2281 = vpop.f32.mrf.mxu0
        %v2282 = vadd.f32 %v1027, %v2281
        %2283 = vmatmul.f32.gmra.mxu0 %v1496
        %v2284 = vpop.f32.mrf.mxu0
        %v2285 = vadd.f32 %v1027, %v2284
        %2286 = vmatmul.f32.gmra.mxu0 %v1499
        %v2287 = vpop.f32.mrf.mxu0
        %v2288 = vadd.f32 %v1027, %v2287
        %2289 = vmatmul.f32.gmra.mxu0 %v1502
        %v2290 = vpop.f32.mrf.mxu0
        %v2291 = vadd.f32 %v1027, %v2290
        %2292 = vmatmul.f32.gmra.mxu0 %v1505
        %v2293 = vpop.f32.mrf.mxu0
        %v2294 = vadd.f32 %v1027, %v2293
        %2295 = vmatmul.f32.gmra.mxu0 %v1508
        %v2296 = vpop.f32.mrf.mxu0
        %v2297 = vadd.f32 %v1027, %v2296
        %2298 = vmatmul.f32.gmra.mxu0 %v1511
        %v2299 = vpop.f32.mrf.mxu0
        %v2300 = vadd.f32 %v1027, %v2299
        %2301 = vmatmul.f32.gmra.mxu0 %v1514
        %v2302 = vpop.f32.mrf.mxu0
        %v2303 = vadd.f32 %v1027, %v2302
        %2304 = vmatmul.f32.gmra.mxu0 %v1517
        %v2305 = vpop.f32.mrf.mxu0
        %v2306 = vadd.f32 %v1027, %v2305
        %2307 = vmatmul.f32.gmra.mxu0 %v1520
        %v2308 = vpop.f32.mrf.mxu0
        %v2309 = vadd.f32 %v1027, %v2308
        %2310 = vmatmul.f32.gmra.mxu0 %v1523
        %v2311 = vpop.f32.mrf.mxu0
        %v2312 = vadd.f32 %v1027, %v2311
        %2313 = vmatmul.f32.gmra.mxu0 %v1526
        %v2314 = vpop.f32.mrf.mxu0
        %v2315 = vadd.f32 %v1027, %v2314
        %2316 = vmatmul.f32.gmra.mxu0 %v1529
        %v2317 = vpop.f32.mrf.mxu0
        %v2318 = vadd.f32 %v1027, %v2317
        %2319 = vmatmul.f32.gmra.mxu0 %v1532
        %v2320 = vpop.f32.mrf.mxu0
        %v2321 = vadd.f32 %v1027, %v2320
        %2322 = vmatmul.f32.gmra.mxu0 %v1535
        %v2323 = vpop.f32.mrf.mxu0
        %v2324 = vadd.f32 %v1027, %v2323
        %2325 = vmatmul.f32.gmra.mxu0 %v1538
        %v2326 = vpop.f32.mrf.mxu0
        %v2327 = vadd.f32 %v1027, %v2326
        %2328 = vmatmul.f32.gmra.mxu0 %v1541
        %v2329 = vpop.f32.mrf.mxu0
        %v2330 = vadd.f32 %v1027, %v2329
        %2331 = vmatmul.f32.gmra.mxu0 %v1544
        %v2332 = vpop.f32.mrf.mxu0
        %v2333 = vadd.f32 %v1027, %v2332
        %2334 = vmatmul.f32.gmra.mxu0 %v1547
        %v2335 = vpop.f32.mrf.mxu0
        %v2336 = vadd.f32 %v1027, %v2335
        %2337 = vmatmul.f32.gmra.mxu0 %v1550
        %v2338 = vpop.f32.mrf.mxu0
        %v2339 = vadd.f32 %v1027, %v2338
        %2340 = vmatmul.f32.gmra.mxu0 %v1553
        %v2341 = vpop.f32.mrf.mxu0
        %v2342 = vadd.f32 %v1027, %v2341
        %2343 = vmatmul.f32.gmra.mxu0 %v1556
        %v2344 = vpop.f32.mrf.mxu0
        %v2345 = vadd.f32 %v1027, %v2344
        %2346 = vmatmul.f32.gmra.mxu0 %v1559
        %v2347 = vpop.f32.mrf.mxu0
        %v2348 = vadd.f32 %v1027, %v2347
        %2349 = vmatmul.f32.gmra.mxu0 %v1562
        %v2350 = vpop.f32.mrf.mxu0
        %v2351 = vadd.f32 %v1027, %v2350
        %2352 = vmatmul.f32.gmra.mxu0 %v1565
        %v2353 = vpop.f32.mrf.mxu0
        %v2354 = vadd.f32 %v1027, %v2353
        %2355 = vmatmul.f32.gmra.mxu0 %v1568
        %v2356 = vpop.f32.mrf.mxu0
        %v2357 = vadd.f32 %v1027, %v2356
        %2358 = vmatmul.f32.gmra.mxu0 %v1571
        %v2359 = vpop.f32.mrf.mxu0
        %v2360 = vadd.f32 %v1027, %v2359
        %2361 = vmatmul.f32.gmra.mxu0 %v1574
        %v2362 = vpop.f32.mrf.mxu0
        %v2363 = vadd.f32 %v1027, %v2362
        %2364 = vmatmul.f32.gmra.mxu0 %v1577
        %v2365 = vpop.f32.mrf.mxu0
        %v2366 = vadd.f32 %v1027, %v2365
        %2367 = vmatmul.f32.gmra.mxu0 %v1580
        %v2368 = vpop.f32.mrf.mxu0
        %v2369 = vadd.f32 %v1027, %v2368
        %2370 = vmatmul.f32.gmra.mxu0 %v1583
        %v2371 = vpop.f32.mrf.mxu0
        %v2372 = vadd.f32 %v1027, %v2371
        %2373 = vmatmul.f32.gmra.mxu0 %v1586
        %v2374 = vpop.f32.mrf.mxu0
        %v2375 = vadd.f32 %v1027, %v2374
        %2376 = vmatmul.f32.gmra.mxu0 %v1589
        %v2377 = vpop.f32.mrf.mxu0
        %v2378 = vadd.f32 %v1027, %v2377
        %2379 = vmatmul.f32.gmra.mxu0 %v1592
        %v2380 = vpop.f32.mrf.mxu0
        %v2381 = vadd.f32 %v1027, %v2380
        %2382 = vmatmul.f32.gmra.mxu0 %v1595
        %v2383 = vpop.f32.mrf.mxu0
        %v2384 = vadd.f32 %v1027, %v2383
        %2385 = vmatmul.f32.gmra.mxu0 %v1598
        %v2386 = vpop.f32.mrf.mxu0
        %v2387 = vadd.f32 %v1027, %v2386
        %2388 = vmatmul.f32.gmra.mxu0 %v1601
        %v2389 = vpop.f32.mrf.mxu0
        %v2390 = vadd.f32 %v1027, %v2389
        %2391 = vmatmul.f32.gmra.mxu0 %v1604
        %v2392 = vpop.f32.mrf.mxu0
        %v2393 = vadd.f32 %v1027, %v2392
        %2394 = vmatmul.f32.gmra.mxu0 %v1607
        %v2395 = vpop.f32.mrf.mxu0
        %v2396 = vadd.f32 %v1027, %v2395
        %2397 = vmatmul.f32.gmra.mxu0 %v1610
        %v2398 = vpop.f32.mrf.mxu0
        %v2399 = vadd.f32 %v1027, %v2398
        %2400 = vmatmul.f32.gmra.mxu0 %v1613
        %v2401 = vpop.f32.mrf.mxu0
        %v2402 = vadd.f32 %v1027, %v2401
        %2403 = vmatmul.f32.gmra.mxu0 %v1616
        %v2404 = vpop.f32.mrf.mxu0
        %v2405 = vadd.f32 %v1027, %v2404
        %2406 = vmatmul.f32.gmra.mxu0 %v1619
        %v2407 = vpop.f32.mrf.mxu0
        %v2408 = vadd.f32 %v1027, %v2407
        %2409 = vmatmul.f32.gmra.mxu0 %v1622
        %v2410 = vpop.f32.mrf.mxu0
        %v2411 = vadd.f32 %v1027, %v2410
        %2412 = vmatmul.f32.gmra.mxu0 %v1625
        %v2413 = vpop.f32.mrf.mxu0
        %v2414 = vadd.f32 %v1027, %v2413
        %2415 = vmatmul.f32.gmra.mxu0 %v1628
        %v2416 = vpop.f32.mrf.mxu0
        %v2417 = vadd.f32 %v1027, %v2416
        %2418 = vmatmul.f32.gmra.mxu0 %v1631
        %v2419 = vpop.f32.mrf.mxu0
        %v2420 = vadd.f32 %v1027, %v2419
        %2421 = vmatmul.f32.gmra.mxu0 %v1634
        %v2422 = vpop.f32.mrf.mxu0
        %v2423 = vadd.f32 %v1027, %v2422
        %2424 = vmatmul.f32.gmra.mxu0 %v1637
        %v2425 = vpop.f32.mrf.mxu0
        %v2426 = vadd.f32 %v1027, %v2425
        %2427 = vmatmul.f32.gmra.mxu0 %v1640
        %v2428 = vpop.f32.mrf.mxu0
        %v2429 = vadd.f32 %v1027, %v2428
        %2430 = vmatmul.f32.gmra.mxu0 %v1643
        %v2431 = vpop.f32.mrf.mxu0
        %v2432 = vadd.f32 %v1027, %v2431
        %2433 = vmatmul.f32.gmra.mxu0 %v1646
        %v2434 = vpop.f32.mrf.mxu0
        %v2435 = vadd.f32 %v1027, %v2434
        %2436 = vmatmul.f32.gmra.mxu0 %v1649
        %v2437 = vpop.f32.mrf.mxu0
        %v2438 = vadd.f32 %v1027, %v2437
        %2439 = vmatmul.f32.gmra.mxu0 %v1652
        %v2440 = vpop.f32.mrf.mxu0
        %v2441 = vadd.f32 %v1027, %v2440
        %2442 = vmatmul.f32.gmra.mxu0 %v1655
        %v2443 = vpop.f32.mrf.mxu0
        %v2444 = vadd.f32 %v1027, %v2443
        %2445 = vmatmul.f32.gmra.mxu0 %v1658
        %v2446 = vpop.f32.mrf.mxu0
        %v2447 = vadd.f32 %v1027, %v2446
        %2448 = vmatmul.f32.gmra.mxu0 %v1661
        %v2449 = vpop.f32.mrf.mxu0
        %v2450 = vadd.f32 %v1027, %v2449
        %2451 = vmatmul.f32.gmra.mxu0 %v1664
        %v2452 = vpop.f32.mrf.mxu0
        %v2453 = vadd.f32 %v1027, %v2452
        %2454 = vmatmul.f32.gmra.mxu0 %v1667
        %v2455 = vpop.f32.mrf.mxu0
        %v2456 = vadd.f32 %v1027, %v2455
        %2457 = vmatmul.f32.gmra.mxu0 %v1670
        %v2458 = vpop.f32.mrf.mxu0
        %v2459 = vadd.f32 %v1027, %v2458
        %2460 = vmatmul.f32.gmra.mxu0 %v1673
        %v2461 = vpop.f32.mrf.mxu0
        %v2462 = vadd.f32 %v1027, %v2461
        %2463 = vmatmul.f32.gmra.mxu0 %v1676
        %v2464 = vpop.f32.mrf.mxu0
        %v2465 = vadd.f32 %v1027, %v2464
        %2466 = vmatmul.f32.gmra.mxu0 %v1679
        %v2467 = vpop.f32.mrf.mxu0
        %v2468 = vadd.f32 %v1027, %v2467
        %2469 = vmatmul.f32.gmra.mxu0 %v1682
        %v2470 = vpop.f32.mrf.mxu0
        %v2471 = vadd.f32 %v1027, %v2470
        %2472 = vmatmul.f32.gmra.mxu0 %v1685
        %v2473 = vpop.f32.mrf.mxu0
        %v2474 = vadd.f32 %v1027, %v2473
        %2475 = vmatmul.f32.gmra.mxu0 %v1688
        %v2476 = vpop.f32.mrf.mxu0
        %v2477 = vadd.f32 %v1027, %v2476
        %2478 = vmatmul.f32.gmra.mxu0 %v1691
        %v2479 = vpop.f32.mrf.mxu0
        %v2480 = vadd.f32 %v1027, %v2479
        %2481 = vmatmul.f32.gmra.mxu0 %v1694
        %v2482 = vpop.f32.mrf.mxu0
        %v2483 = vadd.f32 %v1027, %v2482
        %2484 = vmatmul.f32.gmra.mxu0 %v1697
        %v2485 = vpop.f32.mrf.mxu0
        %v2486 = vadd.f32 %v1027, %v2485
        %2487 = vmatmul.f32.gmra.mxu0 %v1700
        %v2488 = vpop.f32.mrf.mxu0
        %v2489 = vadd.f32 %v1027, %v2488
        %2490 = vmatmul.f32.gmra.mxu0 %v1703
        %v2491 = vpop.f32.mrf.mxu0
        %v2492 = vadd.f32 %v1027, %v2491
        %2493 = vmatmul.f32.gmra.mxu0 %v1706
        %v2494 = vpop.f32.mrf.mxu0
        %v2495 = vadd.f32 %v1027, %v2494
        %2496 = vmatmul.f32.gmra.mxu0 %v1709
        %v2497 = vpop.f32.mrf.mxu0
        %v2498 = vadd.f32 %v1027, %v2497
        %2499 = vmatmul.f32.gmra.mxu0 %v1712
        %v2500 = vpop.f32.mrf.mxu0
        %v2501 = vadd.f32 %v1027, %v2500
        %2502 = vmatmul.f32.gmra.mxu0 %v1715
        %v2503 = vpop.f32.mrf.mxu0
        %v2504 = vadd.f32 %v1027, %v2503
        %2505 = vmatmul.f32.gmra.mxu0 %v1718
        %v2506 = vpop.f32.mrf.mxu0
        %v2507 = vadd.f32 %v1027, %v2506
        %2508 = vmatmul.f32.gmra.mxu0 %v1721
        %v2509 = vpop.f32.mrf.mxu0
        %v2510 = vadd.f32 %v1027, %v2509
        %2511 = vmatmul.f32.gmra.mxu0 %v1724
        %v2512 = vpop.f32.mrf.mxu0
        %v2513 = vadd.f32 %v1027, %v2512
        %2514 = vmatmul.f32.gmra.mxu0 %v1727
        %v2515 = vpop.f32.mrf.mxu0
        %v2516 = vadd.f32 %v1027, %v2515
        %2517 = vmatmul.f32.gmra.mxu0 %v1730
        %v2518 = vpop.f32.mrf.mxu0
        %v2519 = vadd.f32 %v1027, %v2518
        %2520 = vmatmul.f32.gmra.mxu0 %v1733
        %v2521 = vpop.f32.mrf.mxu0
        %v2522 = vadd.f32 %v1027, %v2521
        %2523 = vmatmul.f32.gmra.mxu0 %v1736
        %v2524 = vpop.f32.mrf.mxu0
        %v2525 = vadd.f32 %v1027, %v2524
        %2526 = vmatmul.f32.gmra.mxu0 %v1739
        %v2527 = vpop.f32.mrf.mxu0
        %v2528 = vadd.f32 %v1027, %v2527
        %2529 = vmatmul.f32.gmra.mxu0 %v1742
        %v2530 = vpop.f32.mrf.mxu0
        %v2531 = vadd.f32 %v1027, %v2530
        %2532 = vmatmul.f32.gmra.mxu0 %v1745
        %v2533 = vpop.f32.mrf.mxu0
        %v2534 = vadd.f32 %v1027, %v2533
        %2535 = vmatmul.f32.gmra.mxu0 %v1748
        %v2536 = vpop.f32.mrf.mxu0
        %v2537 = vadd.f32 %v1027, %v2536
        %2538 = vmatmul.f32.gmra.mxu0 %v1751
        %v2539 = vpop.f32.mrf.mxu0
        %v2540 = vadd.f32 %v1027, %v2539
        %2541 = vmatmul.f32.gmra.mxu0 %v1754
        %v2542 = vpop.f32.mrf.mxu0
        %v2543 = vadd.f32 %v1027, %v2542
        %2544 = vmatmul.f32.gmra.mxu0 %v1757
        %v2545 = vpop.f32.mrf.mxu0
        %v2546 = vadd.f32 %v1027, %v2545
        %2547 = vmatmul.f32.gmra.mxu0 %v1760
        %v2548 = vpop.f32.mrf.mxu0
        %v2549 = vadd.f32 %v1027, %v2548
        %2550 = vmatmul.f32.gmra.mxu0 %v1763
        %v2551 = vpop.f32.mrf.mxu0
        %v2552 = vadd.f32 %v1027, %v2551
        %2553 = vmatmul.f32.gmra.mxu0 %v1766
        %v2554 = vpop.f32.mrf.mxu0
        %v2555 = vadd.f32 %v1027, %v2554
        %2556 = vmatmul.f32.gmra.mxu0 %v1769
        %v2557 = vpop.f32.mrf.mxu0
        %v2558 = vadd.f32 %v1027, %v2557
        %2559 = vmatmul.f32.gmra.mxu0 %v1772
        %v2560 = vpop.f32.mrf.mxu0
        %v2561 = vadd.f32 %v1027, %v2560
        %2562 = vmatmul.f32.gmra.mxu0 %v1775
        %v2563 = vpop.f32.mrf.mxu0
        %v2564 = vadd.f32 %v1027, %v2563
        %2565 = vmatmul.f32.gmra.mxu0 %v1778
        %v2566 = vpop.f32.mrf.mxu0
        %v2567 = vadd.f32 %v1027, %v2566
        %2568 = vmatmul.f32.gmra.mxu0 %v1781
        %v2569 = vpop.f32.mrf.mxu0
        %v2570 = vadd.f32 %v1027, %v2569
        %2571 = vmatmul.f32.gmra.mxu0 %v1784
        %v2572 = vpop.f32.mrf.mxu0
        %v2573 = vadd.f32 %v1027, %v2572
        %2574 = vmatmul.f32.gmra.mxu0 %v1787
        %v2575 = vpop.f32.mrf.mxu0
        %v2576 = vadd.f32 %v1027, %v2575
        %2577 = vmatmul.f32.gmra.mxu0 %v1790
        %v2578 = vpop.f32.mrf.mxu0
        %v2579 = vadd.f32 %v1027, %v2578
        %2580 = vmatmul.f32.gmra.mxu0 %v1793
        %v2581 = vpop.f32.mrf.mxu0
        %v2582 = vadd.f32 %v1027, %v2581
        %2583 = vmatmul.f32.gmra.mxu0 %v1796
        %v2584 = vpop.f32.mrf.mxu0
        %v2585 = vadd.f32 %v1027, %v2584
        %2586 = vdwg.mxu0
        %v2587 = vmax.f32 %v1820, 0.0
        %v2588 = vmax.f32 %v1823, 0.0
        %v2589 = vmax.f32 %v1826, 0.0
        %v2590 = vmax.f32 %v1829, 0.0
        %v2591 = vmax.f32 %v1832, 0.0
        %v2592 = vmax.f32 %v1835, 0.0
        %v2593 = vmax.f32 %v1838, 0.0
        %v2594 = vmax.f32 %v1841, 0.0
        %v2595 = vmax.f32 %v1844, 0.0
        %v2596 = vmax.f32 %v1847, 0.0
        %v2597 = vmax.f32 %v1850, 0.0
        %v2598 = vmax.f32 %v1853, 0.0
        %v2599 = vmax.f32 %v1856, 0.0
        %v2600 = vmax.f32 %v1859, 0.0
        %v2601 = vmax.f32 %v1862, 0.0
        %v2602 = vmax.f32 %v1865, 0.0
        %v2603 = vmax.f32 %v1868, 0.0
        %v2604 = vmax.f32 %v1871, 0.0
        %v2605 = vmax.f32 %v1874, 0.0
        %v2606 = vmax.f32 %v1877, 0.0
        %v2607 = vmax.f32 %v1880, 0.0
        %v2608 = vmax.f32 %v1883, 0.0
        %v2609 = vmax.f32 %v1886, 0.0
        %v2610 = vmax.f32 %v1889, 0.0
        %v2611 = vmax.f32 %v1892, 0.0
        %v2612 = vmax.f32 %v1895, 0.0
        %v2613 = vmax.f32 %v1898, 0.0
        %v2614 = vmax.f32 %v1901, 0.0
        %v2615 = vmax.f32 %v1904, 0.0
        %v2616 = vmax.f32 %v1907, 0.0
        %v2617 = vmax.f32 %v1910, 0.0
        %v2618 = vmax.f32 %v1913, 0.0
        %v2619 = vmax.f32 %v1916, 0.0
        %v2620 = vmax.f32 %v1919, 0.0
        %v2621 = vmax.f32 %v1922, 0.0
        %v2622 = vmax.f32 %v1925, 0.0
        %v2623 = vmax.f32 %v1928, 0.0
        %v2624 = vmax.f32 %v1931, 0.0
        %v2625 = vmax.f32 %v1934, 0.0
        %v2626 = vmax.f32 %v1937, 0.0
        %v2627 = vmax.f32 %v1940, 0.0
        %v2628 = vmax.f32 %v1943, 0.0
        %v2629 = vmax.f32 %v1946, 0.0
        %v2630 = vmax.f32 %v1949, 0.0
        %v2631 = vmax.f32 %v1952, 0.0
        %v2632 = vmax.f32 %v1955, 0.0
        %v2633 = vmax.f32 %v1958, 0.0
        %v2634 = vmax.f32 %v1961, 0.0
        %v2635 = vmax.f32 %v1964, 0.0
        %v2636 = vmax.f32 %v1967, 0.0
        %v2637 = vmax.f32 %v1970, 0.0
        %v2638 = vmax.f32 %v1973, 0.0
        %v2639 = vmax.f32 %v1976, 0.0
        %v2640 = vmax.f32 %v1979, 0.0
        %v2641 = vmax.f32 %v1982, 0.0
        %v2642 = vmax.f32 %v1985, 0.0
        %v2643 = vmax.f32 %v1988, 0.0
        %v2644 = vmax.f32 %v1991, 0.0
        %v2645 = vmax.f32 %v1994, 0.0
        %v2646 = vmax.f32 %v1997, 0.0
        %v2647 = vmax.f32 %v2000, 0.0
        %v2648 = vmax.f32 %v2003, 0.0
        %v2649 = vmax.f32 %v2006, 0.0
        %v2650 = vmax.f32 %v2009, 0.0
        %v2651 = vmax.f32 %v2012, 0.0
        %v2652 = vmax.f32 %v2015, 0.0
        %v2653 = vmax.f32 %v2018, 0.0
        %v2654 = vmax.f32 %v2021, 0.0
        %v2655 = vmax.f32 %v2024, 0.0
        %v2656 = vmax.f32 %v2027, 0.0
        %v2657 = vmax.f32 %v2030, 0.0
        %v2658 = vmax.f32 %v2033, 0.0
        %v2659 = vmax.f32 %v2036, 0.0
        %v2660 = vmax.f32 %v2039, 0.0
        %v2661 = vmax.f32 %v2042, 0.0
        %v2662 = vmax.f32 %v2045, 0.0
        %v2663 = vmax.f32 %v2048, 0.0
        %v2664 = vmax.f32 %v2051, 0.0
        %v2665 = vmax.f32 %v2054, 0.0
        %v2666 = vmax.f32 %v2057, 0.0
        %v2667 = vmax.f32 %v2060, 0.0
        %v2668 = vmax.f32 %v2063, 0.0
        %v2669 = vmax.f32 %v2066, 0.0
        %v2670 = vmax.f32 %v2069, 0.0
        %v2671 = vmax.f32 %v2072, 0.0
        %v2672 = vmax.f32 %v2075, 0.0
        %v2673 = vmax.f32 %v2078, 0.0
        %v2674 = vmax.f32 %v2081, 0.0
        %v2675 = vmax.f32 %v2084, 0.0
        %v2676 = vmax.f32 %v2087, 0.0
        %v2677 = vmax.f32 %v2090, 0.0
        %v2678 = vmax.f32 %v2093, 0.0
        %v2679 = vmax.f32 %v2096, 0.0
        %v2680 = vmax.f32 %v2099, 0.0
        %v2681 = vmax.f32 %v2102, 0.0
        %v2682 = vmax.f32 %v2105, 0.0
        %v2683 = vmax.f32 %v2108, 0.0
        %v2684 = vmax.f32 %v2111, 0.0
        %v2685 = vmax.f32 %v2114, 0.0
        %v2686 = vmax.f32 %v2117, 0.0
        %v2687 = vmax.f32 %v2120, 0.0
        %v2688 = vmax.f32 %v2123, 0.0
        %v2689 = vmax.f32 %v2126, 0.0
        %v2690 = vmax.f32 %v2129, 0.0
        %v2691 = vmax.f32 %v2132, 0.0
        %v2692 = vmax.f32 %v2135, 0.0
        %v2693 = vmax.f32 %v2138, 0.0
        %v2694 = vmax.f32 %v2141, 0.0
        %v2695 = vmax.f32 %v2144, 0.0
        %v2696 = vmax.f32 %v2147, 0.0
        %v2697 = vmax.f32 %v2150, 0.0
        %v2698 = vmax.f32 %v2153, 0.0
        %v2699 = vmax.f32 %v2156, 0.0
        %v2700 = vmax.f32 %v2159, 0.0
        %v2701 = vmax.f32 %v2162, 0.0
        %v2702 = vmax.f32 %v2165, 0.0
        %v2703 = vmax.f32 %v2168, 0.0
        %v2704 = vmax.f32 %v2171, 0.0
        %v2705 = vmax.f32 %v2174, 0.0
        %v2706 = vmax.f32 %v2177, 0.0
        %v2707 = vmax.f32 %v2180, 0.0
        %v2708 = vmax.f32 %v2183, 0.0
        %v2709 = vmax.f32 %v2186, 0.0
        %v2710 = vmax.f32 %v2189, 0.0
        %v2711 = vmax.f32 %v2192, 0.0
        %v2712 = vmax.f32 %v2195, 0.0
        %v2713 = vmax.f32 %v2198, 0.0
        %v2714 = vmax.f32 %v2201, 0.0
        %v2715 = vmax.f32 %v2204, 0.0
        %v2716 = vmax.f32 %v2207, 0.0
        %v2717 = vmax.f32 %v2210, 0.0
        %v2718 = vmax.f32 %v2213, 0.0
        %v2719 = vmax.f32 %v2216, 0.0
        %v2720 = vmax.f32 %v2219, 0.0
        %v2721 = vmax.f32 %v2222, 0.0
        %v2722 = vmax.f32 %v2225, 0.0
        %v2723 = vmax.f32 %v2228, 0.0
        %v2724 = vmax.f32 %v2231, 0.0
        %v2725 = vmax.f32 %v2234, 0.0
        %v2726 = vmax.f32 %v2237, 0.0
        %v2727 = vmax.f32 %v2240, 0.0
        %v2728 = vmax.f32 %v2243, 0.0
        %v2729 = vmax.f32 %v2246, 0.0
        %v2730 = vmax.f32 %v2249, 0.0
        %v2731 = vmax.f32 %v2252, 0.0
        %v2732 = vmax.f32 %v2255, 0.0
        %v2733 = vmax.f32 %v2258, 0.0
        %v2734 = vmax.f32 %v2261, 0.0
        %v2735 = vmax.f32 %v2264, 0.0
        %v2736 = vmax.f32 %v2267, 0.0
        %v2737 = vmax.f32 %v2270, 0.0
        %v2738 = vmax.f32 %v2273, 0.0
        %v2739 = vmax.f32 %v2276, 0.0
        %v2740 = vmax.f32 %v2279, 0.0
        %v2741 = vmax.f32 %v2282, 0.0
        %v2742 = vmax.f32 %v2285, 0.0
        %v2743 = vmax.f32 %v2288, 0.0
        %v2744 = vmax.f32 %v2291, 0.0
        %v2745 = vmax.f32 %v2294, 0.0
        %v2746 = vmax.f32 %v2297, 0.0
        %v2747 = vmax.f32 %v2300, 0.0
        %v2748 = vmax.f32 %v2303, 0.0
        %v2749 = vmax.f32 %v2306, 0.0
        %v2750 = vmax.f32 %v2309, 0.0
        %v2751 = vmax.f32 %v2312, 0.0
        %v2752 = vmax.f32 %v2315, 0.0
        %v2753 = vmax.f32 %v2318, 0.0
        %v2754 = vmax.f32 %v2321, 0.0
        %v2755 = vmax.f32 %v2324, 0.0
        %v2756 = vmax.f32 %v2327, 0.0
        %v2757 = vmax.f32 %v2330, 0.0
        %v2758 = vmax.f32 %v2333, 0.0
        %v2759 = vmax.f32 %v2336, 0.0
        %v2760 = vmax.f32 %v2339, 0.0
        %v2761 = vmax.f32 %v2342, 0.0
        %v2762 = vmax.f32 %v2345, 0.0
        %v2763 = vmax.f32 %v2348, 0.0
        %v2764 = vmax.f32 %v2351, 0.0
        %v2765 = vmax.f32 %v2354, 0.0
        %v2766 = vmax.f32 %v2357, 0.0
        %v2767 = vmax.f32 %v2360, 0.0
        %v2768 = vmax.f32 %v2363, 0.0
        %v2769 = vmax.f32 %v2366, 0.0
        %v2770 = vmax.f32 %v2369, 0.0
        %v2771 = vmax.f32 %v2372, 0.0
        %v2772 = vmax.f32 %v2375, 0.0
        %v2773 = vmax.f32 %v2378, 0.0
        %v2774 = vmax.f32 %v2381, 0.0
        %v2775 = vmax.f32 %v2384, 0.0
        %v2776 = vmax.f32 %v2387, 0.0
        %v2777 = vmax.f32 %v2390, 0.0
        %v2778 = vmax.f32 %v2393, 0.0
        %v2779 = vmax.f32 %v2396, 0.0
        %v2780 = vmax.f32 %v2399, 0.0
        %v2781 = vmax.f32 %v2402, 0.0
        %v2782 = vmax.f32 %v2405, 0.0
        %v2783 = vmax.f32 %v2408, 0.0
        %v2784 = vmax.f32 %v2411, 0.0
        %v2785 = vmax.f32 %v2414, 0.0
        %v2786 = vmax.f32 %v2417, 0.0
        %v2787 = vmax.f32 %v2420, 0.0
        %v2788 = vmax.f32 %v2423, 0.0
        %v2789 = vmax.f32 %v2426, 0.0
        %v2790 = vmax.f32 %v2429, 0.0
        %v2791 = vmax.f32 %v2432, 0.0
        %v2792 = vmax.f32 %v2435, 0.0
        %v2793 = vmax.f32 %v2438, 0.0
        %v2794 = vmax.f32 %v2441, 0.0
        %v2795 = vmax.f32 %v2444, 0.0
        %v2796 = vmax.f32 %v2447, 0.0
        %v2797 = vmax.f32 %v2450, 0.0
        %v2798 = vmax.f32 %v2453, 0.0
        %v2799 = vmax.f32 %v2456, 0.0
        %v2800 = vmax.f32 %v2459, 0.0
        %v2801 = vmax.f32 %v2462, 0.0
        %v2802 = vmax.f32 %v2465, 0.0
        %v2803 = vmax.f32 %v2468, 0.0
        %v2804 = vmax.f32 %v2471, 0.0
        %v2805 = vmax.f32 %v2474, 0.0
        %v2806 = vmax.f32 %v2477, 0.0
        %v2807 = vmax.f32 %v2480, 0.0
        %v2808 = vmax.f32 %v2483, 0.0
        %v2809 = vmax.f32 %v2486, 0.0
        %v2810 = vmax.f32 %v2489, 0.0
        %v2811 = vmax.f32 %v2492, 0.0
        %v2812 = vmax.f32 %v2495, 0.0
        %v2813 = vmax.f32 %v2498, 0.0
        %v2814 = vmax.f32 %v2501, 0.0
        %v2815 = vmax.f32 %v2504, 0.0
        %v2816 = vmax.f32 %v2507, 0.0
        %v2817 = vmax.f32 %v2510, 0.0
        %v2818 = vmax.f32 %v2513, 0.0
        %v2819 = vmax.f32 %v2516, 0.0
        %v2820 = vmax.f32 %v2519, 0.0
        %v2821 = vmax.f32 %v2522, 0.0
        %v2822 = vmax.f32 %v2525, 0.0
        %v2823 = vmax.f32 %v2528, 0.0
        %v2824 = vmax.f32 %v2531, 0.0
        %v2825 = vmax.f32 %v2534, 0.0
        %v2826 = vmax.f32 %v2537, 0.0
        %v2827 = vmax.f32 %v2540, 0.0
        %v2828 = vmax.f32 %v2543, 0.0
        %v2829 = vmax.f32 %v2546, 0.0
        %v2830 = vmax.f32 %v2549, 0.0
        %v2831 = vmax.f32 %v2552, 0.0
        %v2832 = vmax.f32 %v2555, 0.0
        %v2833 = vmax.f32 %v2558, 0.0
        %v2834 = vmax.f32 %v2561, 0.0
        %v2835 = vmax.f32 %v2564, 0.0
        %v2836 = vmax.f32 %v2567, 0.0
        %v2837 = vmax.f32 %v2570, 0.0
        %v2838 = vmax.f32 %v2573, 0.0
        %v2839 = vmax.f32 %v2576, 0.0
        %v2840 = vmax.f32 %v2579, 0.0
        %v2841 = vmax.f32 %v2582, 0.0
        %v2842 = vmax.f32 %v2585, 0.0
        %v2843 = vld [vmem:[#allocation2] sm:$0xff]
        %v2844 = vld [vmem:[#allocation2 + $0x8] sm:$0xff]
        %v2845 = vld [vmem:[#allocation2 + $0x10] sm:$0xff]
        %v2846 = vld [vmem:[#allocation2 + $0x18] sm:$0xff]
        %v2847 = vld [vmem:[%s634] sm:$0xff]
        %v2848 = vld [vmem:[%s634 + $0x8] sm:$0xff]
        %v2849 = vld [vmem:[%s634 + $0x10] sm:$0xff]
        %v2850 = vld [vmem:[%s634 + $0x18] sm:$0xff]
        %v2851 = vld [vmem:[%s634 + $0x20] sm:$0xff]
        %v2852 = vld [vmem:[%s634 + $0x28] sm:$0xff]
        %v2853 = vld [vmem:[%s634 + $0x30] sm:$0xff]
        %v2854 = vld [vmem:[%s634 + $0x38] sm:$0xff]
        %v2855 = vld [vmem:[%s634 + $0x40] sm:$0xff]
        %v2856 = vld [vmem:[%s634 + $0x48] sm:$0xff]
        %v2857 = vld [vmem:[%s634 + $0x50] sm:$0xff]
        %v2858 = vld [vmem:[%s634 + $0x58] sm:$0xff]
        %v2859 = vld [vmem:[%s634 + $0x60] sm:$0xff]
        %v2860 = vld [vmem:[%s634 + $0x68] sm:$0xff]
        %v2861 = vld [vmem:[%s634 + $0x70] sm:$0xff]
        %v2862 = vld [vmem:[%s634 + $0x78] sm:$0xff]
        %v2863 = vld [vmem:[%s634 + $0x80] sm:$0xff]
        %v2864 = vld [vmem:[%s634 + $0x88] sm:$0xff]
        %v2865 = vld [vmem:[%s634 + $0x90] sm:$0xff]
        %v2866 = vld [vmem:[%s634 + $0x98] sm:$0xff]
        %v2867 = vld [vmem:[%s634 + $0xa0] sm:$0xff]
        %v2868 = vld [vmem:[%s634 + $0xa8] sm:$0xff]
        %v2869 = vld [vmem:[%s634 + $0xb0] sm:$0xff]
        %v2870 = vld [vmem:[%s634 + $0xb8] sm:$0xff]
        %v2871 = vld [vmem:[%s634 + $0xc0] sm:$0xff]
        %v2872 = vld [vmem:[%s634 + $0xc8] sm:$0xff]
        %v2873 = vld [vmem:[%s634 + $0xd0] sm:$0xff]
        %v2874 = vld [vmem:[%s634 + $0xd8] sm:$0xff]
        %v2875 = vld [vmem:[%s634 + $0xe0] sm:$0xff]
        %v2876 = vld [vmem:[%s634 + $0xe8] sm:$0xff]
        %v2877 = vld [vmem:[%s634 + $0xf0] sm:$0xff]
        %v2878 = vld [vmem:[%s634 + $0xf8] sm:$0xff]
        %v2879 = vld [vmem:[%s634 + $0x100] sm:$0xff]
        %v2880 = vld [vmem:[%s634 + $0x108] sm:$0xff]
        %v2881 = vld [vmem:[%s634 + $0x110] sm:$0xff]
        %v2882 = vld [vmem:[%s634 + $0x118] sm:$0xff]
        %v2883 = vld [vmem:[%s634 + $0x120] sm:$0xff]
        %v2884 = vld [vmem:[%s634 + $0x128] sm:$0xff]
        %v2885 = vld [vmem:[%s634 + $0x130] sm:$0xff]
        %v2886 = vld [vmem:[%s634 + $0x138] sm:$0xff]
        %v2887 = vld [vmem:[%s634 + $0x140] sm:$0xff]
        %v2888 = vld [vmem:[%s634 + $0x148] sm:$0xff]
        %v2889 = vld [vmem:[%s634 + $0x150] sm:$0xff]
        %v2890 = vld [vmem:[%s634 + $0x158] sm:$0xff]
        %v2891 = vld [vmem:[%s634 + $0x160] sm:$0xff]
        %v2892 = vld [vmem:[%s634 + $0x168] sm:$0xff]
        %v2893 = vld [vmem:[%s634 + $0x170] sm:$0xff]
        %v2894 = vld [vmem:[%s634 + $0x178] sm:$0xff]
        %v2895 = vld [vmem:[%s634 + $0x180] sm:$0xff]
        %v2896 = vld [vmem:[%s634 + $0x188] sm:$0xff]
        %v2897 = vld [vmem:[%s634 + $0x190] sm:$0xff]
        %v2898 = vld [vmem:[%s634 + $0x198] sm:$0xff]
        %v2899 = vld [vmem:[%s634 + $0x1a0] sm:$0xff]
        %v2900 = vld [vmem:[%s634 + $0x1a8] sm:$0xff]
        %v2901 = vld [vmem:[%s634 + $0x1b0] sm:$0xff]
        %v2902 = vld [vmem:[%s634 + $0x1b8] sm:$0xff]
        %v2903 = vld [vmem:[%s634 + $0x1c0] sm:$0xff]
        %v2904 = vld [vmem:[%s634 + $0x1c8] sm:$0xff]
        %v2905 = vld [vmem:[%s634 + $0x1d0] sm:$0xff]
        %v2906 = vld [vmem:[%s634 + $0x1d8] sm:$0xff]
        %v2907 = vld [vmem:[%s634 + $0x1e0] sm:$0xff]
        %v2908 = vld [vmem:[%s634 + $0x1e8] sm:$0xff]
        %v2909 = vld [vmem:[%s634 + $0x1f0] sm:$0xff]
        %v2910 = vld [vmem:[%s634 + $0x1f8] sm:$0xff]
        %2911 = vmatpush.msra.mxu0 %v2602
        %2912 = vmatpush.msra.mxu0 %v2601
        %2913 = vmatpush.msra.mxu0 %v2600
        %2914 = vmatpush.msra.mxu0 %v2599
        %2915 = vmatpush.msra.mxu0 %v2598
        %2916 = vmatpush.msra.mxu0 %v2597
        %2917 = vmatpush.msra.mxu0 %v2596
        %2918 = vmatpush.msra.mxu0 %v2595
        %2919 = vmatpush.msra.mxu0 %v2594
        %2920 = vmatpush.msra.mxu0 %v2593
        %2921 = vmatpush.msra.mxu0 %v2592
        %2922 = vmatpush.msra.mxu0 %v2591
        %2923 = vmatpush.msra.mxu0 %v2590
        %2924 = vmatpush.msra.mxu0 %v2589
        %2925 = vmatpush.msra.mxu0 %v2588
        %2926 = vmatpush.msra.mxu0 %v2587
        %2927 = vmatmul.f32.gmra.mxu0 %v2847
        %v2928 = vpop.f32.mrf.mxu0
        %v2929 = vadd.f32 0.0, %v2928
        %2930 = vmatmul.f32.gmra.mxu0 %v2863
        %v2931 = vpop.f32.mrf.mxu0
        %v2932 = vadd.f32 0.0, %v2931
        %2933 = vmatmul.f32.gmra.mxu0 %v2879
        %v2934 = vpop.f32.mrf.mxu0
        %v2935 = vadd.f32 0.0, %v2934
        %2936 = vmatmul.f32.gmra.mxu0 %v2895
        %v2937 = vpop.f32.mrf.mxu0
        %v2938 = vadd.f32 0.0, %v2937
        %2939 = vdwg.mxu0
        %2940 = vmatpush.msra.mxu0 %v2618
        %2941 = vmatpush.msra.mxu0 %v2617
        %2942 = vmatpush.msra.mxu0 %v2616
        %2943 = vmatpush.msra.mxu0 %v2615
        %2944 = vmatpush.msra.mxu0 %v2614
        %2945 = vmatpush.msra.mxu0 %v2613
        %2946 = vmatpush.msra.mxu0 %v2612
        %2947 = vmatpush.msra.mxu0 %v2611
        %2948 = vmatpush.msra.mxu0 %v2610
        %2949 = vmatpush.msra.mxu0 %v2609
        %2950 = vmatpush.msra.mxu0 %v2608
        %2951 = vmatpush.msra.mxu0 %v2607
        %2952 = vmatpush.msra.mxu0 %v2606
        %2953 = vmatpush.msra.mxu0 %v2605
        %2954 = vmatpush.msra.mxu0 %v2604
        %2955 = vmatpush.msra.mxu0 %v2603
        %2956 = vmatmul.f32.gmra.mxu0 %v2848
        %v2957 = vpop.f32.mrf.mxu0
        %v2958 = vadd.f32 %v2929, %v2957
        %2959 = vmatmul.f32.gmra.mxu0 %v2864
        %v2960 = vpop.f32.mrf.mxu0
        %v2961 = vadd.f32 %v2932, %v2960
        %2962 = vmatmul.f32.gmra.mxu0 %v2880
        %v2963 = vpop.f32.mrf.mxu0
        %v2964 = vadd.f32 %v2935, %v2963
        %2965 = vmatmul.f32.gmra.mxu0 %v2896
        %v2966 = vpop.f32.mrf.mxu0
        %v2967 = vadd.f32 %v2938, %v2966
        %2968 = vdwg.mxu0
        %2969 = vmatpush.msra.mxu0 %v2634
        %2970 = vmatpush.msra.mxu0 %v2633
        %2971 = vmatpush.msra.mxu0 %v2632
        %2972 = vmatpush.msra.mxu0 %v2631
        %2973 = vmatpush.msra.mxu0 %v2630
        %2974 = vmatpush.msra.mxu0 %v2629
        %2975 = vmatpush.msra.mxu0 %v2628
        %2976 = vmatpush.msra.mxu0 %v2627
        %2977 = vmatpush.msra.mxu0 %v2626
        %2978 = vmatpush.msra.mxu0 %v2625
        %2979 = vmatpush.msra.mxu0 %v2624
        %2980 = vmatpush.msra.mxu0 %v2623
        %2981 = vmatpush.msra.mxu0 %v2622
        %2982 = vmatpush.msra.mxu0 %v2621
        %2983 = vmatpush.msra.mxu0 %v2620
        %2984 = vmatpush.msra.mxu0 %v2619
        %2985 = vmatmul.f32.gmra.mxu0 %v2849
        %v2986 = vpop.f32.mrf.mxu0
        %v2987 = vadd.f32 %v2958, %v2986
        %2988 = vmatmul.f32.gmra.mxu0 %v2865
        %v2989 = vpop.f32.mrf.mxu0
        %v2990 = vadd.f32 %v2961, %v2989
        %2991 = vmatmul.f32.gmra.mxu0 %v2881
        %v2992 = vpop.f32.mrf.mxu0
        %v2993 = vadd.f32 %v2964, %v2992
        %2994 = vmatmul.f32.gmra.mxu0 %v2897
        %v2995 = vpop.f32.mrf.mxu0
        %v2996 = vadd.f32 %v2967, %v2995
        %2997 = vdwg.mxu0
        %2998 = vmatpush.msra.mxu0 %v2650
        %2999 = vmatpush.msra.mxu0 %v2649
        %3000 = vmatpush.msra.mxu0 %v2648
        %3001 = vmatpush.msra.mxu0 %v2647
        %3002 = vmatpush.msra.mxu0 %v2646
        %3003 = vmatpush.msra.mxu0 %v2645
        %3004 = vmatpush.msra.mxu0 %v2644
        %3005 = vmatpush.msra.mxu0 %v2643
        %3006 = vmatpush.msra.mxu0 %v2642
        %3007 = vmatpush.msra.mxu0 %v2641
        %3008 = vmatpush.msra.mxu0 %v2640
        %3009 = vmatpush.msra.mxu0 %v2639
        %3010 = vmatpush.msra.mxu0 %v2638
        %3011 = vmatpush.msra.mxu0 %v2637
        %3012 = vmatpush.msra.mxu0 %v2636
        %3013 = vmatpush.msra.mxu0 %v2635
        %3014 = vmatmul.f32.gmra.mxu0 %v2850
        %v3015 = vpop.f32.mrf.mxu0
        %v3016 = vadd.f32 %v2987, %v3015
        %3017 = vmatmul.f32.gmra.mxu0 %v2866
        %v3018 = vpop.f32.mrf.mxu0
        %v3019 = vadd.f32 %v2990, %v3018
        %3020 = vmatmul.f32.gmra.mxu0 %v2882
        %v3021 = vpop.f32.mrf.mxu0
        %v3022 = vadd.f32 %v2993, %v3021
        %3023 = vmatmul.f32.gmra.mxu0 %v2898
        %v3024 = vpop.f32.mrf.mxu0
        %v3025 = vadd.f32 %v2996, %v3024
        %3026 = vdwg.mxu0
        %3027 = vmatpush.msra.mxu0 %v2666
        %3028 = vmatpush.msra.mxu0 %v2665
        %3029 = vmatpush.msra.mxu0 %v2664
        %3030 = vmatpush.msra.mxu0 %v2663
        %3031 = vmatpush.msra.mxu0 %v2662
        %3032 = vmatpush.msra.mxu0 %v2661
        %3033 = vmatpush.msra.mxu0 %v2660
        %3034 = vmatpush.msra.mxu0 %v2659
        %3035 = vmatpush.msra.mxu0 %v2658
        %3036 = vmatpush.msra.mxu0 %v2657
        %3037 = vmatpush.msra.mxu0 %v2656
        %3038 = vmatpush.msra.mxu0 %v2655
        %3039 = vmatpush.msra.mxu0 %v2654
        %3040 = vmatpush.msra.mxu0 %v2653
        %3041 = vmatpush.msra.mxu0 %v2652
        %3042 = vmatpush.msra.mxu0 %v2651
        %3043 = vmatmul.f32.gmra.mxu0 %v2851
        %v3044 = vpop.f32.mrf.mxu0
        %v3045 = vadd.f32 %v3016, %v3044
        %3046 = vmatmul.f32.gmra.mxu0 %v2867
        %v3047 = vpop.f32.mrf.mxu0
        %v3048 = vadd.f32 %v3019, %v3047
        %3049 = vmatmul.f32.gmra.mxu0 %v2883
        %v3050 = vpop.f32.mrf.mxu0
        %v3051 = vadd.f32 %v3022, %v3050
        %3052 = vmatmul.f32.gmra.mxu0 %v2899
        %v3053 = vpop.f32.mrf.mxu0
        %v3054 = vadd.f32 %v3025, %v3053
        %3055 = vdwg.mxu0
        %3056 = vmatpush.msra.mxu0 %v2682
        %3057 = vmatpush.msra.mxu0 %v2681
        %3058 = vmatpush.msra.mxu0 %v2680
        %3059 = vmatpush.msra.mxu0 %v2679
        %3060 = vmatpush.msra.mxu0 %v2678
        %3061 = vmatpush.msra.mxu0 %v2677
        %3062 = vmatpush.msra.mxu0 %v2676
        %3063 = vmatpush.msra.mxu0 %v2675
        %3064 = vmatpush.msra.mxu0 %v2674
        %3065 = vmatpush.msra.mxu0 %v2673
        %3066 = vmatpush.msra.mxu0 %v2672
        %3067 = vmatpush.msra.mxu0 %v2671
        %3068 = vmatpush.msra.mxu0 %v2670
        %3069 = vmatpush.msra.mxu0 %v2669
        %3070 = vmatpush.msra.mxu0 %v2668
        %3071 = vmatpush.msra.mxu0 %v2667
        %3072 = vmatmul.f32.gmra.mxu0 %v2852
        %v3073 = vpop.f32.mrf.mxu0
        %v3074 = vadd.f32 %v3045, %v3073
        %3075 = vmatmul.f32.gmra.mxu0 %v2868
        %v3076 = vpop.f32.mrf.mxu0
        %v3077 = vadd.f32 %v3048, %v3076
        %3078 = vmatmul.f32.gmra.mxu0 %v2884
        %v3079 = vpop.f32.mrf.mxu0
        %v3080 = vadd.f32 %v3051, %v3079
        %3081 = vmatmul.f32.gmra.mxu0 %v2900
        %v3082 = vpop.f32.mrf.mxu0
        %v3083 = vadd.f32 %v3054, %v3082
        %3084 = vdwg.mxu0
        %3085 = vmatpush.msra.mxu0 %v2698
        %3086 = vmatpush.msra.mxu0 %v2697
        %3087 = vmatpush.msra.mxu0 %v2696
        %3088 = vmatpush.msra.mxu0 %v2695
        %3089 = vmatpush.msra.mxu0 %v2694
        %3090 = vmatpush.msra.mxu0 %v2693
        %3091 = vmatpush.msra.mxu0 %v2692
        %3092 = vmatpush.msra.mxu0 %v2691
        %3093 = vmatpush.msra.mxu0 %v2690
        %3094 = vmatpush.msra.mxu0 %v2689
        %3095 = vmatpush.msra.mxu0 %v2688
        %3096 = vmatpush.msra.mxu0 %v2687
        %3097 = vmatpush.msra.mxu0 %v2686
        %3098 = vmatpush.msra.mxu0 %v2685
        %3099 = vmatpush.msra.mxu0 %v2684
        %3100 = vmatpush.msra.mxu0 %v2683
        %3101 = vmatmul.f32.gmra.mxu0 %v2853
        %v3102 = vpop.f32.mrf.mxu0
        %v3103 = vadd.f32 %v3074, %v3102
        %3104 = vmatmul.f32.gmra.mxu0 %v2869
        %v3105 = vpop.f32.mrf.mxu0
        %v3106 = vadd.f32 %v3077, %v3105
        %3107 = vmatmul.f32.gmra.mxu0 %v2885
        %v3108 = vpop.f32.mrf.mxu0
        %v3109 = vadd.f32 %v3080, %v3108
        %3110 = vmatmul.f32.gmra.mxu0 %v2901
        %v3111 = vpop.f32.mrf.mxu0
        %v3112 = vadd.f32 %v3083, %v3111
        %3113 = vdwg.mxu0
        %3114 = vmatpush.msra.mxu0 %v2714
        %3115 = vmatpush.msra.mxu0 %v2713
        %3116 = vmatpush.msra.mxu0 %v2712
        %3117 = vmatpush.msra.mxu0 %v2711
        %3118 = vmatpush.msra.mxu0 %v2710
        %3119 = vmatpush.msra.mxu0 %v2709
        %3120 = vmatpush.msra.mxu0 %v2708
        %3121 = vmatpush.msra.mxu0 %v2707
        %3122 = vmatpush.msra.mxu0 %v2706
        %3123 = vmatpush.msra.mxu0 %v2705
        %3124 = vmatpush.msra.mxu0 %v2704
        %3125 = vmatpush.msra.mxu0 %v2703
        %3126 = vmatpush.msra.mxu0 %v2702
        %3127 = vmatpush.msra.mxu0 %v2701
        %3128 = vmatpush.msra.mxu0 %v2700
        %3129 = vmatpush.msra.mxu0 %v2699
        %3130 = vmatmul.f32.gmra.mxu0 %v2854
        %v3131 = vpop.f32.mrf.mxu0
        %v3132 = vadd.f32 %v3103, %v3131
        %3133 = vmatmul.f32.gmra.mxu0 %v2870
        %v3134 = vpop.f32.mrf.mxu0
        %v3135 = vadd.f32 %v3106, %v3134
        %3136 = vmatmul.f32.gmra.mxu0 %v2886
        %v3137 = vpop.f32.mrf.mxu0
        %v3138 = vadd.f32 %v3109, %v3137
        %3139 = vmatmul.f32.gmra.mxu0 %v2902
        %v3140 = vpop.f32.mrf.mxu0
        %v3141 = vadd.f32 %v3112, %v3140
        %3142 = vdwg.mxu0
        %3143 = vmatpush.msra.mxu0 %v2730
        %3144 = vmatpush.msra.mxu0 %v2729
        %3145 = vmatpush.msra.mxu0 %v2728
        %3146 = vmatpush.msra.mxu0 %v2727
        %3147 = vmatpush.msra.mxu0 %v2726
        %3148 = vmatpush.msra.mxu0 %v2725
        %3149 = vmatpush.msra.mxu0 %v2724
        %3150 = vmatpush.msra.mxu0 %v2723
        %3151 = vmatpush.msra.mxu0 %v2722
        %3152 = vmatpush.msra.mxu0 %v2721
        %3153 = vmatpush.msra.mxu0 %v2720
        %3154 = vmatpush.msra.mxu0 %v2719
        %3155 = vmatpush.msra.mxu0 %v2718
        %3156 = vmatpush.msra.mxu0 %v2717
        %3157 = vmatpush.msra.mxu0 %v2716
        %3158 = vmatpush.msra.mxu0 %v2715
        %3159 = vmatmul.f32.gmra.mxu0 %v2855
        %v3160 = vpop.f32.mrf.mxu0
        %v3161 = vadd.f32 %v3132, %v3160
        %3162 = vmatmul.f32.gmra.mxu0 %v2871
        %v3163 = vpop.f32.mrf.mxu0
        %v3164 = vadd.f32 %v3135, %v3163
        %3165 = vmatmul.f32.gmra.mxu0 %v2887
        %v3166 = vpop.f32.mrf.mxu0
        %v3167 = vadd.f32 %v3138, %v3166
        %3168 = vmatmul.f32.gmra.mxu0 %v2903
        %v3169 = vpop.f32.mrf.mxu0
        %v3170 = vadd.f32 %v3141, %v3169
        %3171 = vdwg.mxu0
        %3172 = vmatpush.msra.mxu0 %v2746
        %3173 = vmatpush.msra.mxu0 %v2745
        %3174 = vmatpush.msra.mxu0 %v2744
        %3175 = vmatpush.msra.mxu0 %v2743
        %3176 = vmatpush.msra.mxu0 %v2742
        %3177 = vmatpush.msra.mxu0 %v2741
        %3178 = vmatpush.msra.mxu0 %v2740
        %3179 = vmatpush.msra.mxu0 %v2739
        %3180 = vmatpush.msra.mxu0 %v2738
        %3181 = vmatpush.msra.mxu0 %v2737
        %3182 = vmatpush.msra.mxu0 %v2736
        %3183 = vmatpush.msra.mxu0 %v2735
        %3184 = vmatpush.msra.mxu0 %v2734
        %3185 = vmatpush.msra.mxu0 %v2733
        %3186 = vmatpush.msra.mxu0 %v2732
        %3187 = vmatpush.msra.mxu0 %v2731
        %3188 = vmatmul.f32.gmra.mxu0 %v2856
        %v3189 = vpop.f32.mrf.mxu0
        %v3190 = vadd.f32 %v3161, %v3189
        %3191 = vmatmul.f32.gmra.mxu0 %v2872
        %v3192 = vpop.f32.mrf.mxu0
        %v3193 = vadd.f32 %v3164, %v3192
        %3194 = vmatmul.f32.gmra.mxu0 %v2888
        %v3195 = vpop.f32.mrf.mxu0
        %v3196 = vadd.f32 %v3167, %v3195
        %3197 = vmatmul.f32.gmra.mxu0 %v2904
        %v3198 = vpop.f32.mrf.mxu0
        %v3199 = vadd.f32 %v3170, %v3198
        %3200 = vdwg.mxu0
        %3201 = vmatpush.msra.mxu0 %v2762
        %3202 = vmatpush.msra.mxu0 %v2761
        %3203 = vmatpush.msra.mxu0 %v2760
        %3204 = vmatpush.msra.mxu0 %v2759
        %3205 = vmatpush.msra.mxu0 %v2758
        %3206 = vmatpush.msra.mxu0 %v2757
        %3207 = vmatpush.msra.mxu0 %v2756
        %3208 = vmatpush.msra.mxu0 %v2755
        %3209 = vmatpush.msra.mxu0 %v2754
        %3210 = vmatpush.msra.mxu0 %v2753
        %3211 = vmatpush.msra.mxu0 %v2752
        %3212 = vmatpush.msra.mxu0 %v2751
        %3213 = vmatpush.msra.mxu0 %v2750
        %3214 = vmatpush.msra.mxu0 %v2749
        %3215 = vmatpush.msra.mxu0 %v2748
        %3216 = vmatpush.msra.mxu0 %v2747
        %3217 = vmatmul.f32.gmra.mxu0 %v2857
        %v3218 = vpop.f32.mrf.mxu0
        %v3219 = vadd.f32 %v3190, %v3218
        %3220 = vmatmul.f32.gmra.mxu0 %v2873
        %v3221 = vpop.f32.mrf.mxu0
        %v3222 = vadd.f32 %v3193, %v3221
        %3223 = vmatmul.f32.gmra.mxu0 %v2889
        %v3224 = vpop.f32.mrf.mxu0
        %v3225 = vadd.f32 %v3196, %v3224
        %3226 = vmatmul.f32.gmra.mxu0 %v2905
        %v3227 = vpop.f32.mrf.mxu0
        %v3228 = vadd.f32 %v3199, %v3227
        %3229 = vdwg.mxu0
        %3230 = vmatpush.msra.mxu0 %v2778
        %3231 = vmatpush.msra.mxu0 %v2777
        %3232 = vmatpush.msra.mxu0 %v2776
        %3233 = vmatpush.msra.mxu0 %v2775
        %3234 = vmatpush.msra.mxu0 %v2774
        %3235 = vmatpush.msra.mxu0 %v2773
        %3236 = vmatpush.msra.mxu0 %v2772
        %3237 = vmatpush.msra.mxu0 %v2771
        %3238 = vmatpush.msra.mxu0 %v2770
        %3239 = vmatpush.msra.mxu0 %v2769
        %3240 = vmatpush.msra.mxu0 %v2768
        %3241 = vmatpush.msra.mxu0 %v2767
        %3242 = vmatpush.msra.mxu0 %v2766
        %3243 = vmatpush.msra.mxu0 %v2765
        %3244 = vmatpush.msra.mxu0 %v2764
        %3245 = vmatpush.msra.mxu0 %v2763
        %3246 = vmatmul.f32.gmra.mxu0 %v2858
        %v3247 = vpop.f32.mrf.mxu0
        %v3248 = vadd.f32 %v3219, %v3247
        %3249 = vmatmul.f32.gmra.mxu0 %v2874
        %v3250 = vpop.f32.mrf.mxu0
        %v3251 = vadd.f32 %v3222, %v3250
        %3252 = vmatmul.f32.gmra.mxu0 %v2890
        %v3253 = vpop.f32.mrf.mxu0
        %v3254 = vadd.f32 %v3225, %v3253
        %3255 = vmatmul.f32.gmra.mxu0 %v2906
        %v3256 = vpop.f32.mrf.mxu0
        %v3257 = vadd.f32 %v3228, %v3256
        %3258 = vdwg.mxu0
        %3259 = vmatpush.msra.mxu0 %v2794
        %3260 = vmatpush.msra.mxu0 %v2793
        %3261 = vmatpush.msra.mxu0 %v2792
        %3262 = vmatpush.msra.mxu0 %v2791
        %3263 = vmatpush.msra.mxu0 %v2790
        %3264 = vmatpush.msra.mxu0 %v2789
        %3265 = vmatpush.msra.mxu0 %v2788
        %3266 = vmatpush.msra.mxu0 %v2787
        %3267 = vmatpush.msra.mxu0 %v2786
        %3268 = vmatpush.msra.mxu0 %v2785
        %3269 = vmatpush.msra.mxu0 %v2784
        %3270 = vmatpush.msra.mxu0 %v2783
        %3271 = vmatpush.msra.mxu0 %v2782
        %3272 = vmatpush.msra.mxu0 %v2781
        %3273 = vmatpush.msra.mxu0 %v2780
        %3274 = vmatpush.msra.mxu0 %v2779
        %3275 = vmatmul.f32.gmra.mxu0 %v2859
        %v3276 = vpop.f32.mrf.mxu0
        %v3277 = vadd.f32 %v3248, %v3276
        %3278 = vmatmul.f32.gmra.mxu0 %v2875
        %v3279 = vpop.f32.mrf.mxu0
        %v3280 = vadd.f32 %v3251, %v3279
        %3281 = vmatmul.f32.gmra.mxu0 %v2891
        %v3282 = vpop.f32.mrf.mxu0
        %v3283 = vadd.f32 %v3254, %v3282
        %3284 = vmatmul.f32.gmra.mxu0 %v2907
        %v3285 = vpop.f32.mrf.mxu0
        %v3286 = vadd.f32 %v3257, %v3285
        %3287 = vdwg.mxu0
        %3288 = vmatpush.msra.mxu0 %v2810
        %3289 = vmatpush.msra.mxu0 %v2809
        %3290 = vmatpush.msra.mxu0 %v2808
        %3291 = vmatpush.msra.mxu0 %v2807
        %3292 = vmatpush.msra.mxu0 %v2806
        %3293 = vmatpush.msra.mxu0 %v2805
        %3294 = vmatpush.msra.mxu0 %v2804
        %3295 = vmatpush.msra.mxu0 %v2803
        %3296 = vmatpush.msra.mxu0 %v2802
        %3297 = vmatpush.msra.mxu0 %v2801
        %3298 = vmatpush.msra.mxu0 %v2800
        %3299 = vmatpush.msra.mxu0 %v2799
        %3300 = vmatpush.msra.mxu0 %v2798
        %3301 = vmatpush.msra.mxu0 %v2797
        %3302 = vmatpush.msra.mxu0 %v2796
        %3303 = vmatpush.msra.mxu0 %v2795
        %3304 = vmatmul.f32.gmra.mxu0 %v2860
        %v3305 = vpop.f32.mrf.mxu0
        %v3306 = vadd.f32 %v3277, %v3305
        %3307 = vmatmul.f32.gmra.mxu0 %v2876
        %v3308 = vpop.f32.mrf.mxu0
        %v3309 = vadd.f32 %v3280, %v3308
        %3310 = vmatmul.f32.gmra.mxu0 %v2892
        %v3311 = vpop.f32.mrf.mxu0
        %v3312 = vadd.f32 %v3283, %v3311
        %3313 = vmatmul.f32.gmra.mxu0 %v2908
        %v3314 = vpop.f32.mrf.mxu0
        %v3315 = vadd.f32 %v3286, %v3314
        %3316 = vdwg.mxu0
        %3317 = vmatpush.msra.mxu0 %v2826
        %3318 = vmatpush.msra.mxu0 %v2825
        %3319 = vmatpush.msra.mxu0 %v2824
        %3320 = vmatpush.msra.mxu0 %v2823
        %3321 = vmatpush.msra.mxu0 %v2822
        %3322 = vmatpush.msra.mxu0 %v2821
        %3323 = vmatpush.msra.mxu0 %v2820
        %3324 = vmatpush.msra.mxu0 %v2819
        %3325 = vmatpush.msra.mxu0 %v2818
        %3326 = vmatpush.msra.mxu0 %v2817
        %3327 = vmatpush.msra.mxu0 %v2816
        %3328 = vmatpush.msra.mxu0 %v2815
        %3329 = vmatpush.msra.mxu0 %v2814
        %3330 = vmatpush.msra.mxu0 %v2813
        %3331 = vmatpush.msra.mxu0 %v2812
        %3332 = vmatpush.msra.mxu0 %v2811
        %3333 = vmatmul.f32.gmra.mxu0 %v2861
        %v3334 = vpop.f32.mrf.mxu0
        %v3335 = vadd.f32 %v3306, %v3334
        %3336 = vmatmul.f32.gmra.mxu0 %v2877
        %v3337 = vpop.f32.mrf.mxu0
        %v3338 = vadd.f32 %v3309, %v3337
        %3339 = vmatmul.f32.gmra.mxu0 %v2893
        %v3340 = vpop.f32.mrf.mxu0
        %v3341 = vadd.f32 %v3312, %v3340
        %3342 = vmatmul.f32.gmra.mxu0 %v2909
        %v3343 = vpop.f32.mrf.mxu0
        %v3344 = vadd.f32 %v3315, %v3343
        %3345 = vdwg.mxu0
        %3346 = vmatpush.msra.mxu0 %v2842
        %3347 = vmatpush.msra.mxu0 %v2841
        %3348 = vmatpush.msra.mxu0 %v2840
        %3349 = vmatpush.msra.mxu0 %v2839
        %3350 = vmatpush.msra.mxu0 %v2838
        %3351 = vmatpush.msra.mxu0 %v2837
        %3352 = vmatpush.msra.mxu0 %v2836
        %3353 = vmatpush.msra.mxu0 %v2835
        %3354 = vmatpush.msra.mxu0 %v2834
        %3355 = vmatpush.msra.mxu0 %v2833
        %3356 = vmatpush.msra.mxu0 %v2832
        %3357 = vmatpush.msra.mxu0 %v2831
        %3358 = vmatpush.msra.mxu0 %v2830
        %3359 = vmatpush.msra.mxu0 %v2829
        %3360 = vmatpush.msra.mxu0 %v2828
        %3361 = vmatpush.msra.mxu0 %v2827
        %3362 = vmatmul.f32.gmra.mxu0 %v2862
        %v3363 = vpop.f32.mrf.mxu0
        %v3364 = vadd.f32 %v3335, %v3363
        %3365 = vmatmul.f32.gmra.mxu0 %v2878
        %v3366 = vpop.f32.mrf.mxu0
        %v3367 = vadd.f32 %v3338, %v3366
        %3368 = vmatmul.f32.gmra.mxu0 %v2894
        %v3369 = vpop.f32.mrf.mxu0
        %v3370 = vadd.f32 %v3341, %v3369
        %3371 = vmatmul.f32.gmra.mxu0 %v2910
        %v3372 = vpop.f32.mrf.mxu0
        %v3373 = vadd.f32 %v3344, %v3372
        %3374 = vdwg.mxu0
        %v3375 = vadd.f32 %v2843, %v3364
        %v3376 = vadd.f32 %v2844, %v3367
        %v3377 = vadd.f32 %v2845, %v3370
        %v3378 = vadd.f32 %v2846, %v3373
        %vm3379 = vcmask 64512
        %3380 = vst.msk [vmem:[#allocation2] sm:$0xff] %vm3379, %v3375
        %3381 = vst.msk [vmem:[#allocation2 + $0x8] sm:$0xff] %vm3379, %v3376
        %3382 = vst.msk [vmem:[#allocation2 + $0x10] sm:$0xff] %vm3379, %v3377
        %3383 = vst.msk [vmem:[#allocation2 + $0x18] sm:$0xff] %vm3379, %v3378
        %p3384 = scmp.eq.s32.totalorder %s29, 2
        // Predicated region
        $region100: #{emoformer_forward.2} parent=90 // pred_check
          %p3385 = pneg %p3384
        $region101: #{emoformer_forward.2} parent=90 // pred_check_branch
          %3387 = sbr.rel (%p3385) target = $region103
        $region102: #{emoformer_forward.2} parent=90 // pred_region
          %v3388 = vld [vmem:[#allocation2] sm:$0xff]
          %v3389 = vld [vmem:[#allocation2 + $0x8] sm:$0xff]
          %v3390 = vld [vmem:[#allocation2 + $0x10] sm:$0xff]
          %v3391 = vld [vmem:[#allocation2 + $0x18] sm:$0xff]
          %v3392 = vld [vmem:[%s4] sm:$0xff]
          %v3393 = vld [vmem:[%s5] sm:$0x1]
          %v3395 = vperm.slane %v3393, 0
          %v3398 = vsel %vm3379, %v3388, 0
          %v3401 = vsel %vm3379, %v3389, 0
          %v3404 = vsel %vm3379, %v3390, 0
          %v3407 = vsel %vm3379, %v3391, 0
          %3409 = vmatpush.msra.mxu0 0.0
          %3410 = vmatpush.msra.mxu0 0.0
          %3411 = vmatpush.msra.mxu0 0.0
          %3412 = vmatpush.msra.mxu0 0.0
          %3413 = vmatpush.msra.mxu0 0.0
          %3414 = vmatpush.msra.mxu0 0.0
          %3415 = vmatpush.msra.mxu0 0.0
          %3416 = vmatpush.msra.mxu0 0.0
          %3417 = vmatpush.msra.mxu0 0.0
          %3418 = vmatpush.msra.mxu0 0.0
          %3419 = vmatpush.msra.mxu0 0.0
          %3420 = vmatpush.msra.mxu0 0.0
          %3421 = vmatpush.msra.mxu0 0.0
          %3422 = vmatpush.msra.mxu0 0.0
          %3423 = vmatpush.msra.mxu0 0.0
          %3424 = vmatpush.msra.mxu0 %v3392
          %3425 = vmatmul.f32.gmra.mxu0 %v3398
          %v3426 = vpop.f32.mrf.mxu0
          %v3427 = vadd.f32 %v3395, %v3426
          %3428 = vmatmul.f32.gmra.mxu0 %v3401
          %v3429 = vpop.f32.mrf.mxu0
          %v3430 = vadd.f32 %v3395, %v3429
          %3431 = vmatmul.f32.gmra.mxu0 %v3404
          %v3432 = vpop.f32.mrf.mxu0
          %v3433 = vadd.f32 %v3395, %v3432
          %3434 = vmatmul.f32.gmra.mxu0 %v3407
          %v3435 = vpop.f32.mrf.mxu0
          %v3436 = vadd.f32 %v3395, %v3435
          %3437 = vdwg.mxu0
          %v3438 = vld [vmem:[%s727] sm:$0xff]
          %v3439 = vld [vmem:[%s727 + $0x8] sm:$0xff]
          %v3440 = vld [vmem:[%s727 + $0x10] sm:$0xff]
          %v3441 = vld [vmem:[%s727 + $0x18] sm:$0xff]
          %v3442 = vld [vmem:[%s727 + $0x20] sm:$0xff]
          %v3443 = vld [vmem:[%s727 + $0x28] sm:$0xff]
          %v3444 = vld [vmem:[%s727 + $0x30] sm:$0xff]
          %v3445 = vld [vmem:[%s727 + $0x38] sm:$0xff]
          %v3446 = vld [vmem:[%s730] sm:$0x1]
          %v3448 = vperm.slane %v3446, 0
          %vm3450 = vcmask 523264
          %v3452 = vsel %vm3450, %v3427, 0
          %v3455 = vsel %vm3450, %v3430, 0
          %v3458 = vsel %vm3450, %v3433, 0
          %v3461 = vsel %vm3450, %v3436, 0
          %3463 = vmatpush.msra.mxu0 0.0
          %3464 = vmatpush.msra.mxu0 0.0
          %3465 = vmatpush.msra.mxu0 0.0
          %3466 = vmatpush.msra.mxu0 0.0
          %3467 = vmatpush.msra.mxu0 0.0
          %3468 = vmatpush.msra.mxu0 0.0
          %3469 = vmatpush.msra.mxu0 0.0
          %3470 = vmatpush.msra.mxu0 0.0
          %3471 = vmatpush.msra.mxu0 %v3445
          %3472 = vmatpush.msra.mxu0 %v3444
          %3473 = vmatpush.msra.mxu0 %v3443
          %3474 = vmatpush.msra.mxu0 %v3442
          %3475 = vmatpush.msra.mxu0 %v3441
          %3476 = vmatpush.msra.mxu0 %v3440
          %3477 = vmatpush.msra.mxu0 %v3439
          %3478 = vmatpush.msra.mxu0 %v3438
          %3479 = vmatmul.f32.gmra.mxu0 %v3452
          %v3480 = vpop.f32.mrf.mxu0
          %v3481 = vadd.f32 %v3448, %v3480
          %3482 = vmatmul.f32.gmra.mxu0 %v3455
          %v3483 = vpop.f32.mrf.mxu0
          %v3484 = vadd.f32 %v3448, %v3483
          %3485 = vmatmul.f32.gmra.mxu0 %v3458
          %v3486 = vpop.f32.mrf.mxu0
          %v3487 = vadd.f32 %v3448, %v3486
          %3488 = vmatmul.f32.gmra.mxu0 %v3461
          %v3489 = vpop.f32.mrf.mxu0
          %v3490 = vadd.f32 %v3448, %v3489
          %3491 = vdwg.mxu0
          %vm3492 = vcmask 261120
          %3493 = vst.msk [vmem:[#allocation3] sm:$0xff] %vm3492, %v3481
          %3494 = vst.msk [vmem:[#allocation3 + $0x8] sm:$0xff] %vm3492, %v3484
          %3495 = vst.msk [vmem:[#allocation3 + $0x10] sm:$0xff] %vm3492, %v3487
          %3496 = vst.msk [vmem:[#allocation3 + $0x18] sm:$0xff] %vm3492, %v3490
          %v3497 = vld [vmem:[#allocation3] sm:$0xff]
          %v3498 = vld [vmem:[#allocation3 + $0x8] sm:$0xff]
          %v3499 = vld [vmem:[#allocation3 + $0x10] sm:$0xff]
          %v3500 = vld [vmem:[#allocation3 + $0x18] sm:$0xff]
          %v3501 = vld [vmem:[%s735] sm:$0xff]
          %v3502 = vld [vmem:[%s735 + $0x8] sm:$0xff]
          %v3503 = vld [vmem:[%s735 + $0x10] sm:$0xff]
          %v3504 = vld [vmem:[%s735 + $0x18] sm:$0xff]
          %v3505 = vld [vmem:[%s739] sm:$0x1]
          %v3507 = vperm.slane %v3505, 0
          %v3510 = vsel %vm3492, %v3497, 0
          %v3513 = vsel %vm3492, %v3498, 0
          %v3516 = vsel %vm3492, %v3499, 0
          %v3519 = vsel %vm3492, %v3500, 0
          %3521 = vmatpush.msra.mxu0 0.0
          %3522 = vmatpush.msra.mxu0 0.0
          %3523 = vmatpush.msra.mxu0 0.0
          %3524 = vmatpush.msra.mxu0 0.0
          %3525 = vmatpush.msra.mxu0 0.0
          %3526 = vmatpush.msra.mxu0 0.0
          %3527 = vmatpush.msra.mxu0 0.0
          %3528 = vmatpush.msra.mxu0 0.0
          %3529 = vmatpush.msra.mxu0 0.0
          %3530 = vmatpush.msra.mxu0 0.0
          %3531 = vmatpush.msra.mxu0 0.0
          %3532 = vmatpush.msra.mxu0 0.0
          %3533 = vmatpush.msra.mxu0 %v3504
          %3534 = vmatpush.msra.mxu0 %v3503
          %3535 = vmatpush.msra.mxu0 %v3502
          %3536 = vmatpush.msra.mxu0 %v3501
          %3537 = vmatmul.f32.gmra.mxu0 %v3510
          %v3538 = vpop.f32.mrf.mxu0
          %v3539 = vadd.f32 %v3507, %v3538
          %3540 = vmatmul.f32.gmra.mxu0 %v3513
          %v3541 = vpop.f32.mrf.mxu0
          %v3542 = vadd.f32 %v3507, %v3541
          %3543 = vmatmul.f32.gmra.mxu0 %v3516
          %v3544 = vpop.f32.mrf.mxu0
          %v3545 = vadd.f32 %v3507, %v3544
          %3546 = vmatmul.f32.gmra.mxu0 %v3519
          %v3547 = vpop.f32.mrf.mxu0
          %v3548 = vadd.f32 %v3507, %v3547
          %3549 = vdwg.mxu0
          %v3550 = vxor.u32 %v3539, 2147483648
          %v3551 = vxor.u32 %v3542, 2147483648
          %v3552 = vxor.u32 %v3545, 2147483648
          %v3553 = vxor.u32 %v3548, 2147483648
          %v3554 = vmul.f32 %v3550, 1.442695
          %v3555 = vpow.pop %v3554
          %v3556 = vmul.f32 %v3551, 1.442695
          %v3557 = vpow.pop %v3556
          %v3558 = vmul.f32 %v3552, 1.442695
          %v3559 = vpow.pop %v3558
          %v3560 = vmul.f32 %v3553, 1.442695
          %v3561 = vpow.pop %v3560
          %v3562 = vadd.f32 %v3555, 1.0
          %v3563 = vadd.f32 %v3557, 1.0
          %v3564 = vadd.f32 %v3559, 1.0
          %v3565 = vadd.f32 %v3561, 1.0
          %v3566 = vrcp.pop %v3562
          %v3567 = vmul.f32 %v3562, %v3566
          %v3568 = vsub.f32 1.0, %v3567
          %v3569 = vmul.f32 %v3566, %v3568
          %v3570 = vadd.f32 %v3566, %v3569
          %vm3571 = vweird.f32 %v3562
          %vm3572 = vweird.f32 %v3566
          %vm3573 = vmor %vm3571, %vm3572
          %v3574 = vsel %vm3573, %v3566, %v3570
          %v3575 = vand.u32 2147483647, %v3562
          %vm3576 = vcmp.eq.f32.partialorder %v3575, 8.507059e+37
          %v3577 = vand.u32 %v3562, 2147483648
          %v3578 = vor.u32 1.1754944e-38, %v3577
          %v3579 = vsel %vm3576, %v3578, %v3574
          %v3580 = vmul.f32 1.0, %v3579
          %v3581 = vrcp.pop %v3563
          %v3582 = vmul.f32 %v3563, %v3581
          %v3583 = vsub.f32 1.0, %v3582
          %v3584 = vmul.f32 %v3581, %v3583
          %v3585 = vadd.f32 %v3581, %v3584
          %vm3586 = vweird.f32 %v3563
          %vm3587 = vweird.f32 %v3581
          %vm3588 = vmor %vm3586, %vm3587
          %v3589 = vsel %vm3588, %v3581, %v3585
          %v3590 = vand.u32 2147483647, %v3563
          %vm3591 = vcmp.eq.f32.partialorder %v3590, 8.507059e+37
          %v3592 = vand.u32 %v3563, 2147483648
          %v3593 = vor.u32 1.1754944e-38, %v3592
          %v3594 = vsel %vm3591, %v3593, %v3589
          %v3595 = vmul.f32 1.0, %v3594
          %v3596 = vrcp.pop %v3564
          %v3597 = vmul.f32 %v3564, %v3596
          %v3598 = vsub.f32 1.0, %v3597
          %v3599 = vmul.f32 %v3596, %v3598
          %v3600 = vadd.f32 %v3596, %v3599
          %vm3601 = vweird.f32 %v3564
          %vm3602 = vweird.f32 %v3596
          %vm3603 = vmor %vm3601, %vm3602
          %v3604 = vsel %vm3603, %v3596, %v3600
          %v3605 = vand.u32 2147483647, %v3564
          %vm3606 = vcmp.eq.f32.partialorder %v3605, 8.507059e+37
          %v3607 = vand.u32 %v3564, 2147483648
          %v3608 = vor.u32 1.1754944e-38, %v3607
          %v3609 = vsel %vm3606, %v3608, %v3604
          %v3610 = vmul.f32 1.0, %v3609
          %v3611 = vrcp.pop %v3565
          %v3612 = vmul.f32 %v3565, %v3611
          %v3613 = vsub.f32 1.0, %v3612
          %v3614 = vmul.f32 %v3611, %v3613
          %v3615 = vadd.f32 %v3611, %v3614
          %vm3616 = vweird.f32 %v3565
          %vm3617 = vweird.f32 %v3611
          %vm3618 = vmor %vm3616, %vm3617
          %v3619 = vsel %vm3618, %v3611, %v3615
          %v3620 = vand.u32 2147483647, %v3565
          %vm3621 = vcmp.eq.f32.partialorder %v3620, 8.507059e+37
          %v3622 = vand.u32 %v3565, 2147483648
          %v3623 = vor.u32 1.1754944e-38, %v3622
          %v3624 = vsel %vm3621, %v3623, %v3619
          %v3625 = vmul.f32 1.0, %v3624
          %v3626 = vmul.f32 %v3539, %v3580
          %v3627 = vmul.f32 %v3542, %v3595
          %v3628 = vmul.f32 %v3545, %v3610
          %v3629 = vmul.f32 %v3548, %v3625
          %v3630 = vld [vmem:[%s743] sm:$0x1]
          %v3631 = vxor.u32 %v3630, 2147483648
          %v3632 = vmul.f32 %v3631, 1.442695
          %v3633 = vpow.pop %v3632
          %v3634 = vadd.f32 %v3633, 1.0
          %v3635 = vrcp.pop %v3634
          %v3636 = vmul.f32 %v3634, %v3635
          %v3637 = vsub.f32 1.0, %v3636
          %v3638 = vmul.f32 %v3635, %v3637
          %v3639 = vadd.f32 %v3635, %v3638
          %vm3640 = vweird.f32 %v3634
          %vm3641 = vweird.f32 %v3635
          %vm3642 = vmor %vm3640, %vm3641
          %v3643 = vsel %vm3642, %v3635, %v3639
          %v3644 = vand.u32 2147483647, %v3634
          %vm3645 = vcmp.eq.f32.partialorder %v3644, 8.507059e+37
          %v3646 = vand.u32 %v3634, 2147483648
          %v3647 = vor.u32 1.1754944e-38, %v3646
          %v3648 = vsel %vm3645, %v3647, %v3643
          %v3649 = vmul.f32 1.0, %v3648
          %v3651 = vperm.slane %v3649, 0
          %v3653 = vmul.f32 %v3651, 0.0
          %v3654 = vsub.f32 1.0, %v3649
          %v3656 = vperm.slane %v3654, 0
          %v3658 = vmul.f32 %v3656, %v3626
          %v3659 = vadd.f32 %v3653, %v3658
          %v3660 = vadd.f32 %v3497, %v3659
          %3661 = vst.msk [vmem:[#allocation3] sm:$0xff] %vm3492, %v3660
          %v3662 = vmul.f32 %v3651, %v3659
          %v3663 = vmul.f32 %v3656, %v3627
          %v3664 = vadd.f32 %v3662, %v3663
          %v3665 = vadd.f32 %v3498, %v3664
          %3666 = vst.msk [vmem:[#allocation3 + $0x8] sm:$0xff] %vm3492, %v3665
          %v3667 = vmul.f32 %v3651, %v3664
          %v3668 = vmul.f32 %v3656, %v3628
          %v3669 = vadd.f32 %v3667, %v3668
          %v3670 = vadd.f32 %v3499, %v3669
          %3671 = vst.msk [vmem:[#allocation3 + $0x10] sm:$0xff] %vm3492, %v3670
          %v3672 = vmul.f32 %v3651, %v3669
          %v3673 = vmul.f32 %v3656, %v3629
          %v3674 = vadd.f32 %v3672, %v3673
          %v3675 = vadd.f32 %v3500, %v3674
          %3676 = vst.msk [vmem:[#allocation3 + $0x18] sm:$0xff] %vm3492, %v3675
          %v3677 = vld [vmem:[#allocation3] sm:$0xff]
          %v3678 = vld [vmem:[#allocation3 + $0x8] sm:$0xff]
          %v3679 = vld [vmem:[#allocation3 + $0x10] sm:$0xff]
          %v3680 = vld [vmem:[#allocation3 + $0x18] sm:$0xff]
          %s3681 = scalar_lea.vmem %s735, 32
          %v3682 = vld [vmem:[%s3681] sm:$0xff]
          %v3683 = vld [vmem:[%s3681 + $0x8] sm:$0xff]
          %v3684 = vld [vmem:[%s3681 + $0x10] sm:$0xff]
          %v3685 = vld [vmem:[%s3681 + $0x18] sm:$0xff]
          %s3686 = scalar_lea.vmem %s739, 1
          %v3687 = vld [vmem:[%s3686] sm:$0x1]
          %v3689 = vperm.slane %v3687, 0
          %v3692 = vsel %vm3492, %v3677, 0
          %v3695 = vsel %vm3492, %v3678, 0
          %v3698 = vsel %vm3492, %v3679, 0
          %v3701 = vsel %vm3492, %v3680, 0
          %3703 = vmatpush.msra.mxu0 0.0
          %3704 = vmatpush.msra.mxu0 0.0
          %3705 = vmatpush.msra.mxu0 0.0
          %3706 = vmatpush.msra.mxu0 0.0
          %3707 = vmatpush.msra.mxu0 0.0
          %3708 = vmatpush.msra.mxu0 0.0
          %3709 = vmatpush.msra.mxu0 0.0
          %3710 = vmatpush.msra.mxu0 0.0
          %3711 = vmatpush.msra.mxu0 0.0
          %3712 = vmatpush.msra.mxu0 0.0
          %3713 = vmatpush.msra.mxu0 0.0
          %3714 = vmatpush.msra.mxu0 0.0
          %3715 = vmatpush.msra.mxu0 %v3685
          %3716 = vmatpush.msra.mxu0 %v3684
          %3717 = vmatpush.msra.mxu0 %v3683
          %3718 = vmatpush.msra.mxu0 %v3682
          %3719 = vmatmul.f32.gmra.mxu0 %v3692
          %v3720 = vpop.f32.mrf.mxu0
          %v3721 = vadd.f32 %v3689, %v3720
          %3722 = vmatmul.f32.gmra.mxu0 %v3695
          %v3723 = vpop.f32.mrf.mxu0
          %v3724 = vadd.f32 %v3689, %v3723
          %3725 = vmatmul.f32.gmra.mxu0 %v3698
          %v3726 = vpop.f32.mrf.mxu0
          %v3727 = vadd.f32 %v3689, %v3726
          %3728 = vmatmul.f32.gmra.mxu0 %v3701
          %v3729 = vpop.f32.mrf.mxu0
          %v3730 = vadd.f32 %v3689, %v3729
          %3731 = vdwg.mxu0
          %v3732 = vxor.u32 %v3721, 2147483648
          %v3733 = vxor.u32 %v3724, 2147483648
          %v3734 = vxor.u32 %v3727, 2147483648
          %v3735 = vxor.u32 %v3730, 2147483648
          %v3736 = vmul.f32 %v3732, 1.442695
          %v3737 = vpow.pop %v3736
          %v3738 = vmul.f32 %v3733, 1.442695
          %v3739 = vpow.pop %v3738
          %v3740 = vmul.f32 %v3734, 1.442695
          %v3741 = vpow.pop %v3740
          %v3742 = vmul.f32 %v3735, 1.442695
          %v3743 = vpow.pop %v3742
          %v3744 = vadd.f32 %v3737, 1.0
          %v3745 = vadd.f32 %v3739, 1.0
          %v3746 = vadd.f32 %v3741, 1.0
          %v3747 = vadd.f32 %v3743, 1.0
          %v3748 = vrcp.pop %v3744
          %v3749 = vmul.f32 %v3744, %v3748
          %v3750 = vsub.f32 1.0, %v3749
          %v3751 = vmul.f32 %v3748, %v3750
          %v3752 = vadd.f32 %v3748, %v3751
          %vm3753 = vweird.f32 %v3744
          %vm3754 = vweird.f32 %v3748
          %vm3755 = vmor %vm3753, %vm3754
          %v3756 = vsel %vm3755, %v3748, %v3752
          %v3757 = vand.u32 2147483647, %v3744
          %vm3758 = vcmp.eq.f32.partialorder %v3757, 8.507059e+37
          %v3759 = vand.u32 %v3744, 2147483648
          %v3760 = vor.u32 1.1754944e-38, %v3759
          %v3761 = vsel %vm3758, %v3760, %v3756
          %v3762 = vmul.f32 1.0, %v3761
          %v3763 = vrcp.pop %v3745
          %v3764 = vmul.f32 %v3745, %v3763
          %v3765 = vsub.f32 1.0, %v3764
          %v3766 = vmul.f32 %v3763, %v3765
          %v3767 = vadd.f32 %v3763, %v3766
          %vm3768 = vweird.f32 %v3745
          %vm3769 = vweird.f32 %v3763
          %vm3770 = vmor %vm3768, %vm3769
          %v3771 = vsel %vm3770, %v3763, %v3767
          %v3772 = vand.u32 2147483647, %v3745
          %vm3773 = vcmp.eq.f32.partialorder %v3772, 8.507059e+37
          %v3774 = vand.u32 %v3745, 2147483648
          %v3775 = vor.u32 1.1754944e-38, %v3774
          %v3776 = vsel %vm3773, %v3775, %v3771
          %v3777 = vmul.f32 1.0, %v3776
          %v3778 = vrcp.pop %v3746
          %v3779 = vmul.f32 %v3746, %v3778
          %v3780 = vsub.f32 1.0, %v3779
          %v3781 = vmul.f32 %v3778, %v3780
          %v3782 = vadd.f32 %v3778, %v3781
          %vm3783 = vweird.f32 %v3746
          %vm3784 = vweird.f32 %v3778
          %vm3785 = vmor %vm3783, %vm3784
          %v3786 = vsel %vm3785, %v3778, %v3782
          %v3787 = vand.u32 2147483647, %v3746
          %vm3788 = vcmp.eq.f32.partialorder %v3787, 8.507059e+37
          %v3789 = vand.u32 %v3746, 2147483648
          %v3790 = vor.u32 1.1754944e-38, %v3789
          %v3791 = vsel %vm3788, %v3790, %v3786
          %v3792 = vmul.f32 1.0, %v3791
          %v3793 = vrcp.pop %v3747
          %v3794 = vmul.f32 %v3747, %v3793
          %v3795 = vsub.f32 1.0, %v3794
          %v3796 = vmul.f32 %v3793, %v3795
          %v3797 = vadd.f32 %v3793, %v3796
          %vm3798 = vweird.f32 %v3747
          %vm3799 = vweird.f32 %v3793
          %vm3800 = vmor %vm3798, %vm3799
          %v3801 = vsel %vm3800, %v3793, %v3797
          %v3802 = vand.u32 2147483647, %v3747
          %vm3803 = vcmp.eq.f32.partialorder %v3802, 8.507059e+37
          %v3804 = vand.u32 %v3747, 2147483648
          %v3805 = vor.u32 1.1754944e-38, %v3804
          %v3806 = vsel %vm3803, %v3805, %v3801
          %v3807 = vmul.f32 1.0, %v3806
          %v3808 = vmul.f32 %v3721, %v3762
          %v3809 = vmul.f32 %v3724, %v3777
          %v3810 = vmul.f32 %v3727, %v3792
          %v3811 = vmul.f32 %v3730, %v3807
          %s3812 = scalar_lea.vmem %s743, 1
          %v3813 = vld [vmem:[%s3812] sm:$0x1]
          %v3814 = vxor.u32 %v3813, 2147483648
          %v3815 = vmul.f32 %v3814, 1.442695
          %v3816 = vpow.pop %v3815
          %v3817 = vadd.f32 %v3816, 1.0
          %v3818 = vrcp.pop %v3817
          %v3819 = vmul.f32 %v3817, %v3818
          %v3820 = vsub.f32 1.0, %v3819
          %v3821 = vmul.f32 %v3818, %v3820
          %v3822 = vadd.f32 %v3818, %v3821
          %vm3823 = vweird.f32 %v3817
          %vm3824 = vweird.f32 %v3818
          %vm3825 = vmor %vm3823, %vm3824
          %v3826 = vsel %vm3825, %v3818, %v3822
          %v3827 = vand.u32 2147483647, %v3817
          %vm3828 = vcmp.eq.f32.partialorder %v3827, 8.507059e+37
          %v3829 = vand.u32 %v3817, 2147483648
          %v3830 = vor.u32 1.1754944e-38, %v3829
          %v3831 = vsel %vm3828, %v3830, %v3826
          %v3832 = vmul.f32 1.0, %v3831
          %v3834 = vperm.slane %v3832, 0
          %v3836 = vmul.f32 %v3834, 0.0
          %v3837 = vsub.f32 1.0, %v3832
          %v3839 = vperm.slane %v3837, 0
          %v3841 = vmul.f32 %v3839, %v3808
          %v3842 = vadd.f32 %v3836, %v3841
          %v3843 = vadd.f32 %v3677, %v3842
          %3844 = vst.msk [vmem:[#allocation3] sm:$0xff] %vm3492, %v3843
          %v3845 = vmul.f32 %v3834, %v3842
          %v3846 = vmul.f32 %v3839, %v3809
          %v3847 = vadd.f32 %v3845, %v3846
          %v3848 = vadd.f32 %v3678, %v3847
          %3849 = vst.msk [vmem:[#allocation3 + $0x8] sm:$0xff] %vm3492, %v3848
          %v3850 = vmul.f32 %v3834, %v3847
          %v3851 = vmul.f32 %v3839, %v3810
          %v3852 = vadd.f32 %v3850, %v3851
          %v3853 = vadd.f32 %v3679, %v3852
          %3854 = vst.msk [vmem:[#allocation3 + $0x10] sm:$0xff] %vm3492, %v3853
          %v3855 = vmul.f32 %v3834, %v3852
          %v3856 = vmul.f32 %v3839, %v3811
          %v3857 = vadd.f32 %v3855, %v3856
          %v3858 = vadd.f32 %v3680, %v3857
          %3859 = vst.msk [vmem:[#allocation3 + $0x18] sm:$0xff] %vm3492, %v3858
          %v3860 = vld [vmem:[#allocation3 + $0x18] sm:$0xff]
          %v3861 = vld [vmem:[%s748] sm:$0xff]
          %v3862 = vld [vmem:[%s748 + $0x8] sm:$0xff]
          %v3863 = vld [vmem:[%s748 + $0x10] sm:$0xff]
          %v3864 = vld [vmem:[%s748 + $0x18] sm:$0xff]
          %v3865 = vld [vmem:[%s751] sm:$0x1]
          %v3867 = vperm.slane %v3865, 0
          %v3870 = vsel %vm3492, %v3860, 0
          %3872 = vmatpush.msra.mxu0 0.0
          %3873 = vmatpush.msra.mxu0 0.0
          %3874 = vmatpush.msra.mxu0 0.0
          %3875 = vmatpush.msra.mxu0 0.0
          %3876 = vmatpush.msra.mxu0 0.0
          %3877 = vmatpush.msra.mxu0 0.0
          %3878 = vmatpush.msra.mxu0 0.0
          %3879 = vmatpush.msra.mxu0 0.0
          %3880 = vmatpush.msra.mxu0 0.0
          %3881 = vmatpush.msra.mxu0 0.0
          %3882 = vmatpush.msra.mxu0 0.0
          %3883 = vmatpush.msra.mxu0 0.0
          %3884 = vmatpush.msra.mxu0 %v3864
          %3885 = vmatpush.msra.mxu0 %v3863
          %3886 = vmatpush.msra.mxu0 %v3862
          %3887 = vmatpush.msra.mxu0 %v3861
          %3888 = vmatmul.f32.gmra.mxu0 %v3870
          %v3889 = vpop.f32.mrf.mxu0
          %v3890 = vadd.f32 %v3867, %v3889
          %3891 = vdwg.mxu0
          %vm3892 = vcmask 259072
          %3893 = vst.msk [vmem:[%s755] sm:$0x3f] %vm3892, %v3890
        $region103: #{emoformer_forward.2} parent=90 // pred_fallthru
          _
        %p3894 = scmp.lt.s32.totalorder %s28, 1
        %s3895 = scalar_select %p3894, %s28, 1
        %s3896 = smul.addr %s3895, 8
        %s3897 = scalar_lea.vmem %s13, %s3896
        // Predicated region
        $region104: #{emoformer_forward.2} parent=90 // pred_check
          %p3898 = pneg %p374
        $region105: #{emoformer_forward.2} parent=90 // pred_check_branch
          %3900 = sbr.rel (%p3898) target = $region107
        $region106: #{emoformer_forward.2} parent=90 // pred_region
          _
        $region107: #{emoformer_forward.2} parent=90 // pred_fallthru
          _
      $region91: #{emoformer_forward.2} parent=5 // pred_fallthru
        _
      %p3901 = scmp.le.s32.totalorder 2, %s19
      // Predicated region
      $region108: #{emoformer_forward.2} parent=5 // pred_check
        %p3902 = pneg %p3901
      $region109: #{emoformer_forward.2} parent=5 // pred_check_branch
        %3904 = sbr.rel (%p3902) target = $region111
      $region110: #{emoformer_forward.2} parent=5 // pred_region
        %s3905 = ssub.s32 %s19, 2
        // Predicated region
        $region112: #{emoformer_forward.2} parent=110 // pred_check
          %p3906 = pneg %p380
        $region113: #{emoformer_forward.2} parent=110 // pred_check_branch
          %3908 = sbr.rel (%p3906) target = $region115
        $region114: #{emoformer_forward.2} parent=110 // pred_region
          %p3909 = scmp.lt.s32.totalorder %s30, 1
          %s3910 = scalar_select %p3909, %s30, 1
          %s3911 = smul.addr %s3910, 8
          %s3912 = scalar_lea.vmem %s13, %s3911
        $region115: #{emoformer_forward.2} parent=110 // pred_fallthru
          _
      $region111: #{emoformer_forward.2} parent=5 // pred_fallthru
        _
    $region6: #{emoformer_forward.2} parent=1 // loop_footer
      %s23 = sadd.s32 1, %s19
    $region7: #{emoformer_forward.2} parent=1 // loop_footer_branch
      %18 = sbr.rel target = $region3
    $region8: #{emoformer_forward.2} parent=1 // loop_exit
      _

</llo_original>
